<compile_context>
chip_gen: v5e
topology: v5e:2x2
jax: 0.10.0
libtpu: 0.0.40
codegen_flags: <defaults>
</compile_context>

<pallas_src>
import functools
import math

import jax
import jax.numpy as jnp
from jax import lax
from jax.experimental import pallas as pl
from jax.experimental.pallas import tpu as pltpu


def _round_up(v, m):
    return -(-v // m) * m


# ---------------------------------------------------------------------------
# Fused stem kernel
# ---------------------------------------------------------------------------
def _stem_fused_kernel(xeb_ref, xeh_ref, xob_ref, xoh_ref, w_ref, b_ref, out_ref,
                       *, bp, bpi, cout, wp):
    """Fused 7x7/s2 conv (BN scale pre-folded) + bias + ReLU + 3x3/s2 max-pool.

    xeb_ref: (1, 2*bp, wp_e, 48) bf16  even conv columns, body rows of this block
    xeh_ref: (1, 4,    wp_e, 48) bf16  even conv columns, 4-row halo below the body
    xob_ref: (1, 2*bp, wp_o, 48) bf16  odd conv columns (col 0 = conv col -1), body rows
    xoh_ref: (1, 4,    wp_o, 48) bf16  odd conv columns, 4-row halo
    w_ref  : (48, 4*Cout)        bf16  K = 4 col-taps x 12 s2d-ch, N = 4 row-taps x Cout
    b_ref  : (1, Cout)           f32   frozen-BN bias
    out_ref: (1, bp, wp, Cout)   f32   pooled output rows for this grid step
    """
    i = pl.program_id(1)               # pooled-row block index
    nsub = bp // bpi
    rin_i = 2 * bpi + 4                # s2d rows per sub-chunk (incl. 3+1 halo rows)
    rc_i = 2 * bpi + 1                 # conv rows per sub-chunk
    w = w_ref[...]
    bias = b_ref[...]
    neg = jnp.float32(-1e30)

    def conv_rows(x3):
        # x3: (rin_i, wc, 48) bf16 -> raw conv rows (rc_i, wc, Cout) f32 (scale folded).
        wc = x3.shape[1]
        z = jnp.dot(x3.reshape(rin_i * wc, 48), w,
                    preferred_element_type=jnp.float32).reshape(rin_i, wc, 4 * cout)
        # row-tap group u2 lives in lanes [u2*Cout, (u2+1)*Cout) and is shifted by u2 rows
        return (z[0:rc_i, :, 0 * cout:1 * cout] +
                z[1:rc_i + 1, :, 1 * cout:2 * cout] +
                z[2:rc_i + 2, :, 2 * cout:3 * cout] +
                z[3:rc_i + 3, :, 3 * cout:4 * cout])

    # Static loop over sub-chunks of bpi pooled rows: each chunk's matmul result is
    # consumed (shift-add, pool, store) before the next chunk's dot, so the live f32
    # intermediate never grows with bp (review item 4; keeps the v5e vst slot unsaturated).
    for j in range(nsub):
        s0 = 2 * bpi * j
        if j == nsub - 1:
            # Last sub-chunk reaches into the 4-row halo block.
            xe_j = jnp.concatenate([xeb_ref[0, s0:s0 + 2 * bpi], xeh_ref[0]], axis=0)
            xo_j = jnp.concatenate([xob_ref[0, s0:s0 + 2 * bpi], xoh_ref[0]], axis=0)
        else:
            xe_j = xeb_ref[0, s0:s0 + rin_i]
            xo_j = xob_ref[0, s0:s0 + rin_i]

        ye = conv_rows(xe_j)           # (rc_i, wp_e, cout)  even conv cols 2Q
        yo = conv_rows(xo_j)           # (rc_i, wp_o, cout)  odd conv cols 2Q-1

        # 3-wide column max at stride 2: pooled col Q <- conv cols (2Q-1, 2Q, 2Q+1).
        # Conv col -1 (yo col 0) is pool padding -> masked with a value-level where
        # (no scratch store / reload round trip).
        col = lax.broadcasted_iota(jnp.int32, (rc_i, wp, cout), 1)
        yo_left = jnp.where(col == 0, neg, yo[:, 0:wp, :])
        colmax = jnp.maximum(ye[:, 0:wp, :],
                             jnp.maximum(yo_left, yo[:, 1:wp + 1, :]))

        if j == 0:
            # Conv row -1 (pool padding) only exists in the very first pooled-row block.
            row = lax.broadcasted_iota(jnp.int32, (rc_i, wp, cout), 0)
            colmax = jnp.where(jnp.logical_and(row == 0, i == 0), neg, colmax)

        # 3-wide row max at stride 2 via outer-dim reshapes (no strided VMEM access).
        a = colmax[0:2 * bpi].reshape(bpi, 2, wp, cout)
        b2 = colmax[1:2 * bpi + 1].reshape(bpi, 2, wp, cout)
        pooled = jnp.maximum(jnp.maximum(a[:, 0], a[:, 1]), b2[:, 1])   # (bpi, wp, cout)

        # bias + ReLU commute with max -> applied on the (4x smaller) pooled tile.
        out_ref[0, j * bpi:(j + 1) * bpi] = jnp.maximum(pooled + bias, 0.0).astype(out_ref.dtype)


# ---------------------------------------------------------------------------
# Wrapper: layout plumbing (cheap, 3-channel input) + pallas_call
# ---------------------------------------------------------------------------
def base_stem_forward(params, x_nchw, *, block_rows=16, sub_rows=8):
    """BaseStem forward.  x_nchw: (N, 3, H, W) float32, returns (N, Cout, H//4, W//4)."""
    w7 = params["conv1_weight"]          # (7, 7, 3, Cout)  HWIO
    scale = params["bn_scale"]           # (Cout,)
    bias = params["bn_bias"]             # (Cout,)
    n, cin, h, w_in = x_nchw.shape
    assert cin == 3
    # TODO(synk): general H/W (odd sizes / ceil pooling); standard detector inputs are %32.
    assert h % 4 == 0 and w_in % 4 == 0, "BaseStem Pallas kernel requires H, W % 4 == 0"
    cout = w7.shape[-1]

    ho, wo = h // 2, w_in // 2           # conv output size
    hp, wp = ho // 2, wo // 2            # pooled output size

    bp = min(block_rows, hp)             # pooled rows per grid step
    bp += bp % 2                         # halo BlockSpec indexing needs bp even
    nbi = -(-hp // bp)
    hp_pad = nbi * bp
    extra = hp_pad - hp
    bpi = min(sub_rows, bp)              # pooled rows per in-kernel matmul chunk
    if bp % bpi:
        bpi = bp
    nsub = bp // bpi

    # Conv-column counts per parity, rounded to multiples of 8 so the in-kernel
    # (rows, wc, 48) -> (rows*wc, 48) reshape is layout-preserving (no relayout).
    wp_e = _round_up(wp, 8)              # even conv columns
    wp_o = _round_up(wp + 1, 8)          # odd conv columns (incl. pool-halo col -1)
    ws = max(2 * wp_e + 3, 2 * wp_o + 2)  # space-to-depth columns needed
    hs = 2 * hp_pad + 4                  # space-to-depth rows (incl. halos)

    # ---- NCHW f32 -> padded NHWC bf16 (one cheap layout pass over the 3-channel input)
    x = jnp.transpose(x_nchw, (0, 2, 3, 1)).astype(jnp.bfloat16)
    xp = jnp.pad(x, ((0, 0), (6, 2 * hs - h - 6), (6, 2 * ws - w_in - 6), (0, 0)))

    # ---- space-to-depth by 2: 7x7/s2 conv becomes a 4x4/s1 conv over 12 channels
    xs = xp.reshape(n, hs, 2, ws, 2, 3).transpose(0, 1, 3, 2, 4, 5).reshape(n, hs, ws, 12)

    # ---- unfold the 4 column taps into the contraction axis (K = 4*12 = 48), by parity.
    # TODO(synk): review item 1 (build the K=48 LHS in-kernel from xs) was evaluated and
    # deferred: a VMEM-side build needs lane concats of 24/48-lane-dense vregs (XLU-bound,
    # costlier than this extra HBM pass on v5e/v6e/v7x), and the duplication-free K=24
    # matmul decomposition costs ~2.5x MXU pushes.  Next step would be a manual-DMA
    # pair-layout gather (memory_space=pl.ANY + make_async_copy into lane-offset slices).
    xe = jnp.concatenate([xs[:, :, 1 + v2: 1 + v2 + 2 * wp_e: 2, :] for v2 in range(4)],
                         axis=-1)                                   # (N, HS, wp_e, 48)
    xo = jnp.concatenate([xs[:, :, v2: v2 + 2 * wp_o: 2, :] for v2 in range(4)],
                         axis=-1)                                   # (N, HS, wp_o, 48)

    # ---- weights: fold BN scale, rewrite 7x7 as 8x8 s2d taps, K = (v2,dy,dx,c), N = (u2,co)
    w8 = jnp.pad(w7.astype(jnp.float32) * scale[None, None, None, :],
                 ((1, 0), (1, 0), (0, 0), (0, 0)))                  # (8, 8, 3, Cout)
    wb = w8.reshape(4, 2, 4, 2, 3, cout)                            # (u2, dy, v2, dx, c, co)
    wb = wb.transpose(2, 1, 3, 4, 0, 5).reshape(48, 4 * cout).astype(jnp.bfloat16)
    bias2d = bias.reshape(1, cout).astype(jnp.float32)

    rin_i = 2 * bpi + 4
    flops = 2 * n * nbi * nsub * rin_i * (wp_e + wp_o) * 48 * (4 * cout)
    bytes_accessed = (n * nbi * (2 * bp + 4) * (wp_e + wp_o) * 48 * 2
                      + wb.size * 2 + bias2d.size * 4
                      + n * hp_pad * wp * cout * 4)

    kernel = functools.partial(_stem_fused_kernel, bp=bp, bpi=bpi, cout=cout, wp=wp)
    out = pl.pallas_call(
        kernel,
        out_shape=jax.ShapeDtypeStruct((n, hp_pad, wp, cout), jnp.float32),
        grid_spec=pltpu.PrefetchScalarGridSpec(
            num_scalar_prefetch=0,
            grid=(n, nbi),
            in_specs=[
                # Overlapping row windows with no HBM duplication: body rows
                # [2*bp*i, 2*bp*(i+1)) + a 4-row halo block starting at 2*bp*(i+1).
                pl.BlockSpec((1, 2 * bp, wp_e, 48), lambda b, i: (b, i, 0, 0)),
                pl.BlockSpec((1, 4, wp_e, 48), lambda b, i: (b, (i + 1) * (bp // 2), 0, 0)),
                pl.BlockSpec((1, 2 * bp, wp_o, 48), lambda b, i: (b, i, 0, 0)),
                pl.BlockSpec((1, 4, wp_o, 48), lambda b, i: (b, (i + 1) * (bp // 2), 0, 0)),
                pl.BlockSpec((48, 4 * cout), lambda b, i: (0, 0)),
                pl.BlockSpec((1, cout), lambda b, i: (0, 0)),
            ],
            out_specs=pl.BlockSpec((1, bp, wp, cout), lambda b, i: (b, i, 0, 0)),
        ),
        compiler_params=pltpu.CompilerParams(
            dimension_semantics=("parallel", "parallel"),
            # <= ~48 MiB (incl. lane-padding of the 48/64-wide minor dims) so the default
            # bp=16 / bpi=8 tiling also fits v7x's 64 MiB physical VMEM; v5e/v6e have slack.
            vmem_limit_bytes=48 * 1024 * 1024,
        ),
        cost_estimate=pl.CostEstimate(
            flops=flops, transcendentals=0, bytes_accessed=bytes_accessed),
    )(xe, xe, xo, xo, wb, bias2d)

    out = out[:, :hp]                                   # drop padded pooled rows
    # TODO(synk): for a full backbone keep NHWC / bf16 and fuse into the consumer; kept
    # f32 NCHW here to match the PyTorch module's output contract exactly.
    return jnp.transpose(out, (0, 3, 1, 2))             # NHWC -> NCHW (PyTorch layout)


# ---------------------------------------------------------------------------
# Parameters (synthetic, mirrors BaseStem.__init__ with FrozenBatchNorm2d)
# ---------------------------------------------------------------------------
def make_stem_params(key, out_channels=64):
    # TODO(synk): only the frozen (affine) norm_func used by maskrcnn_benchmark is modeled.
    k1, k2, k3, k4, k5 = jax.random.split(key, 5)
    fan_in = 7 * 7 * 3
    a = 1.0
    bound = math.sqrt(6.0 / ((1.0 + a * a) * fan_in))   # kaiming_uniform_(a=1)
    w = jax.random.uniform(k1, (7, 7, 3, out_channels), jnp.float32, -bound, bound)
    mean = 0.1 * jax.random.normal(k2, (out_channels,), jnp.float32)
    var = jax.random.uniform(k3, (out_channels,), jnp.float32, 0.5, 1.5)
    gamma = jax.random.uniform(k4, (out_channels,), jnp.float32, 0.5, 1.5)
    beta = 0.1 * jax.random.normal(k5, (out_channels,), jnp.float32)
    scale = gamma * jax.lax.rsqrt(var + 1e-5)
    return {"conv1_weight": w, "bn_scale": scale, "bn_bias": beta - mean * scale}


# ---------------------------------------------------------------------------
# Pure-JAX reference (f32) for validation
# ---------------------------------------------------------------------------
def base_stem_reference(params, x_nchw):
    w7 = params["conv1_weight"]
    scale, bias = params["bn_scale"], params["bn_bias"]
    y = jax.lax.conv_general_dilated(
        x_nchw.astype(jnp.float32), w7.astype(jnp.float32),
        window_strides=(2, 2), padding=((3, 3), (3, 3)),
        dimension_numbers=("NCHW", "HWIO", "NCHW"),
        precision=jax.lax.Precision.HIGHEST)
    y = y * scale[None, :, None, None] + bias[None, :, None, None]
    y = jnp.maximum(y, 0.0)
    y = jax.lax.reduce_window(
        y, -jnp.inf, jax.lax.max,
        window_dimensions=(1, 1, 3, 3),
        window_strides=(1, 1, 2, 2),
        padding=((0, 0), (0, 0), (1, 1), (1, 1)))
    return y


# ---------------------------------------------------------------------------
if __name__ == "__main__":
    key = jax.random.PRNGKey(0)
    kp, kx = jax.random.split(key)
    params = make_stem_params(kp, out_channels=64)

    # H=96, W=64 exercises multiple pooled-row blocks (nbi=2), padded pooled rows
    # (hp=24, bp=16 -> extra=8), the in-kernel sub-chunk loop (nsub=2) and the halo path.
    x = jax.random.normal(kx, (2, 3, 96, 64), jnp.float32)   # NCHW input

    fwd = jax.jit(base_stem_forward)
    out = jax.block_until_ready(fwd(params, x))

    assert out.shape == (2, 64, 24, 16), out.shape
    assert bool(jnp.all(jnp.isfinite(out)))

    ref = jax.block_until_ready(base_stem_reference(params, x))
    err = float(jnp.max(jnp.abs(out - ref)))
    assert err < 8e-2, f"max abs error vs f32 reference too large: {err}"

    print("KERNEL_OK")
</pallas_src>

<mosaic_0001>
module attributes {stable_mosaic.version = 11 : i64} {
  func.func @_stem_fused_kernel(%arg0: i32, %arg1: i32, %arg2: memref<1x32x16x48xbf16, #tpu.memory_space<vmem>>, %arg3: memref<1x4x16x48xbf16, #tpu.memory_space<vmem>>, %arg4: memref<1x32x24x48xbf16, #tpu.memory_space<vmem>>, %arg5: memref<1x4x24x48xbf16, #tpu.memory_space<vmem>>, %arg6: memref<48x256xbf16, #tpu.memory_space<vmem>>, %arg7: memref<1x64xf32, #tpu.memory_space<vmem>>, %arg8: memref<1x16x16x64xf32, #tpu.memory_space<vmem>>) attributes {dimension_semantics = [#tpu.dimension_semantics<parallel>, #tpu.dimension_semantics<parallel>], iteration_bounds = array<i64: 2, 2>, scalar_prefetch = 0 : i64, scratch_operands = 0 : i64, tpu.core_type = #tpu.core_type<tc>, window_params = [{transform_indices = @transform_0, window_bounds = array<i64: 1, 32, 16, 48>}, {transform_indices = @transform_1, window_bounds = array<i64: 1, 4, 16, 48>}, {transform_indices = @transform_2, window_bounds = array<i64: 1, 32, 24, 48>}, {transform_indices = @transform_3, window_bounds = array<i64: 1, 4, 24, 48>}, {pipeline_mode = #tpu.pipeline_mode<synchronous>, transform_indices = @transform_4, window_bounds = array<i64: 48, 256>}, {pipeline_mode = #tpu.pipeline_mode<synchronous>, transform_indices = @transform_5, window_bounds = array<i64: 1, 64>}, {transform_indices = @transform_6, window_bounds = array<i64: 1, 16, 16, 64>}]} {
    %c0 = arith.constant 0 : index
    %c0_0 = arith.constant 0 : index
    %0 = vector.load %arg6[%c0, %c0_0] : memref<48x256xbf16, #tpu.memory_space<vmem>>, vector<48x256xbf16>
    %c0_1 = arith.constant 0 : index
    %c0_2 = arith.constant 0 : index
    %1 = vector.load %arg7[%c0_1, %c0_2] : memref<1x64xf32, #tpu.memory_space<vmem>>, vector<1x64xf32>
    %c0_3 = arith.constant 0 : index
    %c0_4 = arith.constant 0 : index
    %c0_5 = arith.constant 0 : index
    %c0_6 = arith.constant 0 : index
    %2 = vector.load %arg2[%c0_3, %c0_4, %c0_5, %c0_6] : memref<1x32x16x48xbf16, #tpu.memory_space<vmem>>, vector<1x20x16x48xbf16>
    %3 = vector.shape_cast %2 : vector<1x20x16x48xbf16> to vector<20x16x48xbf16>
    %c0_7 = arith.constant 0 : index
    %c0_8 = arith.constant 0 : index
    %c0_9 = arith.constant 0 : index
    %c0_10 = arith.constant 0 : index
    %4 = vector.load %arg4[%c0_7, %c0_8, %c0_9, %c0_10] : memref<1x32x24x48xbf16, #tpu.memory_space<vmem>>, vector<1x20x24x48xbf16>
    %5 = vector.shape_cast %4 : vector<1x20x24x48xbf16> to vector<20x24x48xbf16>
    %6 = vector.shape_cast %3 : vector<20x16x48xbf16> to vector<320x48xbf16>
    %cst = arith.constant dense<0.000000e+00> : vector<320x256xf32>
    %7 = tpu.matmul %6, %0, %cst {dimension_numbers = #tpu.dot_dimension_numbers<[1], [0], [0], [1], [0, 0, 1, 1], [], []>} : vector<320x48xbf16>, vector<48x256xbf16>, vector<320x256xf32> -> vector<320x256xf32>
    %8 = vector.shape_cast %7 : vector<320x256xf32> to vector<20x16x256xf32>
    %9 = vector.extract_strided_slice %8 {offsets = [0, 0, 0], sizes = [17, 16, 64], strides = [1, 1, 1]} : vector<20x16x256xf32> to vector<17x16x64xf32>
    %10 = vector.extract_strided_slice %8 {offsets = [1, 0, 64], sizes = [17, 16, 64], strides = [1, 1, 1]} : vector<20x16x256xf32> to vector<17x16x64xf32>
    %11 = arith.addf %9, %10 : vector<17x16x64xf32>
    %12 = vector.extract_strided_slice %8 {offsets = [2, 0, 128], sizes = [17, 16, 64], strides = [1, 1, 1]} : vector<20x16x256xf32> to vector<17x16x64xf32>
    %13 = arith.addf %11, %12 : vector<17x16x64xf32>
    %14 = vector.extract_strided_slice %8 {offsets = [3, 0, 192], sizes = [17, 16, 64], strides = [1, 1, 1]} : vector<20x16x256xf32> to vector<17x16x64xf32>
    %15 = arith.addf %13, %14 : vector<17x16x64xf32>
    %16 = vector.shape_cast %5 : vector<20x24x48xbf16> to vector<480x48xbf16>
    %cst_11 = arith.constant dense<0.000000e+00> : vector<480x256xf32>
    %17 = tpu.matmul %16, %0, %cst_11 {dimension_numbers = #tpu.dot_dimension_numbers<[1], [0], [0], [1], [0, 0, 1, 1], [], []>} : vector<480x48xbf16>, vector<48x256xbf16>, vector<480x256xf32> -> vector<480x256xf32>
    %18 = vector.shape_cast %17 : vector<480x256xf32> to vector<20x24x256xf32>
    %19 = vector.extract_strided_slice %18 {offsets = [0, 0, 0], sizes = [17, 24, 64], strides = [1, 1, 1]} : vector<20x24x256xf32> to vector<17x24x64xf32>
    %20 = vector.extract_strided_slice %18 {offsets = [1, 0, 64], sizes = [17, 24, 64], strides = [1, 1, 1]} : vector<20x24x256xf32> to vector<17x24x64xf32>
    %21 = arith.addf %19, %20 : vector<17x24x64xf32>
    %22 = vector.extract_strided_slice %18 {offsets = [2, 0, 128], sizes = [17, 24, 64], strides = [1, 1, 1]} : vector<20x24x256xf32> to vector<17x24x64xf32>
    %23 = arith.addf %21, %22 : vector<17x24x64xf32>
    %24 = vector.extract_strided_slice %18 {offsets = [3, 0, 192], sizes = [17, 24, 64], strides = [1, 1, 1]} : vector<20x24x256xf32> to vector<17x24x64xf32>
    %25 = arith.addf %23, %24 : vector<17x24x64xf32>
    %26 = tpu.iota {dimensions = array<i32: 1>} : vector<17x16x64xi32>
    %c0_i32 = arith.constant 0 : i32
    %27 = vector.broadcast %c0_i32 : i32 to vector<17x16x64xi32>
    %28 = arith.cmpi eq, %26, %27 : vector<17x16x64xi32>
    %29 = vector.extract_strided_slice %25 {offsets = [0, 0, 0], sizes = [17, 16, 64], strides = [1, 1, 1]} : vector<17x24x64xf32> to vector<17x16x64xf32>
    %cst_12 = arith.constant -1.000000e+30 : f32
    %30 = vector.broadcast %cst_12 : f32 to vector<17x16x64xf32>
    %31 = arith.select %28, %30, %29 : vector<17x16x64xi1>, vector<17x16x64xf32>
    %32 = vector.extract_strided_slice %25 {offsets = [0, 1, 0], sizes = [17, 16, 64], strides = [1, 1, 1]} : vector<17x24x64xf32> to vector<17x16x64xf32>
    %33 = arith.maximumf %31, %32 : vector<17x16x64xf32>
    %34 = arith.maximumf %15, %33 : vector<17x16x64xf32>
    %35 = tpu.iota {dimensions = array<i32: 0>} : vector<17x16x64xi32>
    %c0_i32_13 = arith.constant 0 : i32
    %36 = vector.broadcast %c0_i32_13 : i32 to vector<17x16x64xi32>
    %37 = arith.cmpi eq, %35, %36 : vector<17x16x64xi32>
    %c0_i32_14 = arith.constant 0 : i32
    %38 = arith.cmpi eq, %arg1, %c0_i32_14 : i32
    %39 = vector.broadcast %38 : i1 to vector<17x16x64xi1>
    %40 = arith.andi %37, %39 : vector<17x16x64xi1>
    %cst_15 = arith.constant -1.000000e+30 : f32
    %41 = vector.broadcast %cst_15 : f32 to vector<17x16x64xf32>
    %42 = arith.select %40, %41, %34 : vector<17x16x64xi1>, vector<17x16x64xf32>
    %43 = vector.extract_strided_slice %42 {offsets = [0, 0, 0], sizes = [16, 16, 64], strides = [1, 1, 1]} : vector<17x16x64xf32> to vector<16x16x64xf32>
    %44 = vector.shape_cast %43 : vector<16x16x64xf32> to vector<8x2x16x64xf32>
    %45 = vector.extract_strided_slice %42 {offsets = [1, 0, 0], sizes = [16, 16, 64], strides = [1, 1, 1]} : vector<17x16x64xf32> to vector<16x16x64xf32>
    %46 = vector.shape_cast %45 : vector<16x16x64xf32> to vector<8x2x16x64xf32>
    %47 = vector.extract_strided_slice %44 {offsets = [0, 0, 0, 0], sizes = [8, 1, 16, 64], strides = [1, 1, 1, 1]} : vector<8x2x16x64xf32> to vector<8x1x16x64xf32>
    %48 = vector.shape_cast %47 : vector<8x1x16x64xf32> to vector<8x16x64xf32>
    %49 = vector.extract_strided_slice %44 {offsets = [0, 1, 0, 0], sizes = [8, 1, 16, 64], strides = [1, 1, 1, 1]} : vector<8x2x16x64xf32> to vector<8x1x16x64xf32>
    %50 = vector.shape_cast %49 : vector<8x1x16x64xf32> to vector<8x16x64xf32>
    %51 = arith.maximumf %48, %50 : vector<8x16x64xf32>
    %52 = vector.extract_strided_slice %46 {offsets = [0, 1, 0, 0], sizes = [8, 1, 16, 64], strides = [1, 1, 1, 1]} : vector<8x2x16x64xf32> to vector<8x1x16x64xf32>
    %53 = vector.shape_cast %52 : vector<8x1x16x64xf32> to vector<8x16x64xf32>
    %54 = arith.maximumf %51, %53 : vector<8x16x64xf32>
    %55 = vector.shape_cast %1 : vector<1x64xf32> to vector<1x1x64xf32>
    %56 = vector.broadcast %55 : vector<1x1x64xf32> to vector<8x16x64xf32>
    %57 = arith.addf %54, %56 : vector<8x16x64xf32>
    %cst_16 = arith.constant 0.000000e+00 : f32
    %58 = vector.broadcast %cst_16 : f32 to vector<8x16x64xf32>
    %59 = arith.maximumf %57, %58 : vector<8x16x64xf32>
    %c0_17 = arith.constant 0 : index
    %c0_18 = arith.constant 0 : index
    %c0_19 = arith.constant 0 : index
    %c0_20 = arith.constant 0 : index
    %60 = vector.load %arg8[%c0_17, %c0_18, %c0_19, %c0_20] : memref<1x16x16x64xf32, #tpu.memory_space<vmem>>, vector<1x8x16x64xf32>
    %61 = vector.shape_cast %60 : vector<1x8x16x64xf32> to vector<8x16x64xf32>
    %62 = vector.shape_cast %59 : vector<8x16x64xf32> to vector<1x8x16x64xf32>
    tpu.vector_store %arg8[%c0_17, %c0_18, %c0_19, %c0_20], %62 {strides = array<i32>} : memref<1x16x16x64xf32, #tpu.memory_space<vmem>>, vector<1x8x16x64xf32>,
    %c0_21 = arith.constant 0 : index
    %c16 = arith.constant 16 : index
    %c0_22 = arith.constant 0 : index
    %c0_23 = arith.constant 0 : index
    %63 = vector.load %arg2[%c0_21, %c16, %c0_22, %c0_23] : memref<1x32x16x48xbf16, #tpu.memory_space<vmem>>, vector<1x16x16x48xbf16>
    %64 = vector.shape_cast %63 : vector<1x16x16x48xbf16> to vector<16x16x48xbf16>
    %c0_24 = arith.constant 0 : index
    %c0_25 = arith.constant 0 : index
    %c0_26 = arith.constant 0 : index
    %c0_27 = arith.constant 0 : index
    %65 = vector.load %arg3[%c0_24, %c0_25, %c0_26, %c0_27] : memref<1x4x16x48xbf16, #tpu.memory_space<vmem>>, vector<1x4x16x48xbf16>
    %66 = vector.shape_cast %65 : vector<1x4x16x48xbf16> to vector<4x16x48xbf16>
    %67 = tpu.concatenate %64, %66 in 0 : vector<16x16x48xbf16>, vector<4x16x48xbf16> -> vector<20x16x48xbf16>
    %c0_28 = arith.constant 0 : index
    %c16_29 = arith.constant 16 : index
    %c0_30 = arith.constant 0 : index
    %c0_31 = arith.constant 0 : index
    %68 = vector.load %arg4[%c0_28, %c16_29, %c0_30, %c0_31] : memref<1x32x24x48xbf16, #tpu.memory_space<vmem>>, vector<1x16x24x48xbf16>
    %69 = vector.shape_cast %68 : vector<1x16x24x48xbf16> to vector<16x24x48xbf16>
    %c0_32 = arith.constant 0 : index
    %c0_33 = arith.constant 0 : index
    %c0_34 = arith.constant 0 : index
    %c0_35 = arith.constant 0 : index
    %70 = vector.load %arg5[%c0_32, %c0_33, %c0_34, %c0_35] : memref<1x4x24x48xbf16, #tpu.memory_space<vmem>>, vector<1x4x24x48xbf16>
    %71 = vector.shape_cast %70 : vector<1x4x24x48xbf16> to vector<4x24x48xbf16>
    %72 = tpu.concatenate %69, %71 in 0 : vector<16x24x48xbf16>, vector<4x24x48xbf16> -> vector<20x24x48xbf16>
    %73 = vector.shape_cast %67 : vector<20x16x48xbf16> to vector<320x48xbf16>
    %cst_36 = arith.constant dense<0.000000e+00> : vector<320x256xf32>
    %74 = tpu.matmul %73, %0, %cst_36 {dimension_numbers = #tpu.dot_dimension_numbers<[1], [0], [0], [1], [0, 0, 1, 1], [], []>} : vector<320x48xbf16>, vector<48x256xbf16>, vector<320x256xf32> -> vector<320x256xf32>
    %75 = vector.shape_cast %74 : vector<320x256xf32> to vector<20x16x256xf32>
    %76 = vector.extract_strided_slice %75 {offsets = [0, 0, 0], sizes = [17, 16, 64], strides = [1, 1, 1]} : vector<20x16x256xf32> to vector<17x16x64xf32>
    %77 = vector.extract_strided_slice %75 {offsets = [1, 0, 64], sizes = [17, 16, 64], strides = [1, 1, 1]} : vector<20x16x256xf32> to vector<17x16x64xf32>
    %78 = arith.addf %76, %77 : vector<17x16x64xf32>
    %79 = vector.extract_strided_slice %75 {offsets = [2, 0, 128], sizes = [17, 16, 64], strides = [1, 1, 1]} : vector<20x16x256xf32> to vector<17x16x64xf32>
    %80 = arith.addf %78, %79 : vector<17x16x64xf32>
    %81 = vector.extract_strided_slice %75 {offsets = [3, 0, 192], sizes = [17, 16, 64], strides = [1, 1, 1]} : vector<20x16x256xf32> to vector<17x16x64xf32>
    %82 = arith.addf %80, %81 : vector<17x16x64xf32>
    %83 = vector.shape_cast %72 : vector<20x24x48xbf16> to vector<480x48xbf16>
    %cst_37 = arith.constant dense<0.000000e+00> : vector<480x256xf32>
    %84 = tpu.matmul %83, %0, %cst_37 {dimension_numbers = #tpu.dot_dimension_numbers<[1], [0], [0], [1], [0, 0, 1, 1], [], []>} : vector<480x48xbf16>, vector<48x256xbf16>, vector<480x256xf32> -> vector<480x256xf32>
    %85 = vector.shape_cast %84 : vector<480x256xf32> to vector<20x24x256xf32>
    %86 = vector.extract_strided_slice %85 {offsets = [0, 0, 0], sizes = [17, 24, 64], strides = [1, 1, 1]} : vector<20x24x256xf32> to vector<17x24x64xf32>
    %87 = vector.extract_strided_slice %85 {offsets = [1, 0, 64], sizes = [17, 24, 64], strides = [1, 1, 1]} : vector<20x24x256xf32> to vector<17x24x64xf32>
    %88 = arith.addf %86, %87 : vector<17x24x64xf32>
    %89 = vector.extract_strided_slice %85 {offsets = [2, 0, 128], sizes = [17, 24, 64], strides = [1, 1, 1]} : vector<20x24x256xf32> to vector<17x24x64xf32>
    %90 = arith.addf %88, %89 : vector<17x24x64xf32>
    %91 = vector.extract_strided_slice %85 {offsets = [3, 0, 192], sizes = [17, 24, 64], strides = [1, 1, 1]} : vector<20x24x256xf32> to vector<17x24x64xf32>
    %92 = arith.addf %90, %91 : vector<17x24x64xf32>
    %93 = tpu.iota {dimensions = array<i32: 1>} : vector<17x16x64xi32>
    %c0_i32_38 = arith.constant 0 : i32
    %94 = vector.broadcast %c0_i32_38 : i32 to vector<17x16x64xi32>
    %95 = arith.cmpi eq, %93, %94 : vector<17x16x64xi32>
    %96 = vector.extract_strided_slice %92 {offsets = [0, 0, 0], sizes = [17, 16, 64], strides = [1, 1, 1]} : vector<17x24x64xf32> to vector<17x16x64xf32>
    %cst_39 = arith.constant -1.000000e+30 : f32
    %97 = vector.broadcast %cst_39 : f32 to vector<17x16x64xf32>
    %98 = arith.select %95, %97, %96 : vector<17x16x64xi1>, vector<17x16x64xf32>
    %99 = vector.extract_strided_slice %92 {offsets = [0, 1, 0], sizes = [17, 16, 64], strides = [1, 1, 1]} : vector<17x24x64xf32> to vector<17x16x64xf32>
    %100 = arith.maximumf %98, %99 : vector<17x16x64xf32>
    %101 = arith.maximumf %82, %100 : vector<17x16x64xf32>
    %102 = vector.extract_strided_slice %101 {offsets = [0, 0, 0], sizes = [16, 16, 64], strides = [1, 1, 1]} : vector<17x16x64xf32> to vector<16x16x64xf32>
    %103 = vector.shape_cast %102 : vector<16x16x64xf32> to vector<8x2x16x64xf32>
    %104 = vector.extract_strided_slice %101 {offsets = [1, 0, 0], sizes = [16, 16, 64], strides = [1, 1, 1]} : vector<17x16x64xf32> to vector<16x16x64xf32>
    %105 = vector.shape_cast %104 : vector<16x16x64xf32> to vector<8x2x16x64xf32>
    %106 = vector.extract_strided_slice %103 {offsets = [0, 0, 0, 0], sizes = [8, 1, 16, 64], strides = [1, 1, 1, 1]} : vector<8x2x16x64xf32> to vector<8x1x16x64xf32>
    %107 = vector.shape_cast %106 : vector<8x1x16x64xf32> to vector<8x16x64xf32>
    %108 = vector.extract_strided_slice %103 {offsets = [0, 1, 0, 0], sizes = [8, 1, 16, 64], strides = [1, 1, 1, 1]} : vector<8x2x16x64xf32> to vector<8x1x16x64xf32>
    %109 = vector.shape_cast %108 : vector<8x1x16x64xf32> to vector<8x16x64xf32>
    %110 = arith.maximumf %107, %109 : vector<8x16x64xf32>
    %111 = vector.extract_strided_slice %105 {offsets = [0, 1, 0, 0], sizes = [8, 1, 16, 64], strides = [1, 1, 1, 1]} : vector<8x2x16x64xf32> to vector<8x1x16x64xf32>
    %112 = vector.shape_cast %111 : vector<8x1x16x64xf32> to vector<8x16x64xf32>
    %113 = arith.maximumf %110, %112 : vector<8x16x64xf32>
    %114 = vector.shape_cast %1 : vector<1x64xf32> to vector<1x1x64xf32>
    %115 = vector.broadcast %114 : vector<1x1x64xf32> to vector<8x16x64xf32>
    %116 = arith.addf %113, %115 : vector<8x16x64xf32>
    %cst_40 = arith.constant 0.000000e+00 : f32
    %117 = vector.broadcast %cst_40 : f32 to vector<8x16x64xf32>
    %118 = arith.maximumf %116, %117 : vector<8x16x64xf32>
    %c0_41 = arith.constant 0 : index
    %c8 = arith.constant 8 : index
    %c0_42 = arith.constant 0 : index
    %c0_43 = arith.constant 0 : index
    %119 = vector.load %arg8[%c0_41, %c8, %c0_42, %c0_43] : memref<1x16x16x64xf32, #tpu.memory_space<vmem>>, vector<1x8x16x64xf32>
    %120 = vector.shape_cast %119 : vector<1x8x16x64xf32> to vector<8x16x64xf32>
    %121 = vector.shape_cast %118 : vector<8x16x64xf32> to vector<1x8x16x64xf32>
    tpu.vector_store %arg8[%c0_41, %c8, %c0_42, %c0_43], %121 {strides = array<i32>} : memref<1x16x16x64xf32, #tpu.memory_space<vmem>>, vector<1x8x16x64xf32>,
    return
  }
  func.func @transform_0(%arg0: i32, %arg1: i32) -> (i32, i32, i32, i32) {
    %c0_i32 = arith.constant 0 : i32
    %c0_i32_0 = arith.constant 0 : i32
    %c0_i32_1 = arith.constant 0 : i32
    return %arg0, %arg1, %c0_i32, %c0_i32_0 : i32, i32, i32, i32
  }
  func.func @transform_1(%arg0: i32, %arg1: i32) -> (i32, i32, i32, i32) {
    %c1_i32 = arith.constant 1 : i32
    %0 = arith.addi %arg1, %c1_i32 : i32
    %c8_i32 = arith.constant 8 : i32
    %1 = arith.muli %0, %c8_i32 : i32
    %c0_i32 = arith.constant 0 : i32
    %c0_i32_0 = arith.constant 0 : i32
    %c0_i32_1 = arith.constant 0 : i32
    return %arg0, %1, %c0_i32, %c0_i32_0 : i32, i32, i32, i32
  }
  func.func @transform_2(%arg0: i32, %arg1: i32) -> (i32, i32, i32, i32) {
    %c0_i32 = arith.constant 0 : i32
    %c0_i32_0 = arith.constant 0 : i32
    %c0_i32_1 = arith.constant 0 : i32
    return %arg0, %arg1, %c0_i32, %c0_i32_0 : i32, i32, i32, i32
  }
  func.func @transform_3(%arg0: i32, %arg1: i32) -> (i32, i32, i32, i32) {
    %c1_i32 = arith.constant 1 : i32
    %0 = arith.addi %arg1, %c1_i32 : i32
    %c8_i32 = arith.constant 8 : i32
    %1 = arith.muli %0, %c8_i32 : i32
    %c0_i32 = arith.constant 0 : i32
    %c0_i32_0 = arith.constant 0 : i32
    %c0_i32_1 = arith.constant 0 : i32
    return %arg0, %1, %c0_i32, %c0_i32_0 : i32, i32, i32, i32
  }
  func.func @transform_4(%arg0: i32, %arg1: i32) -> (i32, i32) {
    %c0_i32 = arith.constant 0 : i32
    %c0_i32_0 = arith.constant 0 : i32
    %c0_i32_1 = arith.constant 0 : i32
    return %c0_i32, %c0_i32_0 : i32, i32
  }
  func.func @transform_5(%arg0: i32, %arg1: i32) -> (i32, i32) {
    %c0_i32 = arith.constant 0 : i32
    %c0_i32_0 = arith.constant 0 : i32
    %c0_i32_1 = arith.constant 0 : i32
    return %c0_i32, %c0_i32_0 : i32, i32
  }
  func.func @transform_6(%arg0: i32, %arg1: i32) -> (i32, i32, i32, i32) {
    %c0_i32 = arith.constant 0 : i32
    %c0_i32_0 = arith.constant 0 : i32
    %c0_i32_1 = arith.constant 0 : i32
    return %arg0, %arg1, %c0_i32, %c0_i32_0 : i32, i32, i32, i32
  }
}

</mosaic_0001>

<llo_original>
// kernel: base_stem_forward.1
$region0: #{base_stem_forward.1}
  #allocation0 [shape = 'u32[]', space=smem, size = 0x4, offset = 0x4, fixed_abs, tag = 'smem constant byte address 0x4 - core index']
  #allocation1 [shape = 'u32[72,128]{1,0:T(1,128)}', space=vmem, size = 0x9000, scoped, tag = 'internal scratch']
  %s0 = inlined_call_operand.vmem [shape: bf16[2,68,16,48], index: 0, kind: input, shape index: {}, may-alias: {0,1}]
  %s1 = inlined_call_operand.vmem [shape: bf16[2,68,16,48], index: 1, kind: input, shape index: {}, may-alias: {0,1}]
  %s2 = inlined_call_operand.vmem [shape: bf16[2,68,24,48], index: 2, kind: input, shape index: {}, may-alias: {2,3}]
  %s3 = inlined_call_operand.vmem [shape: bf16[2,68,24,48], index: 3, kind: input, shape index: {}, may-alias: {2,3}]
  %s4 = inlined_call_operand.vmem [shape: bf16[48,256], index: 4, kind: input, shape index: {}]
  %s5 = inlined_call_operand.vmem [shape: f32[1,64], index: 5, kind: input, shape index: {}]
  %s6 = inlined_call_operand.vmem [shape: f32[2,32,16,64], index: 6, kind: output, shape index: {}]
  %s7 = sld [smem:[#allocation0]]
  $region57: #{base_stem_forward.1} parent=0
    _
  %s9 = ssub.s32 1, %s7
  %s10 = scalar_select 0, %s9, %s7
  loop: start=0, step=1, limit=6
  $region2: #{base_stem_forward.1} parent=0 // loop_pre_header
    _
  $region3: #{base_stem_forward.1} parent=0 // loop_header
    %s12 = sphi 0, %s16
    %p13 = scmp.ge.s32.totalorder %s12, 6
    %s19 = sphi 0, %s31
    %s20 = sphi 0, %s27
    %s21 = sphi 0, %s19
    %s22 = sphi 0, %s20
    %s23 = sphi 0, %s21
    %s24 = sphi 0, %s22
    %s36 = sphi 0, %s38
    %s39 = sphi 0, %s36
    %s40 = sphi 0, %s39
    %s56 = sphi 0, %s40
    %s68 = sphi 0, %s70
    %s71 = sphi 0, %s68
    %s72 = sphi 0, %s71
    %s88 = sphi 0, %s72
    %s96 = sphi 0, %s98
    %s99 = sphi 0, %s96
    %s100 = sphi 0, %s99
    %s116 = sphi 0, %s100
    %s128 = sphi 0, %s130
    %s131 = sphi 0, %s128
    %s132 = sphi 0, %s131
    %s148 = sphi 0, %s132
    %s152 = sphi 0, %s152
    %s154 = sphi 0, %s152
    %s155 = sphi 0, %s154
    %s169 = sphi 0, %s155
    %s173 = sphi 0, %s173
    %s175 = sphi 0, %s173
    %s176 = sphi 0, %s175
    %s190 = sphi 0, %s176
    %s198 = sphi 0, %s200
    %s201 = sphi 0, %s198
    %s202 = sphi 0, %s201
    %s218 = sphi 0, %s202
  $region4: #{base_stem_forward.1} parent=0 // loop_header_branch
    %15 = sbr.rel (%p13) target = $region8
  $region5: #{base_stem_forward.1} parent=0 // loop_body
    %s17 = ssub.s32 %s12, 1
    %s18 = ssub.s32 %s12, 2
    %s25 = sadd.s32 1, %s20
    %p26 = scmp.ge.s32.totalorder %s25, 2
    %s27 = scalar_select %p26, 0, %s25
    %s28 = sadd.s32 1, %s19
    %s29 = scalar_select %p26, %s28, %s19
    %p30 = scmp.ge.s32.totalorder %s29, 2
    %s31 = scalar_select %p30, 0, %s29
    %s32 = ssub.s32 %s19, %s31
    %s33 = ssub.s32 %s20, %s27
    %s34 = sor.u32 %s32, %s33
    %p35 = scmp.eq.s32.totalorder %s34, 0
    %s37 = sadd.s32 %s36, 1
    %s38 = scalar_select %p35, %s36, %s37
    %p41 = pneg %p35
    %p42 = scmp.eq.s32.totalorder %s12, 3
    %p43 = por %p41, %p42
    %p44 = scmp.ne.s32.totalorder %s36, %s39
    %p45 = scmp.eq.s32.totalorder %s12, 0
    %p46 = por %p44, %p45
    %p47 = scmp.ne.s32.totalorder %s36, %s39
    %p48 = scmp.eq.s32.totalorder %s17, 3
    %p49 = por %p47, %p48
    %p50 = scmp.ne.s32.totalorder %s39, %s40
    %p51 = scmp.eq.s32.totalorder %s17, 0
    %p52 = por %p50, %p51
    %p53 = scmp.ne.s32.totalorder %s39, %s40
    %p54 = scmp.eq.s32.totalorder %s18, 3
    %p55 = por %p53, %p54
    %p57 = scmp.ne.s32.totalorder %s40, %s56
    %p58 = scmp.eq.s32.totalorder %s18, 0
    %p59 = por %p57, %p58
    %s60 = sadd.s32 %s20, 1
    %s61 = smul.u32 %s60, 8
    %s62 = sadd.s32 %s27, 1
    %s63 = smul.u32 %s62, 8
    %s64 = ssub.s32 %s19, %s31
    %s65 = ssub.s32 %s61, %s63
    %s66 = sor.u32 %s64, %s65
    %p67 = scmp.eq.s32.totalorder %s66, 0
    %s69 = sadd.s32 %s68, 1
    %s70 = scalar_select %p67, %s68, %s69
    %p73 = pneg %p67
    %p74 = scmp.eq.s32.totalorder %s12, 3
    %p75 = por %p73, %p74
    %p76 = scmp.ne.s32.totalorder %s68, %s71
    %p77 = scmp.eq.s32.totalorder %s12, 0
    %p78 = por %p76, %p77
    %p79 = scmp.ne.s32.totalorder %s68, %s71
    %p80 = scmp.eq.s32.totalorder %s17, 3
    %p81 = por %p79, %p80
    %p82 = scmp.ne.s32.totalorder %s71, %s72
    %p83 = scmp.eq.s32.totalorder %s17, 0
    %p84 = por %p82, %p83
    %p85 = scmp.ne.s32.totalorder %s71, %s72
    %p86 = scmp.eq.s32.totalorder %s18, 3
    %p87 = por %p85, %p86
    %p89 = scmp.ne.s32.totalorder %s72, %s88
    %p90 = scmp.eq.s32.totalorder %s18, 0
    %p91 = por %p89, %p90
    %s92 = ssub.s32 %s19, %s31
    %s93 = ssub.s32 %s20, %s27
    %s94 = sor.u32 %s92, %s93
    %p95 = scmp.eq.s32.totalorder %s94, 0
    %s97 = sadd.s32 %s96, 1
    %s98 = scalar_select %p95, %s96, %s97
    %p101 = pneg %p95
    %p102 = scmp.eq.s32.totalorder %s12, 3
    %p103 = por %p101, %p102
    %p104 = scmp.ne.s32.totalorder %s96, %s99
    %p105 = scmp.eq.s32.totalorder %s12, 0
    %p106 = por %p104, %p105
    %p107 = scmp.ne.s32.totalorder %s96, %s99
    %p108 = scmp.eq.s32.totalorder %s17, 3
    %p109 = por %p107, %p108
    %p110 = scmp.ne.s32.totalorder %s99, %s100
    %p111 = scmp.eq.s32.totalorder %s17, 0
    %p112 = por %p110, %p111
    %p113 = scmp.ne.s32.totalorder %s99, %s100
    %p114 = scmp.eq.s32.totalorder %s18, 3
    %p115 = por %p113, %p114
    %p117 = scmp.ne.s32.totalorder %s100, %s116
    %p118 = scmp.eq.s32.totalorder %s18, 0
    %p119 = por %p117, %p118
    %s120 = sadd.s32 %s20, 1
    %s121 = smul.u32 %s120, 8
    %s122 = sadd.s32 %s27, 1
    %s123 = smul.u32 %s122, 8
    %s124 = ssub.s32 %s19, %s31
    %s125 = ssub.s32 %s121, %s123
    %s126 = sor.u32 %s124, %s125
    %p127 = scmp.eq.s32.totalorder %s126, 0
    %s129 = sadd.s32 %s128, 1
    %s130 = scalar_select %p127, %s128, %s129
    %p133 = pneg %p127
    %p134 = scmp.eq.s32.totalorder %s12, 3
    %p135 = por %p133, %p134
    %p136 = scmp.ne.s32.totalorder %s128, %s131
    %p137 = scmp.eq.s32.totalorder %s12, 0
    %p138 = por %p136, %p137
    %p139 = scmp.ne.s32.totalorder %s128, %s131
    %p140 = scmp.eq.s32.totalorder %s17, 3
    %p141 = por %p139, %p140
    %p142 = scmp.ne.s32.totalorder %s131, %s132
    %p143 = scmp.eq.s32.totalorder %s17, 0
    %p144 = por %p142, %p143
    %p145 = scmp.ne.s32.totalorder %s131, %s132
    %p146 = scmp.eq.s32.totalorder %s18, 3
    %p147 = por %p145, %p146
    %p149 = scmp.ne.s32.totalorder %s132, %s148
    %p150 = scmp.eq.s32.totalorder %s18, 0
    %p151 = por %p149, %p150
    %s153 = sadd.s32 %s152, 1
    %p156 = scmp.eq.s32.totalorder %s12, 3
    %p157 = scmp.ne.s32.totalorder %s152, %s154
    %p158 = scmp.eq.s32.totalorder %s12, 0
    %p159 = por %p157, %p158
    %p160 = scmp.ne.s32.totalorder %s152, %s154
    %p161 = scmp.eq.s32.totalorder %s17, 3
    %p162 = por %p160, %p161
    %p163 = scmp.ne.s32.totalorder %s154, %s155
    %p164 = scmp.eq.s32.totalorder %s17, 0
    %p165 = por %p163, %p164
    %p166 = scmp.ne.s32.totalorder %s154, %s155
    %p167 = scmp.eq.s32.totalorder %s18, 3
    %p168 = por %p166, %p167
    %p170 = scmp.ne.s32.totalorder %s155, %s169
    %p171 = scmp.eq.s32.totalorder %s18, 0
    %p172 = por %p170, %p171
    %s174 = sadd.s32 %s173, 1
    %p177 = scmp.eq.s32.totalorder %s12, 3
    %p178 = scmp.ne.s32.totalorder %s173, %s175
    %p179 = scmp.eq.s32.totalorder %s12, 0
    %p180 = por %p178, %p179
    %p181 = scmp.ne.s32.totalorder %s173, %s175
    %p182 = scmp.eq.s32.totalorder %s17, 3
    %p183 = por %p181, %p182
    %p184 = scmp.ne.s32.totalorder %s175, %s176
    %p185 = scmp.eq.s32.totalorder %s17, 0
    %p186 = por %p184, %p185
    %p187 = scmp.ne.s32.totalorder %s175, %s176
    %p188 = scmp.eq.s32.totalorder %s18, 3
    %p189 = por %p187, %p188
    %p191 = scmp.ne.s32.totalorder %s176, %s190
    %p192 = scmp.eq.s32.totalorder %s18, 0
    %p193 = por %p191, %p192
    %s194 = ssub.s32 %s19, %s31
    %s195 = ssub.s32 %s20, %s27
    %s196 = sor.u32 %s194, %s195
    %p197 = scmp.eq.s32.totalorder %s196, 0
    %s199 = sadd.s32 %s198, 1
    %s200 = scalar_select %p197, %s198, %s199
    %p203 = pneg %p197
    %p204 = scmp.eq.s32.totalorder %s12, 3
    %p205 = por %p203, %p204
    %p206 = scmp.ne.s32.totalorder %s198, %s201
    %p207 = scmp.eq.s32.totalorder %s12, 0
    %p208 = por %p206, %p207
    %p209 = scmp.ne.s32.totalorder %s198, %s201
    %p210 = scmp.eq.s32.totalorder %s17, 3
    %p211 = por %p209, %p210
    %p212 = scmp.ne.s32.totalorder %s201, %s202
    %p213 = scmp.eq.s32.totalorder %s17, 0
    %p214 = por %p212, %p213
    %p215 = scmp.ne.s32.totalorder %s201, %s202
    %p216 = scmp.eq.s32.totalorder %s18, 3
    %p217 = por %p215, %p216
    %p219 = scmp.ne.s32.totalorder %s202, %s218
    %p220 = scmp.eq.s32.totalorder %s18, 0
    %p221 = por %p219, %p220
    %p222 = scmp.le.s32.totalorder 1, %s12
    %p223 = scmp.lt.s32.totalorder %s12, 5
    %p224 = pnand %p222, %p223
    %p225 = pneg %p224
    // Predicated region
    $region9: #{base_stem_forward.1} parent=5 // pred_check
      _
    $region10: #{base_stem_forward.1} parent=5 // pred_check_branch
      %227 = sbr.rel (%p224) target = $region12
    $region11: #{base_stem_forward.1} parent=5 // pred_region
      %s228 = ssub.s32 %s12, 1
      // Predicated region
      $region13: #{base_stem_forward.1} parent=11 // pred_check
        %p229 = pneg %p165
      $region14: #{base_stem_forward.1} parent=11 // pred_check_branch
        %231 = sbr.rel (%p229) target = $region16
      $region15: #{base_stem_forward.1} parent=11 // pred_region
        _
      $region16: #{base_stem_forward.1} parent=11 // pred_fallthru
        _
      // Predicated region
      $region17: #{base_stem_forward.1} parent=11 // pred_check
        %p232 = pneg %p186
      $region18: #{base_stem_forward.1} parent=11 // pred_check_branch
        %234 = sbr.rel (%p232) target = $region20
      $region19: #{base_stem_forward.1} parent=11 // pred_region
        _
      $region20: #{base_stem_forward.1} parent=11 // pred_fallthru
        _
    $region12: #{base_stem_forward.1} parent=5 // pred_fallthru
      _
    %p235 = scmp.lt.s32.totalorder %s12, 4
    // Predicated region
    $region21: #{base_stem_forward.1} parent=5 // pred_check
      %p236 = pneg %p235
    $region22: #{base_stem_forward.1} parent=5 // pred_check_branch
      %238 = sbr.rel (%p236) target = $region24
    $region23: #{base_stem_forward.1} parent=5 // pred_region
      // Predicated region
      $region25: #{base_stem_forward.1} parent=23 // pred_check
        %p239 = pneg %p46
      $region26: #{base_stem_forward.1} parent=23 // pred_check_branch
        %241 = sbr.rel (%p239) target = $region28
      $region27: #{base_stem_forward.1} parent=23 // pred_region
        %s242 = smul.u32 32, %s20
        %s243 = ssub.s32 68, %s242
        %p244 = scmp.lt.s32.totalorder %s243, 32
        %s245 = scalar_select %p244, %s243, 32
        %s246 = smul.u32 4, %s245
        %s247 = smul.u32 %s246, 2
        %p248 = scmp.lt.s32.totalorder %s19, 1
        %s249 = scalar_select %p248, %s19, 1
        %p250 = scmp.lt.s32.totalorder %s242, 67
        %s251 = scalar_select %p250, %s242, 67
        %s252 = smul.addr %s251, 2
        %s253 = smul.addr %s249, 136
        %s254 = sadd.s32 %s252, %s253
        %s255 = smul.addr %s254, 4
        %s256 = scalar_lea.vmem %s0, %s255
        %s257 = smul.u32 32, %s20
        %s258 = ssub.s32 68, %s257
        %p259 = scmp.lt.s32.totalorder %s258, 32
        %s260 = scalar_select %p259, %s258, 32
        %s261 = smul.u32 4, %s260
        %s262 = smul.u32 %s261, 2
      $region28: #{base_stem_forward.1} parent=23 // pred_fallthru
        _
      // Predicated region
      $region29: #{base_stem_forward.1} parent=23 // pred_check
        %p263 = pneg %p78
      $region30: #{base_stem_forward.1} parent=23 // pred_check_branch
        %265 = sbr.rel (%p263) target = $region32
      $region31: #{base_stem_forward.1} parent=23 // pred_region
        %s266 = sadd.s32 %s20, 1
        %s267 = smul.u32 %s266, 8
        %s268 = smul.u32 4, %s267
        %p269 = scmp.lt.s32.totalorder %s19, 1
        %s270 = scalar_select %p269, %s19, 1
        %p271 = scmp.lt.s32.totalorder %s268, 67
        %s272 = scalar_select %p271, %s268, 67
        %s273 = smul.addr %s272, 2
        %s274 = smul.addr %s270, 136
        %s275 = sadd.s32 %s273, %s274
        %s276 = smul.addr %s275, 4
        %s277 = scalar_lea.vmem %s1, %s276
        %s278 = sadd.s32 %s20, 1
        %s279 = smul.u32 %s278, 8
        %s280 = smul.u32 4, %s279
      $region32: #{base_stem_forward.1} parent=23 // pred_fallthru
        _
      // Predicated region
      $region33: #{base_stem_forward.1} parent=23 // pred_check
        %p281 = pneg %p106
      $region34: #{base_stem_forward.1} parent=23 // pred_check_branch
        %283 = sbr.rel (%p281) target = $region36
      $region35: #{base_stem_forward.1} parent=23 // pred_region
        %s284 = smul.u32 32, %s20
        %s285 = ssub.s32 68, %s284
        %p286 = scmp.lt.s32.totalorder %s285, 32
        %s287 = scalar_select %p286, %s285, 32
        %s288 = smul.u32 4, %s287
        %s289 = smul.u32 %s288, 3
        %p290 = scmp.lt.s32.totalorder %s19, 1
        %s291 = scalar_select %p290, %s19, 1
        %p292 = scmp.lt.s32.totalorder %s284, 67
        %s293 = scalar_select %p292, %s284, 67
        %s294 = smul.addr %s293, 3
        %s295 = smul.addr %s291, 204
        %s296 = sadd.s32 %s294, %s295
        %s297 = smul.addr %s296, 4
        %s298 = scalar_lea.vmem %s2, %s297
        %s299 = smul.u32 32, %s20
        %s300 = ssub.s32 68, %s299
        %p301 = scmp.lt.s32.totalorder %s300, 32
        %s302 = scalar_select %p301, %s300, 32
        %s303 = smul.u32 4, %s302
        %s304 = smul.u32 %s303, 3
      $region36: #{base_stem_forward.1} parent=23 // pred_fallthru
        _
      // Predicated region
      $region37: #{base_stem_forward.1} parent=23 // pred_check
        %p305 = pneg %p138
      $region38: #{base_stem_forward.1} parent=23 // pred_check_branch
        %307 = sbr.rel (%p305) target = $region40
      $region39: #{base_stem_forward.1} parent=23 // pred_region
        %s308 = sadd.s32 %s20, 1
        %s309 = smul.u32 %s308, 8
        %s310 = smul.u32 4, %s309
        %p311 = scmp.lt.s32.totalorder %s19, 1
        %s312 = scalar_select %p311, %s19, 1
        %p313 = scmp.lt.s32.totalorder %s310, 67
        %s314 = scalar_select %p313, %s310, 67
        %s315 = smul.addr %s314, 3
        %s316 = smul.addr %s312, 204
        %s317 = sadd.s32 %s315, %s316
        %s318 = smul.addr %s317, 4
        %s319 = scalar_lea.vmem %s3, %s318
        %s320 = sadd.s32 %s20, 1
        %s321 = smul.u32 %s320, 8
        %s322 = smul.u32 4, %s321
      $region40: #{base_stem_forward.1} parent=23 // pred_fallthru
        _
    $region24: #{base_stem_forward.1} parent=5 // pred_fallthru
      _
    %p323 = scmp.le.s32.totalorder 1, %s12
    %p324 = scmp.lt.s32.totalorder %s12, 5
    %p325 = pnand %p323, %p324
    %p326 = pneg %p325
    // Predicated region
    $region41: #{base_stem_forward.1} parent=5 // pred_check
      _
    $region42: #{base_stem_forward.1} parent=5 // pred_check_branch
      %328 = sbr.rel (%p325) target = $region44
    $region43: #{base_stem_forward.1} parent=5 // pred_region
      %s329 = ssub.s32 %s12, 1
      %s330 = smul.u32 32, %s22
      %s331 = ssub.s32 68, %s330
      %p332 = scmp.lt.s32.totalorder %s331, 32
      %s333 = scalar_select %p332, %s331, 32
      %s334 = smul.u32 4, %s333
      %s335 = smul.u32 %s334, 2
      %p336 = scmp.lt.s32.totalorder %s21, 1
      %s337 = scalar_select %p336, %s21, 1
      %p338 = scmp.lt.s32.totalorder %s330, 67
      %s339 = scalar_select %p338, %s330, 67
      %s340 = smul.addr %s339, 2
      %s341 = smul.addr %s337, 136
      %s342 = sadd.s32 %s340, %s341
      %s343 = smul.addr %s342, 4
      %s344 = scalar_lea.vmem %s0, %s343
      %p345 = pneg %p52
      %p346 = pneg %p49
      %s347 = sadd.s32 %s22, 1
      %s348 = smul.u32 %s347, 8
      %s349 = smul.u32 4, %s348
      %p350 = scmp.lt.s32.totalorder %s21, 1
      %s351 = scalar_select %p350, %s21, 1
      %p352 = scmp.lt.s32.totalorder %s349, 67
      %s353 = scalar_select %p352, %s349, 67
      %s354 = smul.addr %s353, 2
      %s355 = smul.addr %s351, 136
      %s356 = sadd.s32 %s354, %s355
      %s357 = smul.addr %s356, 4
      %s358 = scalar_lea.vmem %s1, %s357
      %p359 = pneg %p84
      %p360 = pneg %p81
      %s361 = smul.u32 32, %s22
      %s362 = ssub.s32 68, %s361
      %p363 = scmp.lt.s32.totalorder %s362, 32
      %s364 = scalar_select %p363, %s362, 32
      %s365 = smul.u32 4, %s364
      %s366 = smul.u32 %s365, 3
      %p367 = scmp.lt.s32.totalorder %s21, 1
      %s368 = scalar_select %p367, %s21, 1
      %p369 = scmp.lt.s32.totalorder %s361, 67
      %s370 = scalar_select %p369, %s361, 67
      %s371 = smul.addr %s370, 3
      %s372 = smul.addr %s368, 204
      %s373 = sadd.s32 %s371, %s372
      %s374 = smul.addr %s373, 4
      %s375 = scalar_lea.vmem %s2, %s374
      %p376 = pneg %p112
      %p377 = pneg %p109
      %s378 = sadd.s32 %s22, 1
      %s379 = smul.u32 %s378, 8
      %s380 = smul.u32 4, %s379
      %p381 = scmp.lt.s32.totalorder %s21, 1
      %s382 = scalar_select %p381, %s21, 1
      %p383 = scmp.lt.s32.totalorder %s380, 67
      %s384 = scalar_select %p383, %s380, 67
      %s385 = smul.addr %s384, 3
      %s386 = smul.addr %s382, 204
      %s387 = sadd.s32 %s385, %s386
      %s388 = smul.addr %s387, 4
      %s389 = scalar_lea.vmem %s3, %s388
      %p390 = pneg %p144
      %p391 = pneg %p141
      %p392 = pneg %p165
      %p393 = pneg %p162
      %p394 = pneg %p186
      %p395 = pneg %p183
      %p396 = pneg %p214
      %p397 = pneg %p211
      %s398 = smul.u32 16, %s22
      %p399 = scmp.lt.s32.totalorder %s21, 1
      %s400 = scalar_select %p399, %s21, 1
      %p401 = scmp.lt.s32.totalorder %s398, 31
      %s402 = scalar_select %p401, %s398, 31
      %s403 = smul.addr %s402, 2
      %s404 = smul.addr %s400, 64
      %s405 = sadd.s32 %s403, %s404
      %s406 = smul.addr %s405, 8
      %s407 = scalar_lea.vmem %s6, %s406
      %s408 = smul.u32 32, %s22
      %s409 = ssub.s32 68, %s408
      %p410 = scmp.lt.s32.totalorder %s409, 32
      %s411 = scalar_select %p410, %s409, 32
      %s412 = smul.u32 4, %s411
      %s413 = smul.u32 %s412, 2
      %p414 = scmp.lt.s32.totalorder %s21, 1
      %s415 = scalar_select %p414, %s21, 1
      %p416 = scmp.lt.s32.totalorder %s408, 67
      %s417 = scalar_select %p416, %s408, 67
      %s418 = smul.addr %s417, 2
      %s419 = smul.addr %s415, 136
      %s420 = sadd.s32 %s418, %s419
      %s421 = smul.addr %s420, 4
      %s422 = scalar_lea.vmem %s0, %s421
      %s423 = smul.u32 32, %s22
      %s424 = ssub.s32 68, %s423
      %p425 = scmp.lt.s32.totalorder %s424, 32
      %s426 = scalar_select %p425, %s424, 32
      %s427 = smul.u32 4, %s426
      %s428 = smul.u32 %s427, 2
      %s429 = sadd.s32 %s22, 1
      %s430 = smul.u32 %s429, 8
      %s431 = smul.u32 4, %s430
      %p432 = scmp.lt.s32.totalorder %s21, 1
      %s433 = scalar_select %p432, %s21, 1
      %p434 = scmp.lt.s32.totalorder %s431, 67
      %s435 = scalar_select %p434, %s431, 67
      %s436 = smul.addr %s435, 2
      %s437 = smul.addr %s433, 136
      %s438 = sadd.s32 %s436, %s437
      %s439 = smul.addr %s438, 4
      %s440 = scalar_lea.vmem %s1, %s439
      %s441 = sadd.s32 %s22, 1
      %s442 = smul.u32 %s441, 8
      %s443 = smul.u32 4, %s442
      %s444 = smul.u32 32, %s22
      %s445 = ssub.s32 68, %s444
      %p446 = scmp.lt.s32.totalorder %s445, 32
      %s447 = scalar_select %p446, %s445, 32
      %s448 = smul.u32 4, %s447
      %s449 = smul.u32 %s448, 3
      %p450 = scmp.lt.s32.totalorder %s21, 1
      %s451 = scalar_select %p450, %s21, 1
      %p452 = scmp.lt.s32.totalorder %s444, 67
      %s453 = scalar_select %p452, %s444, 67
      %s454 = smul.addr %s453, 3
      %s455 = smul.addr %s451, 204
      %s456 = sadd.s32 %s454, %s455
      %s457 = smul.addr %s456, 4
      %s458 = scalar_lea.vmem %s2, %s457
      %s459 = smul.u32 32, %s22
      %s460 = ssub.s32 68, %s459
      %p461 = scmp.lt.s32.totalorder %s460, 32
      %s462 = scalar_select %p461, %s460, 32
      %s463 = smul.u32 4, %s462
      %s464 = smul.u32 %s463, 3
      %s465 = sadd.s32 %s22, 1
      %s466 = smul.u32 %s465, 8
      %s467 = smul.u32 4, %s466
      %p468 = scmp.lt.s32.totalorder %s21, 1
      %s469 = scalar_select %p468, %s21, 1
      %p470 = scmp.lt.s32.totalorder %s467, 67
      %s471 = scalar_select %p470, %s467, 67
      %s472 = smul.addr %s471, 3
      %s473 = smul.addr %s469, 204
      %s474 = sadd.s32 %s472, %s473
      %s475 = smul.addr %s474, 4
      %s476 = scalar_lea.vmem %s3, %s475
      %s477 = sadd.s32 %s22, 1
      %s478 = smul.u32 %s477, 8
      %s479 = smul.u32 4, %s478
      %s480 = smul.u32 16, %s22
      %p481 = scmp.lt.s32.totalorder %s21, 1
      %s482 = scalar_select %p481, %s21, 1
      %p483 = scmp.lt.s32.totalorder %s480, 31
      %s484 = scalar_select %p483, %s480, 31
      %s485 = smul.addr %s484, 2
      %s486 = smul.addr %s482, 64
      %s487 = sadd.s32 %s485, %s486
      %s488 = smul.addr %s487, 8
      %s489 = scalar_lea.vmem %s6, %s488
      %s490 = smul.u32 16, %s22
      %v492 = vld [vmem:[%s4] sm:$0xff]
      %v493 = vld [vmem:[%s4 + $0x8] sm:$0xff]
      %v494 = vld [vmem:[%s4 + $0x10] sm:$0xff]
      %v495 = vld [vmem:[%s4 + $0x18] sm:$0xff]
      %v496 = vld [vmem:[%s4 + $0x20] sm:$0xff]
      %v497 = vld [vmem:[%s4 + $0x28] sm:$0xff]
      %v498 = vld [vmem:[%s5] sm:$0x1]
      %v499 = vld [vmem:[%s422] sm:$0xf]
      %v500 = vld [vmem:[%s422 + $0x4] sm:$0xf]
      %v501 = vld [vmem:[%s422 + $0x8] sm:$0xf]
      %v502 = vld [vmem:[%s422 + $0xc] sm:$0xf]
      %v503 = vld [vmem:[%s422 + $0x10] sm:$0xf]
      %v504 = vld [vmem:[%s422 + $0x14] sm:$0xf]
      %v505 = vld [vmem:[%s422 + $0x18] sm:$0xf]
      %v506 = vld [vmem:[%s422 + $0x1c] sm:$0xf]
      %v507 = vld [vmem:[%s422 + $0x20] sm:$0xf]
      %v508 = vld [vmem:[%s422 + $0x24] sm:$0xf]
      %v509 = vld [vmem:[%s422 + $0x28] sm:$0xf]
      %v510 = vld [vmem:[%s422 + $0x2c] sm:$0xf]
      %v511 = vld [vmem:[%s422 + $0x30] sm:$0xf]
      %v512 = vld [vmem:[%s422 + $0x34] sm:$0xf]
      %v513 = vld [vmem:[%s422 + $0x38] sm:$0xf]
      %v514 = vld [vmem:[%s422 + $0x3c] sm:$0xf]
      %v515 = vld [vmem:[%s422 + $0x40] sm:$0xf]
      %v516 = vld [vmem:[%s422 + $0x44] sm:$0xf]
      %v517 = vld [vmem:[%s422 + $0x48] sm:$0xf]
      %v518 = vld [vmem:[%s422 + $0x4c] sm:$0xf]
      %v519 = vld [vmem:[%s422 + $0x50] sm:$0xf]
      %v520 = vld [vmem:[%s422 + $0x54] sm:$0xf]
      %v521 = vld [vmem:[%s422 + $0x58] sm:$0xf]
      %v522 = vld [vmem:[%s422 + $0x5c] sm:$0xf]
      %v523 = vld [vmem:[%s422 + $0x60] sm:$0xf]
      %v524 = vld [vmem:[%s422 + $0x64] sm:$0xf]
      %v525 = vld [vmem:[%s422 + $0x68] sm:$0xf]
      %v526 = vld [vmem:[%s422 + $0x6c] sm:$0xf]
      %v527 = vld [vmem:[%s422 + $0x70] sm:$0xf]
      %v528 = vld [vmem:[%s422 + $0x74] sm:$0xf]
      %v529 = vld [vmem:[%s422 + $0x78] sm:$0xf]
      %v530 = vld [vmem:[%s422 + $0x7c] sm:$0xf]
      %v531 = vld [vmem:[%s422 + $0x80] sm:$0xf]
      %v532 = vld [vmem:[%s422 + $0x84] sm:$0xf]
      %v533 = vld [vmem:[%s422 + $0x88] sm:$0xf]
      %v534 = vld [vmem:[%s422 + $0x8c] sm:$0xf]
      %v535 = vld [vmem:[%s422 + $0x90] sm:$0xf]
      %v536 = vld [vmem:[%s422 + $0x94] sm:$0xf]
      %v537 = vld [vmem:[%s422 + $0x98] sm:$0xf]
      %v538 = vld [vmem:[%s422 + $0x9c] sm:$0xf]
      %v539 = vld [vmem:[%s458] sm:$0xf]
      %v540 = vld [vmem:[%s458 + $0x4] sm:$0xf]
      %v541 = vld [vmem:[%s458 + $0x8] sm:$0xf]
      %v542 = vld [vmem:[%s458 + $0xc] sm:$0xf]
      %v543 = vld [vmem:[%s458 + $0x10] sm:$0xf]
      %v544 = vld [vmem:[%s458 + $0x14] sm:$0xf]
      %v545 = vld [vmem:[%s458 + $0x18] sm:$0xf]
      %v546 = vld [vmem:[%s458 + $0x1c] sm:$0xf]
      %v547 = vld [vmem:[%s458 + $0x20] sm:$0xf]
      %v548 = vld [vmem:[%s458 + $0x24] sm:$0xf]
      %v549 = vld [vmem:[%s458 + $0x28] sm:$0xf]
      %v550 = vld [vmem:[%s458 + $0x2c] sm:$0xf]
      %v551 = vld [vmem:[%s458 + $0x30] sm:$0xf]
      %v552 = vld [vmem:[%s458 + $0x34] sm:$0xf]
      %v553 = vld [vmem:[%s458 + $0x38] sm:$0xf]
      %v554 = vld [vmem:[%s458 + $0x3c] sm:$0xf]
      %v555 = vld [vmem:[%s458 + $0x40] sm:$0xf]
      %v556 = vld [vmem:[%s458 + $0x44] sm:$0xf]
      %v557 = vld [vmem:[%s458 + $0x48] sm:$0xf]
      %v558 = vld [vmem:[%s458 + $0x4c] sm:$0xf]
      %v559 = vld [vmem:[%s458 + $0x50] sm:$0xf]
      %v560 = vld [vmem:[%s458 + $0x54] sm:$0xf]
      %v561 = vld [vmem:[%s458 + $0x58] sm:$0xf]
      %v562 = vld [vmem:[%s458 + $0x5c] sm:$0xf]
      %v563 = vld [vmem:[%s458 + $0x60] sm:$0xf]
      %v564 = vld [vmem:[%s458 + $0x64] sm:$0xf]
      %v565 = vld [vmem:[%s458 + $0x68] sm:$0xf]
      %v566 = vld [vmem:[%s458 + $0x6c] sm:$0xf]
      %v567 = vld [vmem:[%s458 + $0x70] sm:$0xf]
      %v568 = vld [vmem:[%s458 + $0x74] sm:$0xf]
      %v569 = vld [vmem:[%s458 + $0x78] sm:$0xf]
      %v570 = vld [vmem:[%s458 + $0x7c] sm:$0xf]
      %v571 = vld [vmem:[%s458 + $0x80] sm:$0xf]
      %v572 = vld [vmem:[%s458 + $0x84] sm:$0xf]
      %v573 = vld [vmem:[%s458 + $0x88] sm:$0xf]
      %v574 = vld [vmem:[%s458 + $0x8c] sm:$0xf]
      %v575 = vld [vmem:[%s458 + $0x90] sm:$0xf]
      %v576 = vld [vmem:[%s458 + $0x94] sm:$0xf]
      %v577 = vld [vmem:[%s458 + $0x98] sm:$0xf]
      %v578 = vld [vmem:[%s458 + $0x9c] sm:$0xf]
      %v579 = vld [vmem:[%s458 + $0xa0] sm:$0xf]
      %v580 = vld [vmem:[%s458 + $0xa4] sm:$0xf]
      %v581 = vld [vmem:[%s458 + $0xa8] sm:$0xf]
      %v582 = vld [vmem:[%s458 + $0xac] sm:$0xf]
      %v583 = vld [vmem:[%s458 + $0xb0] sm:$0xf]
      %v584 = vld [vmem:[%s458 + $0xb4] sm:$0xf]
      %v585 = vld [vmem:[%s458 + $0xb8] sm:$0xf]
      %v586 = vld [vmem:[%s458 + $0xbc] sm:$0xf]
      %v587 = vld [vmem:[%s458 + $0xc0] sm:$0xf]
      %v588 = vld [vmem:[%s458 + $0xc4] sm:$0xf]
      %v589 = vld [vmem:[%s458 + $0xc8] sm:$0xf]
      %v590 = vld [vmem:[%s458 + $0xcc] sm:$0xf]
      %v591 = vld [vmem:[%s458 + $0xd0] sm:$0xf]
      %v592 = vld [vmem:[%s458 + $0xd4] sm:$0xf]
      %v593 = vld [vmem:[%s458 + $0xd8] sm:$0xf]
      %v594 = vld [vmem:[%s458 + $0xdc] sm:$0xf]
      %v595 = vld [vmem:[%s458 + $0xe0] sm:$0xf]
      %v596 = vld [vmem:[%s458 + $0xe4] sm:$0xf]
      %v597 = vld [vmem:[%s458 + $0xe8] sm:$0xf]
      %v598 = vld [vmem:[%s458 + $0xec] sm:$0xf]
      %v639 = vunpack.c.l.b16 %v499
      %v640 = vunpack.c.l.b16 %v500
      %v641 = vunpack.c.l.b16 %v501
      %v642 = vunpack.c.l.b16 %v502
      %v643 = vunpack.c.l.b16 %v503
      %v644 = vunpack.c.l.b16 %v504
      %v645 = vunpack.c.l.b16 %v505
      %v646 = vunpack.c.l.b16 %v506
      %v647 = vunpack.c.l.b16 %v507
      %v648 = vunpack.c.l.b16 %v508
      %v649 = vunpack.c.l.b16 %v509
      %v650 = vunpack.c.l.b16 %v510
      %v651 = vunpack.c.l.b16 %v511
      %v652 = vunpack.c.l.b16 %v512
      %v653 = vunpack.c.l.b16 %v513
      %v654 = vunpack.c.l.b16 %v514
      %v655 = vunpack.c.l.b16 %v515
      %v656 = vunpack.c.l.b16 %v516
      %v657 = vunpack.c.l.b16 %v517
      %v658 = vunpack.c.l.b16 %v518
      %v659 = vunpack.c.l.b16 %v519
      %v660 = vunpack.c.l.b16 %v520
      %v661 = vunpack.c.l.b16 %v521
      %v662 = vunpack.c.l.b16 %v522
      %v663 = vunpack.c.l.b16 %v523
      %v664 = vunpack.c.l.b16 %v524
      %v665 = vunpack.c.l.b16 %v525
      %v666 = vunpack.c.l.b16 %v526
      %v667 = vunpack.c.l.b16 %v527
      %v668 = vunpack.c.l.b16 %v528
      %v669 = vunpack.c.l.b16 %v529
      %v670 = vunpack.c.l.b16 %v530
      %v671 = vunpack.c.l.b16 %v531
      %v672 = vunpack.c.l.b16 %v532
      %v673 = vunpack.c.l.b16 %v533
      %v674 = vunpack.c.l.b16 %v534
      %v675 = vunpack.c.l.b16 %v535
      %v676 = vunpack.c.l.b16 %v536
      %v677 = vunpack.c.l.b16 %v537
      %v678 = vunpack.c.l.b16 %v538
      %v679 = vpack.c.b16 %v640, %v639
      %v680 = vpack.c.b16 %v642, %v641
      %v681 = vpack.c.b16 %v644, %v643
      %v682 = vpack.c.b16 %v646, %v645
      %v683 = vpack.c.b16 %v648, %v647
      %v684 = vpack.c.b16 %v650, %v649
      %v685 = vpack.c.b16 %v652, %v651
      %v686 = vpack.c.b16 %v654, %v653
      %v687 = vpack.c.b16 %v656, %v655
      %v688 = vpack.c.b16 %v658, %v657
      %v689 = vpack.c.b16 %v660, %v659
      %v690 = vpack.c.b16 %v662, %v661
      %v691 = vpack.c.b16 %v664, %v663
      %v692 = vpack.c.b16 %v666, %v665
      %v693 = vpack.c.b16 %v668, %v667
      %v694 = vpack.c.b16 %v670, %v669
      %v695 = vpack.c.b16 %v672, %v671
      %v696 = vpack.c.b16 %v674, %v673
      %v697 = vpack.c.b16 %v676, %v675
      %v698 = vpack.c.b16 %v678, %v677
      %v705 = vunpack.c.l.b16 %v492
      %v706 = vunpack.c.h.b16 %v492
      %v707 = vunpack.c.l.b16 %v493
      %v708 = vunpack.c.h.b16 %v493
      %v709 = vunpack.c.l.b16 %v494
      %v710 = vunpack.c.h.b16 %v494
      %v711 = vunpack.c.l.b16 %v495
      %v712 = vunpack.c.h.b16 %v495
      %v713 = vunpack.c.l.b16 %v496
      %v714 = vunpack.c.h.b16 %v496
      %v715 = vunpack.c.l.b16 %v497
      %v716 = vunpack.c.h.b16 %v497
      %v717 = vpack.c.b16 %v707, %v705
      %v718 = vpack.c.b16 %v708, %v706
      %v719 = vpack.c.b16 %v711, %v709
      %v720 = vpack.c.b16 %v712, %v710
      %v721 = vpack.c.b16 %v715, %v713
      %v722 = vpack.c.b16 %v716, %v714
      %vm729 = vcmask 392192
      %v731 = vsel %vm729, %v679, 0
      %v734 = vsel %vm729, %v680, 0
      %v737 = vsel %vm729, %v681, 0
      %v740 = vsel %vm729, %v682, 0
      %v743 = vsel %vm729, %v683, 0
      %v746 = vsel %vm729, %v684, 0
      %v749 = vsel %vm729, %v685, 0
      %v752 = vsel %vm729, %v686, 0
      %v755 = vsel %vm729, %v687, 0
      %v758 = vsel %vm729, %v688, 0
      %v761 = vsel %vm729, %v689, 0
      %v764 = vsel %vm729, %v690, 0
      %v767 = vsel %vm729, %v691, 0
      %v770 = vsel %vm729, %v692, 0
      %v773 = vsel %vm729, %v693, 0
      %v776 = vsel %vm729, %v694, 0
      %v779 = vsel %vm729, %v695, 0
      %v782 = vsel %vm729, %v696, 0
      %v785 = vsel %vm729, %v697, 0
      %v788 = vsel %vm729, %v698, 0
      %790 = vmatpush.bf16.msra.mxu0 0
      %791 = vmatpush.bf16.msra.mxu0 0
      %792 = vmatpush.bf16.msra.mxu0 0
      %793 = vmatpush.bf16.msra.mxu0 0
      %794 = vmatpush.bf16.msra.mxu0 0
      %795 = vmatpush.bf16.msra.mxu0 %v721
      %796 = vmatpush.bf16.msra.mxu0 %v719
      %797 = vmatpush.bf16.msra.mxu0 %v717
      %798 = vmatmul.bf16.gmra.mxu0 %v731
      %v799 = vpop.f32.mrf.mxu0
      %v800 = vadd.f32 0.0, %v799
      %v801 = vpop.f32.mrf.mxu0
      %v802 = vadd.f32 0.0, %v801
      %803 = vmatmul.bf16.gmra.mxu0 %v734
      %v804 = vpop.f32.mrf.mxu0
      %v805 = vadd.f32 0.0, %v804
      %v806 = vpop.f32.mrf.mxu0
      %v807 = vadd.f32 0.0, %v806
      %808 = vmatmul.bf16.gmra.mxu0 %v737
      %v809 = vpop.f32.mrf.mxu0
      %v810 = vadd.f32 0.0, %v809
      %v811 = vpop.f32.mrf.mxu0
      %v812 = vadd.f32 0.0, %v811
      %813 = vmatmul.bf16.gmra.mxu0 %v740
      %v814 = vpop.f32.mrf.mxu0
      %v815 = vadd.f32 0.0, %v814
      %v816 = vpop.f32.mrf.mxu0
      %v817 = vadd.f32 0.0, %v816
      %818 = vmatmul.bf16.gmra.mxu0 %v743
      %v819 = vpop.f32.mrf.mxu0
      %v820 = vadd.f32 0.0, %v819
      %v821 = vpop.f32.mrf.mxu0
      %v822 = vadd.f32 0.0, %v821
      %823 = vmatmul.bf16.gmra.mxu0 %v746
      %v824 = vpop.f32.mrf.mxu0
      %v825 = vadd.f32 0.0, %v824
      %v826 = vpop.f32.mrf.mxu0
      %v827 = vadd.f32 0.0, %v826
      %828 = vmatmul.bf16.gmra.mxu0 %v749
      %v829 = vpop.f32.mrf.mxu0
      %v830 = vadd.f32 0.0, %v829
      %v831 = vpop.f32.mrf.mxu0
      %v832 = vadd.f32 0.0, %v831
      %833 = vmatmul.bf16.gmra.mxu0 %v752
      %v834 = vpop.f32.mrf.mxu0
      %v835 = vadd.f32 0.0, %v834
      %v836 = vpop.f32.mrf.mxu0
      %v837 = vadd.f32 0.0, %v836
      %838 = vmatmul.bf16.gmra.mxu0 %v755
      %v839 = vpop.f32.mrf.mxu0
      %v840 = vadd.f32 0.0, %v839
      %v841 = vpop.f32.mrf.mxu0
      %v842 = vadd.f32 0.0, %v841
      %843 = vmatmul.bf16.gmra.mxu0 %v758
      %v844 = vpop.f32.mrf.mxu0
      %v845 = vadd.f32 0.0, %v844
      %v846 = vpop.f32.mrf.mxu0
      %v847 = vadd.f32 0.0, %v846
      %848 = vmatmul.bf16.gmra.mxu0 %v761
      %v849 = vpop.f32.mrf.mxu0
      %v850 = vadd.f32 0.0, %v849
      %v851 = vpop.f32.mrf.mxu0
      %v852 = vadd.f32 0.0, %v851
      %853 = vmatmul.bf16.gmra.mxu0 %v764
      %v854 = vpop.f32.mrf.mxu0
      %v855 = vadd.f32 0.0, %v854
      %v856 = vpop.f32.mrf.mxu0
      %v857 = vadd.f32 0.0, %v856
      %858 = vmatmul.bf16.gmra.mxu0 %v767
      %v859 = vpop.f32.mrf.mxu0
      %v860 = vadd.f32 0.0, %v859
      %v861 = vpop.f32.mrf.mxu0
      %v862 = vadd.f32 0.0, %v861
      %863 = vmatmul.bf16.gmra.mxu0 %v770
      %v864 = vpop.f32.mrf.mxu0
      %v865 = vadd.f32 0.0, %v864
      %v866 = vpop.f32.mrf.mxu0
      %v867 = vadd.f32 0.0, %v866
      %868 = vmatmul.bf16.gmra.mxu0 %v773
      %v869 = vpop.f32.mrf.mxu0
      %v870 = vadd.f32 0.0, %v869
      %v871 = vpop.f32.mrf.mxu0
      %v872 = vadd.f32 0.0, %v871
      %873 = vmatmul.bf16.gmra.mxu0 %v776
      %v874 = vpop.f32.mrf.mxu0
      %v875 = vadd.f32 0.0, %v874
      %v876 = vpop.f32.mrf.mxu0
      %v877 = vadd.f32 0.0, %v876
      %878 = vmatmul.bf16.gmra.mxu0 %v779
      %v879 = vpop.f32.mrf.mxu0
      %v880 = vadd.f32 0.0, %v879
      %v881 = vpop.f32.mrf.mxu0
      %v882 = vadd.f32 0.0, %v881
      %883 = vmatmul.bf16.gmra.mxu0 %v782
      %v884 = vpop.f32.mrf.mxu0
      %v885 = vadd.f32 0.0, %v884
      %v886 = vpop.f32.mrf.mxu0
      %v887 = vadd.f32 0.0, %v886
      %888 = vmatmul.bf16.gmra.mxu0 %v785
      %v889 = vpop.f32.mrf.mxu0
      %v890 = vpop.f32.mrf.mxu0
      %891 = vmatmul.bf16.gmra.mxu0 %v788
      %v892 = vpop.f32.mrf.mxu0
      %v893 = vpop.f32.mrf.mxu0
      %894 = vdwg.mxu0
      %895 = vmatpush.bf16.msra.mxu0 0
      %896 = vmatpush.bf16.msra.mxu0 0
      %897 = vmatpush.bf16.msra.mxu0 0
      %898 = vmatpush.bf16.msra.mxu0 0
      %899 = vmatpush.bf16.msra.mxu0 0
      %900 = vmatpush.bf16.msra.mxu0 %v722
      %901 = vmatpush.bf16.msra.mxu0 %v720
      %902 = vmatpush.bf16.msra.mxu0 %v718
      %903 = vmatmul.bf16.gmra.mxu0 %v731
      %v904 = vpop.f32.mrf.mxu0
      %v905 = vpop.f32.mrf.mxu0
      %906 = vmatmul.bf16.gmra.mxu0 %v734
      %v907 = vpop.f32.mrf.mxu0
      %v908 = vpop.f32.mrf.mxu0
      %909 = vmatmul.bf16.gmra.mxu0 %v737
      %v910 = vpop.f32.mrf.mxu0
      %v911 = vadd.f32 0.0, %v910
      %v912 = vpop.f32.mrf.mxu0
      %v913 = vadd.f32 0.0, %v912
      %914 = vmatmul.bf16.gmra.mxu0 %v740
      %v915 = vpop.f32.mrf.mxu0
      %v916 = vadd.f32 0.0, %v915
      %v917 = vpop.f32.mrf.mxu0
      %v918 = vadd.f32 0.0, %v917
      %919 = vmatmul.bf16.gmra.mxu0 %v743
      %v920 = vpop.f32.mrf.mxu0
      %v921 = vadd.f32 0.0, %v920
      %v922 = vpop.f32.mrf.mxu0
      %v923 = vadd.f32 0.0, %v922
      %924 = vmatmul.bf16.gmra.mxu0 %v746
      %v925 = vpop.f32.mrf.mxu0
      %v926 = vadd.f32 0.0, %v925
      %v927 = vpop.f32.mrf.mxu0
      %v928 = vadd.f32 0.0, %v927
      %929 = vmatmul.bf16.gmra.mxu0 %v749
      %v930 = vpop.f32.mrf.mxu0
      %v931 = vadd.f32 0.0, %v930
      %v932 = vpop.f32.mrf.mxu0
      %v933 = vadd.f32 0.0, %v932
      %934 = vmatmul.bf16.gmra.mxu0 %v752
      %v935 = vpop.f32.mrf.mxu0
      %v936 = vadd.f32 0.0, %v935
      %v937 = vpop.f32.mrf.mxu0
      %v938 = vadd.f32 0.0, %v937
      %939 = vmatmul.bf16.gmra.mxu0 %v755
      %v940 = vpop.f32.mrf.mxu0
      %v941 = vadd.f32 0.0, %v940
      %v942 = vpop.f32.mrf.mxu0
      %v943 = vadd.f32 0.0, %v942
      %944 = vmatmul.bf16.gmra.mxu0 %v758
      %v945 = vpop.f32.mrf.mxu0
      %v946 = vadd.f32 0.0, %v945
      %v947 = vpop.f32.mrf.mxu0
      %v948 = vadd.f32 0.0, %v947
      %949 = vmatmul.bf16.gmra.mxu0 %v761
      %v950 = vpop.f32.mrf.mxu0
      %v951 = vadd.f32 0.0, %v950
      %v952 = vpop.f32.mrf.mxu0
      %v953 = vadd.f32 0.0, %v952
      %954 = vmatmul.bf16.gmra.mxu0 %v764
      %v955 = vpop.f32.mrf.mxu0
      %v956 = vadd.f32 0.0, %v955
      %v957 = vpop.f32.mrf.mxu0
      %v958 = vadd.f32 0.0, %v957
      %959 = vmatmul.bf16.gmra.mxu0 %v767
      %v960 = vpop.f32.mrf.mxu0
      %v961 = vadd.f32 0.0, %v960
      %v962 = vpop.f32.mrf.mxu0
      %v963 = vadd.f32 0.0, %v962
      %964 = vmatmul.bf16.gmra.mxu0 %v770
      %v965 = vpop.f32.mrf.mxu0
      %v966 = vadd.f32 0.0, %v965
      %v967 = vpop.f32.mrf.mxu0
      %v968 = vadd.f32 0.0, %v967
      %969 = vmatmul.bf16.gmra.mxu0 %v773
      %v970 = vpop.f32.mrf.mxu0
      %v971 = vadd.f32 0.0, %v970
      %v972 = vpop.f32.mrf.mxu0
      %v973 = vadd.f32 0.0, %v972
      %974 = vmatmul.bf16.gmra.mxu0 %v776
      %v975 = vpop.f32.mrf.mxu0
      %v976 = vadd.f32 0.0, %v975
      %v977 = vpop.f32.mrf.mxu0
      %v978 = vadd.f32 0.0, %v977
      %979 = vmatmul.bf16.gmra.mxu0 %v779
      %v980 = vpop.f32.mrf.mxu0
      %v981 = vadd.f32 0.0, %v980
      %v982 = vpop.f32.mrf.mxu0
      %v983 = vadd.f32 0.0, %v982
      %984 = vmatmul.bf16.gmra.mxu0 %v782
      %v985 = vpop.f32.mrf.mxu0
      %v986 = vadd.f32 0.0, %v985
      %v987 = vpop.f32.mrf.mxu0
      %v988 = vadd.f32 0.0, %v987
      %989 = vmatmul.bf16.gmra.mxu0 %v785
      %v990 = vpop.f32.mrf.mxu0
      %v991 = vadd.f32 0.0, %v990
      %v992 = vpop.f32.mrf.mxu0
      %v993 = vadd.f32 0.0, %v992
      %994 = vmatmul.bf16.gmra.mxu0 %v788
      %v995 = vpop.f32.mrf.mxu0
      %v996 = vadd.f32 0.0, %v995
      %v997 = vpop.f32.mrf.mxu0
      %v998 = vadd.f32 0.0, %v997
      %999 = vdwg.mxu0
      %1034 = vrot.lane.b32.xlu0 %v805, 64
      %v1035 = vpop.permute.xlu0 %1034
      %1036 = vrot.lane.b32.xlu0 %v807, 64
      %v1037 = vpop.permute.xlu0 %1036
      %1038 = vrot.lane.b32.xlu0 %v810, 64
      %v1039 = vpop.permute.xlu0 %1038
      %1040 = vrot.lane.b32.xlu0 %v812, 64
      %v1041 = vpop.permute.xlu0 %1040
      %1042 = vrot.lane.b32.xlu0 %v815, 64
      %v1043 = vpop.permute.xlu0 %1042
      %1044 = vrot.lane.b32.xlu0 %v817, 64
      %v1045 = vpop.permute.xlu0 %1044
      %1046 = vrot.lane.b32.xlu0 %v820, 64
      %v1047 = vpop.permute.xlu0 %1046
      %1048 = vrot.lane.b32.xlu0 %v822, 64
      %v1049 = vpop.permute.xlu0 %1048
      %1050 = vrot.lane.b32.xlu0 %v825, 64
      %v1051 = vpop.permute.xlu0 %1050
      %1052 = vrot.lane.b32.xlu0 %v827, 64
      %v1053 = vpop.permute.xlu0 %1052
      %1054 = vrot.lane.b32.xlu0 %v830, 64
      %v1055 = vpop.permute.xlu0 %1054
      %1056 = vrot.lane.b32.xlu0 %v832, 64
      %v1057 = vpop.permute.xlu0 %1056
      %1058 = vrot.lane.b32.xlu0 %v835, 64
      %v1059 = vpop.permute.xlu0 %1058
      %1060 = vrot.lane.b32.xlu0 %v837, 64
      %v1061 = vpop.permute.xlu0 %1060
      %1062 = vrot.lane.b32.xlu0 %v840, 64
      %v1063 = vpop.permute.xlu0 %1062
      %1064 = vrot.lane.b32.xlu0 %v842, 64
      %v1065 = vpop.permute.xlu0 %1064
      %1066 = vrot.lane.b32.xlu0 %v845, 64
      %v1067 = vpop.permute.xlu0 %1066
      %1068 = vrot.lane.b32.xlu0 %v847, 64
      %v1069 = vpop.permute.xlu0 %1068
      %1070 = vrot.lane.b32.xlu0 %v850, 64
      %v1071 = vpop.permute.xlu0 %1070
      %1072 = vrot.lane.b32.xlu0 %v852, 64
      %v1073 = vpop.permute.xlu0 %1072
      %1074 = vrot.lane.b32.xlu0 %v855, 64
      %v1075 = vpop.permute.xlu0 %1074
      %1076 = vrot.lane.b32.xlu0 %v857, 64
      %v1077 = vpop.permute.xlu0 %1076
      %1078 = vrot.lane.b32.xlu0 %v860, 64
      %v1079 = vpop.permute.xlu0 %1078
      %1080 = vrot.lane.b32.xlu0 %v862, 64
      %v1081 = vpop.permute.xlu0 %1080
      %1082 = vrot.lane.b32.xlu0 %v865, 64
      %v1083 = vpop.permute.xlu0 %1082
      %1084 = vrot.lane.b32.xlu0 %v867, 64
      %v1085 = vpop.permute.xlu0 %1084
      %1086 = vrot.lane.b32.xlu0 %v870, 64
      %v1087 = vpop.permute.xlu0 %1086
      %1088 = vrot.lane.b32.xlu0 %v872, 64
      %v1089 = vpop.permute.xlu0 %1088
      %1090 = vrot.lane.b32.xlu0 %v875, 64
      %v1091 = vpop.permute.xlu0 %1090
      %1092 = vrot.lane.b32.xlu0 %v877, 64
      %v1093 = vpop.permute.xlu0 %1092
      %1094 = vrot.lane.b32.xlu0 %v880, 64
      %v1095 = vpop.permute.xlu0 %1094
      %1096 = vrot.lane.b32.xlu0 %v882, 64
      %v1097 = vpop.permute.xlu0 %1096
      %1098 = vrot.lane.b32.xlu0 %v885, 64
      %v1099 = vpop.permute.xlu0 %1098
      %1100 = vrot.lane.b32.xlu0 %v887, 64
      %v1101 = vpop.permute.xlu0 %1100
      %v1136 = vadd.f32 %v800, %v1035
      %v1137 = vadd.f32 %v802, %v1037
      %v1138 = vadd.f32 %v805, %v1039
      %v1139 = vadd.f32 %v807, %v1041
      %v1140 = vadd.f32 %v810, %v1043
      %v1141 = vadd.f32 %v812, %v1045
      %v1142 = vadd.f32 %v815, %v1047
      %v1143 = vadd.f32 %v817, %v1049
      %v1144 = vadd.f32 %v820, %v1051
      %v1145 = vadd.f32 %v822, %v1053
      %v1146 = vadd.f32 %v825, %v1055
      %v1147 = vadd.f32 %v827, %v1057
      %v1148 = vadd.f32 %v830, %v1059
      %v1149 = vadd.f32 %v832, %v1061
      %v1150 = vadd.f32 %v835, %v1063
      %v1151 = vadd.f32 %v837, %v1065
      %v1152 = vadd.f32 %v840, %v1067
      %v1153 = vadd.f32 %v842, %v1069
      %v1154 = vadd.f32 %v845, %v1071
      %v1155 = vadd.f32 %v847, %v1073
      %v1156 = vadd.f32 %v850, %v1075
      %v1157 = vadd.f32 %v852, %v1077
      %v1158 = vadd.f32 %v855, %v1079
      %v1159 = vadd.f32 %v857, %v1081
      %v1160 = vadd.f32 %v860, %v1083
      %v1161 = vadd.f32 %v862, %v1085
      %v1162 = vadd.f32 %v865, %v1087
      %v1163 = vadd.f32 %v867, %v1089
      %v1164 = vadd.f32 %v870, %v1091
      %v1165 = vadd.f32 %v872, %v1093
      %v1166 = vadd.f32 %v875, %v1095
      %v1167 = vadd.f32 %v877, %v1097
      %v1168 = vadd.f32 %v880, %v1099
      %v1169 = vadd.f32 %v882, %v1101
      %v1170 = vadd.f32 %v1136, %v911
      %v1171 = vadd.f32 %v1137, %v913
      %v1172 = vadd.f32 %v1138, %v916
      %v1173 = vadd.f32 %v1139, %v918
      %v1174 = vadd.f32 %v1140, %v921
      %v1175 = vadd.f32 %v1141, %v923
      %v1176 = vadd.f32 %v1142, %v926
      %v1177 = vadd.f32 %v1143, %v928
      %v1178 = vadd.f32 %v1144, %v931
      %v1179 = vadd.f32 %v1145, %v933
      %v1180 = vadd.f32 %v1146, %v936
      %v1181 = vadd.f32 %v1147, %v938
      %v1182 = vadd.f32 %v1148, %v941
      %v1183 = vadd.f32 %v1149, %v943
      %v1184 = vadd.f32 %v1150, %v946
      %v1185 = vadd.f32 %v1151, %v948
      %v1186 = vadd.f32 %v1152, %v951
      %v1187 = vadd.f32 %v1153, %v953
      %v1188 = vadd.f32 %v1154, %v956
      %v1189 = vadd.f32 %v1155, %v958
      %v1190 = vadd.f32 %v1156, %v961
      %v1191 = vadd.f32 %v1157, %v963
      %v1192 = vadd.f32 %v1158, %v966
      %v1193 = vadd.f32 %v1159, %v968
      %v1194 = vadd.f32 %v1160, %v971
      %v1195 = vadd.f32 %v1161, %v973
      %v1196 = vadd.f32 %v1162, %v976
      %v1197 = vadd.f32 %v1163, %v978
      %v1198 = vadd.f32 %v1164, %v981
      %v1199 = vadd.f32 %v1165, %v983
      %v1200 = vadd.f32 %v1166, %v986
      %v1201 = vadd.f32 %v1167, %v988
      %v1202 = vadd.f32 %v1168, %v991
      %v1203 = vadd.f32 %v1169, %v993
      %1238 = vrot.lane.b32.xlu0 %v916, 64
      %v1239 = vpop.permute.xlu0 %1238
      %1240 = vrot.lane.b32.xlu0 %v918, 64
      %v1241 = vpop.permute.xlu0 %1240
      %1242 = vrot.lane.b32.xlu0 %v921, 64
      %v1243 = vpop.permute.xlu0 %1242
      %1244 = vrot.lane.b32.xlu0 %v923, 64
      %v1245 = vpop.permute.xlu0 %1244
      %1246 = vrot.lane.b32.xlu0 %v926, 64
      %v1247 = vpop.permute.xlu0 %1246
      %1248 = vrot.lane.b32.xlu0 %v928, 64
      %v1249 = vpop.permute.xlu0 %1248
      %1250 = vrot.lane.b32.xlu0 %v931, 64
      %v1251 = vpop.permute.xlu0 %1250
      %1252 = vrot.lane.b32.xlu0 %v933, 64
      %v1253 = vpop.permute.xlu0 %1252
      %1254 = vrot.lane.b32.xlu0 %v936, 64
      %v1255 = vpop.permute.xlu0 %1254
      %1256 = vrot.lane.b32.xlu0 %v938, 64
      %v1257 = vpop.permute.xlu0 %1256
      %1258 = vrot.lane.b32.xlu0 %v941, 64
      %v1259 = vpop.permute.xlu0 %1258
      %1260 = vrot.lane.b32.xlu0 %v943, 64
      %v1261 = vpop.permute.xlu0 %1260
      %1262 = vrot.lane.b32.xlu0 %v946, 64
      %v1263 = vpop.permute.xlu0 %1262
      %1264 = vrot.lane.b32.xlu0 %v948, 64
      %v1265 = vpop.permute.xlu0 %1264
      %1266 = vrot.lane.b32.xlu0 %v951, 64
      %v1267 = vpop.permute.xlu0 %1266
      %1268 = vrot.lane.b32.xlu0 %v953, 64
      %v1269 = vpop.permute.xlu0 %1268
      %1270 = vrot.lane.b32.xlu0 %v956, 64
      %v1271 = vpop.permute.xlu0 %1270
      %1272 = vrot.lane.b32.xlu0 %v958, 64
      %v1273 = vpop.permute.xlu0 %1272
      %1274 = vrot.lane.b32.xlu0 %v961, 64
      %v1275 = vpop.permute.xlu0 %1274
      %1276 = vrot.lane.b32.xlu0 %v963, 64
      %v1277 = vpop.permute.xlu0 %1276
      %1278 = vrot.lane.b32.xlu0 %v966, 64
      %v1279 = vpop.permute.xlu0 %1278
      %1280 = vrot.lane.b32.xlu0 %v968, 64
      %v1281 = vpop.permute.xlu0 %1280
      %1282 = vrot.lane.b32.xlu0 %v971, 64
      %v1283 = vpop.permute.xlu0 %1282
      %1284 = vrot.lane.b32.xlu0 %v973, 64
      %v1285 = vpop.permute.xlu0 %1284
      %1286 = vrot.lane.b32.xlu0 %v976, 64
      %v1287 = vpop.permute.xlu0 %1286
      %1288 = vrot.lane.b32.xlu0 %v978, 64
      %v1289 = vpop.permute.xlu0 %1288
      %1290 = vrot.lane.b32.xlu0 %v981, 64
      %v1291 = vpop.permute.xlu0 %1290
      %1292 = vrot.lane.b32.xlu0 %v983, 64
      %v1293 = vpop.permute.xlu0 %1292
      %1294 = vrot.lane.b32.xlu0 %v986, 64
      %v1295 = vpop.permute.xlu0 %1294
      %1296 = vrot.lane.b32.xlu0 %v988, 64
      %v1297 = vpop.permute.xlu0 %1296
      %1298 = vrot.lane.b32.xlu0 %v991, 64
      %v1299 = vpop.permute.xlu0 %1298
      %1300 = vrot.lane.b32.xlu0 %v993, 64
      %v1301 = vpop.permute.xlu0 %1300
      %1302 = vrot.lane.b32.xlu0 %v996, 64
      %v1303 = vpop.permute.xlu0 %1302
      %1304 = vrot.lane.b32.xlu0 %v998, 64
      %v1305 = vpop.permute.xlu0 %1304
      %v1340 = vadd.f32 %v1170, %v1239
      %v1341 = vadd.f32 %v1171, %v1241
      %v1342 = vadd.f32 %v1172, %v1243
      %v1343 = vadd.f32 %v1173, %v1245
      %v1344 = vadd.f32 %v1174, %v1247
      %v1345 = vadd.f32 %v1175, %v1249
      %v1346 = vadd.f32 %v1176, %v1251
      %v1347 = vadd.f32 %v1177, %v1253
      %v1348 = vadd.f32 %v1178, %v1255
      %v1349 = vadd.f32 %v1179, %v1257
      %v1350 = vadd.f32 %v1180, %v1259
      %v1351 = vadd.f32 %v1181, %v1261
      %v1352 = vadd.f32 %v1182, %v1263
      %v1353 = vadd.f32 %v1183, %v1265
      %v1354 = vadd.f32 %v1184, %v1267
      %v1355 = vadd.f32 %v1185, %v1269
      %v1356 = vadd.f32 %v1186, %v1271
      %v1357 = vadd.f32 %v1187, %v1273
      %v1358 = vadd.f32 %v1188, %v1275
      %v1359 = vadd.f32 %v1189, %v1277
      %v1360 = vadd.f32 %v1190, %v1279
      %v1361 = vadd.f32 %v1191, %v1281
      %v1362 = vadd.f32 %v1192, %v1283
      %v1363 = vadd.f32 %v1193, %v1285
      %v1364 = vadd.f32 %v1194, %v1287
      %v1365 = vadd.f32 %v1195, %v1289
      %v1366 = vadd.f32 %v1196, %v1291
      %v1367 = vadd.f32 %v1197, %v1293
      %v1368 = vadd.f32 %v1198, %v1295
      %v1369 = vadd.f32 %v1199, %v1297
      %v1370 = vadd.f32 %v1200, %v1299
      %v1371 = vadd.f32 %v1201, %v1301
      %v1372 = vadd.f32 %v1202, %v1303
      %v1373 = vadd.f32 %v1203, %v1305
      %v1434 = vunpack.c.l.b16 %v539
      %v1435 = vunpack.c.l.b16 %v540
      %v1436 = vunpack.c.l.b16 %v541
      %v1437 = vunpack.c.l.b16 %v542
      %v1438 = vunpack.c.l.b16 %v543
      %v1439 = vunpack.c.l.b16 %v544
      %v1440 = vunpack.c.l.b16 %v545
      %v1441 = vunpack.c.l.b16 %v546
      %v1442 = vunpack.c.l.b16 %v547
      %v1443 = vunpack.c.l.b16 %v548
      %v1444 = vunpack.c.l.b16 %v549
      %v1445 = vunpack.c.l.b16 %v550
      %v1446 = vunpack.c.l.b16 %v551
      %v1447 = vunpack.c.l.b16 %v552
      %v1448 = vunpack.c.l.b16 %v553
      %v1449 = vunpack.c.l.b16 %v554
      %v1450 = vunpack.c.l.b16 %v555
      %v1451 = vunpack.c.l.b16 %v556
      %v1452 = vunpack.c.l.b16 %v557
      %v1453 = vunpack.c.l.b16 %v558
      %v1454 = vunpack.c.l.b16 %v559
      %v1455 = vunpack.c.l.b16 %v560
      %v1456 = vunpack.c.l.b16 %v561
      %v1457 = vunpack.c.l.b16 %v562
      %v1458 = vunpack.c.l.b16 %v563
      %v1459 = vunpack.c.l.b16 %v564
      %v1460 = vunpack.c.l.b16 %v565
      %v1461 = vunpack.c.l.b16 %v566
      %v1462 = vunpack.c.l.b16 %v567
      %v1463 = vunpack.c.l.b16 %v568
      %v1464 = vunpack.c.l.b16 %v569
      %v1465 = vunpack.c.l.b16 %v570
      %v1466 = vunpack.c.l.b16 %v571
      %v1467 = vunpack.c.l.b16 %v572
      %v1468 = vunpack.c.l.b16 %v573
      %v1469 = vunpack.c.l.b16 %v574
      %v1470 = vunpack.c.l.b16 %v575
      %v1471 = vunpack.c.l.b16 %v576
      %v1472 = vunpack.c.l.b16 %v577
      %v1473 = vunpack.c.l.b16 %v578
      %v1474 = vunpack.c.l.b16 %v579
      %v1475 = vunpack.c.l.b16 %v580
      %v1476 = vunpack.c.l.b16 %v581
      %v1477 = vunpack.c.l.b16 %v582
      %v1478 = vunpack.c.l.b16 %v583
      %v1479 = vunpack.c.l.b16 %v584
      %v1480 = vunpack.c.l.b16 %v585
      %v1481 = vunpack.c.l.b16 %v586
      %v1482 = vunpack.c.l.b16 %v587
      %v1483 = vunpack.c.l.b16 %v588
      %v1484 = vunpack.c.l.b16 %v589
      %v1485 = vunpack.c.l.b16 %v590
      %v1486 = vunpack.c.l.b16 %v591
      %v1487 = vunpack.c.l.b16 %v592
      %v1488 = vunpack.c.l.b16 %v593
      %v1489 = vunpack.c.l.b16 %v594
      %v1490 = vunpack.c.l.b16 %v595
      %v1491 = vunpack.c.l.b16 %v596
      %v1492 = vunpack.c.l.b16 %v597
      %v1493 = vunpack.c.l.b16 %v598
      %v1494 = vpack.c.b16 %v1435, %v1434
      %v1495 = vpack.c.b16 %v1437, %v1436
      %v1496 = vpack.c.b16 %v1439, %v1438
      %v1497 = vpack.c.b16 %v1441, %v1440
      %v1498 = vpack.c.b16 %v1443, %v1442
      %v1499 = vpack.c.b16 %v1445, %v1444
      %v1500 = vpack.c.b16 %v1447, %v1446
      %v1501 = vpack.c.b16 %v1449, %v1448
      %v1502 = vpack.c.b16 %v1451, %v1450
      %v1503 = vpack.c.b16 %v1453, %v1452
      %v1504 = vpack.c.b16 %v1455, %v1454
      %v1505 = vpack.c.b16 %v1457, %v1456
      %v1506 = vpack.c.b16 %v1459, %v1458
      %v1507 = vpack.c.b16 %v1461, %v1460
      %v1508 = vpack.c.b16 %v1463, %v1462
      %v1509 = vpack.c.b16 %v1465, %v1464
      %v1510 = vpack.c.b16 %v1467, %v1466
      %v1511 = vpack.c.b16 %v1469, %v1468
      %v1512 = vpack.c.b16 %v1471, %v1470
      %v1513 = vpack.c.b16 %v1473, %v1472
      %v1514 = vpack.c.b16 %v1475, %v1474
      %v1515 = vpack.c.b16 %v1477, %v1476
      %v1516 = vpack.c.b16 %v1479, %v1478
      %v1517 = vpack.c.b16 %v1481, %v1480
      %v1518 = vpack.c.b16 %v1483, %v1482
      %v1519 = vpack.c.b16 %v1485, %v1484
      %v1520 = vpack.c.b16 %v1487, %v1486
      %v1521 = vpack.c.b16 %v1489, %v1488
      %v1522 = vpack.c.b16 %v1491, %v1490
      %v1523 = vpack.c.b16 %v1493, %v1492
      %v1525 = vsel %vm729, %v1494, 0
      %v1528 = vsel %vm729, %v1495, 0
      %v1531 = vsel %vm729, %v1496, 0
      %v1534 = vsel %vm729, %v1497, 0
      %v1537 = vsel %vm729, %v1498, 0
      %v1540 = vsel %vm729, %v1499, 0
      %v1543 = vsel %vm729, %v1500, 0
      %v1546 = vsel %vm729, %v1501, 0
      %v1549 = vsel %vm729, %v1502, 0
      %v1552 = vsel %vm729, %v1503, 0
      %v1555 = vsel %vm729, %v1504, 0
      %v1558 = vsel %vm729, %v1505, 0
      %v1561 = vsel %vm729, %v1506, 0
      %v1564 = vsel %vm729, %v1507, 0
      %v1567 = vsel %vm729, %v1508, 0
      %v1570 = vsel %vm729, %v1509, 0
      %v1573 = vsel %vm729, %v1510, 0
      %v1576 = vsel %vm729, %v1511, 0
      %v1579 = vsel %vm729, %v1512, 0
      %v1582 = vsel %vm729, %v1513, 0
      %v1585 = vsel %vm729, %v1514, 0
      %v1588 = vsel %vm729, %v1515, 0
      %v1591 = vsel %vm729, %v1516, 0
      %v1594 = vsel %vm729, %v1517, 0
      %v1597 = vsel %vm729, %v1518, 0
      %v1600 = vsel %vm729, %v1519, 0
      %v1603 = vsel %vm729, %v1520, 0
      %v1606 = vsel %vm729, %v1521, 0
      %v1609 = vsel %vm729, %v1522, 0
      %v1612 = vsel %vm729, %v1523, 0
      %1614 = vmatpush.bf16.msra.mxu0 0
      %1615 = vmatpush.bf16.msra.mxu0 0
      %1616 = vmatpush.bf16.msra.mxu0 0
      %1617 = vmatpush.bf16.msra.mxu0 0
      %1618 = vmatpush.bf16.msra.mxu0 0
      %1619 = vmatpush.bf16.msra.mxu0 %v721
      %1620 = vmatpush.bf16.msra.mxu0 %v719
      %1621 = vmatpush.bf16.msra.mxu0 %v717
      %1622 = vmatmul.bf16.gmra.mxu0 %v1525
      %v1623 = vpop.f32.mrf.mxu0
      %v1624 = vadd.f32 0.0, %v1623
      %v1625 = vpop.f32.mrf.mxu0
      %v1626 = vadd.f32 0.0, %v1625
      %1627 = vmatmul.bf16.gmra.mxu0 %v1528
      %v1628 = vpop.f32.mrf.mxu0
      %v1629 = vadd.f32 0.0, %v1628
      %v1630 = vpop.f32.mrf.mxu0
      %v1631 = vadd.f32 0.0, %v1630
      %1632 = vmatmul.bf16.gmra.mxu0 %v1531
      %v1633 = vpop.f32.mrf.mxu0
      %v1634 = vadd.f32 0.0, %v1633
      %v1635 = vpop.f32.mrf.mxu0
      %v1636 = vadd.f32 0.0, %v1635
      %1637 = vmatmul.bf16.gmra.mxu0 %v1534
      %v1638 = vpop.f32.mrf.mxu0
      %v1639 = vadd.f32 0.0, %v1638
      %v1640 = vpop.f32.mrf.mxu0
      %v1641 = vadd.f32 0.0, %v1640
      %1642 = vmatmul.bf16.gmra.mxu0 %v1537
      %v1643 = vpop.f32.mrf.mxu0
      %v1644 = vadd.f32 0.0, %v1643
      %v1645 = vpop.f32.mrf.mxu0
      %v1646 = vadd.f32 0.0, %v1645
      %1647 = vmatmul.bf16.gmra.mxu0 %v1540
      %v1648 = vpop.f32.mrf.mxu0
      %v1649 = vadd.f32 0.0, %v1648
      %v1650 = vpop.f32.mrf.mxu0
      %v1651 = vadd.f32 0.0, %v1650
      %1652 = vmatmul.bf16.gmra.mxu0 %v1543
      %v1653 = vpop.f32.mrf.mxu0
      %v1654 = vadd.f32 0.0, %v1653
      %v1655 = vpop.f32.mrf.mxu0
      %v1656 = vadd.f32 0.0, %v1655
      %1657 = vmatmul.bf16.gmra.mxu0 %v1546
      %v1658 = vpop.f32.mrf.mxu0
      %v1659 = vadd.f32 0.0, %v1658
      %v1660 = vpop.f32.mrf.mxu0
      %v1661 = vadd.f32 0.0, %v1660
      %1662 = vmatmul.bf16.gmra.mxu0 %v1549
      %v1663 = vpop.f32.mrf.mxu0
      %v1664 = vadd.f32 0.0, %v1663
      %v1665 = vpop.f32.mrf.mxu0
      %v1666 = vadd.f32 0.0, %v1665
      %1667 = vmatmul.bf16.gmra.mxu0 %v1552
      %v1668 = vpop.f32.mrf.mxu0
      %v1669 = vadd.f32 0.0, %v1668
      %v1670 = vpop.f32.mrf.mxu0
      %v1671 = vadd.f32 0.0, %v1670
      %1672 = vmatmul.bf16.gmra.mxu0 %v1555
      %v1673 = vpop.f32.mrf.mxu0
      %v1674 = vadd.f32 0.0, %v1673
      %v1675 = vpop.f32.mrf.mxu0
      %v1676 = vadd.f32 0.0, %v1675
      %1677 = vmatmul.bf16.gmra.mxu0 %v1558
      %v1678 = vpop.f32.mrf.mxu0
      %v1679 = vadd.f32 0.0, %v1678
      %v1680 = vpop.f32.mrf.mxu0
      %v1681 = vadd.f32 0.0, %v1680
      %1682 = vmatmul.bf16.gmra.mxu0 %v1561
      %v1683 = vpop.f32.mrf.mxu0
      %v1684 = vadd.f32 0.0, %v1683
      %v1685 = vpop.f32.mrf.mxu0
      %v1686 = vadd.f32 0.0, %v1685
      %1687 = vmatmul.bf16.gmra.mxu0 %v1564
      %v1688 = vpop.f32.mrf.mxu0
      %v1689 = vadd.f32 0.0, %v1688
      %v1690 = vpop.f32.mrf.mxu0
      %v1691 = vadd.f32 0.0, %v1690
      %1692 = vmatmul.bf16.gmra.mxu0 %v1567
      %v1693 = vpop.f32.mrf.mxu0
      %v1694 = vadd.f32 0.0, %v1693
      %v1695 = vpop.f32.mrf.mxu0
      %v1696 = vadd.f32 0.0, %v1695
      %1697 = vmatmul.bf16.gmra.mxu0 %v1570
      %v1698 = vpop.f32.mrf.mxu0
      %v1699 = vadd.f32 0.0, %v1698
      %v1700 = vpop.f32.mrf.mxu0
      %v1701 = vadd.f32 0.0, %v1700
      %1702 = vmatmul.bf16.gmra.mxu0 %v1573
      %v1703 = vpop.f32.mrf.mxu0
      %v1704 = vadd.f32 0.0, %v1703
      %v1705 = vpop.f32.mrf.mxu0
      %v1706 = vadd.f32 0.0, %v1705
      %1707 = vmatmul.bf16.gmra.mxu0 %v1576
      %v1708 = vpop.f32.mrf.mxu0
      %v1709 = vadd.f32 0.0, %v1708
      %v1710 = vpop.f32.mrf.mxu0
      %v1711 = vadd.f32 0.0, %v1710
      %1712 = vmatmul.bf16.gmra.mxu0 %v1579
      %v1713 = vpop.f32.mrf.mxu0
      %v1714 = vadd.f32 0.0, %v1713
      %v1715 = vpop.f32.mrf.mxu0
      %v1716 = vadd.f32 0.0, %v1715
      %1717 = vmatmul.bf16.gmra.mxu0 %v1582
      %v1718 = vpop.f32.mrf.mxu0
      %v1719 = vadd.f32 0.0, %v1718
      %v1720 = vpop.f32.mrf.mxu0
      %v1721 = vadd.f32 0.0, %v1720
      %1722 = vmatmul.bf16.gmra.mxu0 %v1585
      %v1723 = vpop.f32.mrf.mxu0
      %v1724 = vadd.f32 0.0, %v1723
      %v1725 = vpop.f32.mrf.mxu0
      %v1726 = vadd.f32 0.0, %v1725
      %1727 = vmatmul.bf16.gmra.mxu0 %v1588
      %v1728 = vpop.f32.mrf.mxu0
      %v1729 = vadd.f32 0.0, %v1728
      %v1730 = vpop.f32.mrf.mxu0
      %v1731 = vadd.f32 0.0, %v1730
      %1732 = vmatmul.bf16.gmra.mxu0 %v1591
      %v1733 = vpop.f32.mrf.mxu0
      %v1734 = vadd.f32 0.0, %v1733
      %v1735 = vpop.f32.mrf.mxu0
      %v1736 = vadd.f32 0.0, %v1735
      %1737 = vmatmul.bf16.gmra.mxu0 %v1594
      %v1738 = vpop.f32.mrf.mxu0
      %v1739 = vadd.f32 0.0, %v1738
      %v1740 = vpop.f32.mrf.mxu0
      %v1741 = vadd.f32 0.0, %v1740
      %1742 = vmatmul.bf16.gmra.mxu0 %v1597
      %v1743 = vpop.f32.mrf.mxu0
      %v1744 = vadd.f32 0.0, %v1743
      %v1745 = vpop.f32.mrf.mxu0
      %v1746 = vadd.f32 0.0, %v1745
      %1747 = vmatmul.bf16.gmra.mxu0 %v1600
      %v1748 = vpop.f32.mrf.mxu0
      %v1749 = vadd.f32 0.0, %v1748
      %v1750 = vpop.f32.mrf.mxu0
      %v1751 = vadd.f32 0.0, %v1750
      %1752 = vmatmul.bf16.gmra.mxu0 %v1603
      %v1753 = vpop.f32.mrf.mxu0
      %v1754 = vadd.f32 0.0, %v1753
      %v1755 = vpop.f32.mrf.mxu0
      %v1756 = vadd.f32 0.0, %v1755
      %1757 = vmatmul.bf16.gmra.mxu0 %v1606
      %v1758 = vpop.f32.mrf.mxu0
      %v1759 = vpop.f32.mrf.mxu0
      %1760 = vmatmul.bf16.gmra.mxu0 %v1609
      %v1761 = vpop.f32.mrf.mxu0
      %v1762 = vpop.f32.mrf.mxu0
      %1763 = vmatmul.bf16.gmra.mxu0 %v1612
      %v1764 = vpop.f32.mrf.mxu0
      %v1765 = vpop.f32.mrf.mxu0
      %1766 = vdwg.mxu0
      %1767 = vmatpush.bf16.msra.mxu0 0
      %1768 = vmatpush.bf16.msra.mxu0 0
      %1769 = vmatpush.bf16.msra.mxu0 0
      %1770 = vmatpush.bf16.msra.mxu0 0
      %1771 = vmatpush.bf16.msra.mxu0 0
      %1772 = vmatpush.bf16.msra.mxu0 %v722
      %1773 = vmatpush.bf16.msra.mxu0 %v720
      %1774 = vmatpush.bf16.msra.mxu0 %v718
      %1775 = vmatmul.bf16.gmra.mxu0 %v1525
      %v1776 = vpop.f32.mrf.mxu0
      %v1777 = vpop.f32.mrf.mxu0
      %1778 = vmatmul.bf16.gmra.mxu0 %v1528
      %v1779 = vpop.f32.mrf.mxu0
      %v1780 = vpop.f32.mrf.mxu0
      %1781 = vmatmul.bf16.gmra.mxu0 %v1531
      %v1782 = vpop.f32.mrf.mxu0
      %v1783 = vpop.f32.mrf.mxu0
      %1784 = vmatmul.bf16.gmra.mxu0 %v1534
      %v1785 = vpop.f32.mrf.mxu0
      %v1786 = vadd.f32 0.0, %v1785
      %v1787 = vpop.f32.mrf.mxu0
      %v1788 = vadd.f32 0.0, %v1787
      %1789 = vmatmul.bf16.gmra.mxu0 %v1537
      %v1790 = vpop.f32.mrf.mxu0
      %v1791 = vadd.f32 0.0, %v1790
      %v1792 = vpop.f32.mrf.mxu0
      %v1793 = vadd.f32 0.0, %v1792
      %1794 = vmatmul.bf16.gmra.mxu0 %v1540
      %v1795 = vpop.f32.mrf.mxu0
      %v1796 = vadd.f32 0.0, %v1795
      %v1797 = vpop.f32.mrf.mxu0
      %v1798 = vadd.f32 0.0, %v1797
      %1799 = vmatmul.bf16.gmra.mxu0 %v1543
      %v1800 = vpop.f32.mrf.mxu0
      %v1801 = vadd.f32 0.0, %v1800
      %v1802 = vpop.f32.mrf.mxu0
      %v1803 = vadd.f32 0.0, %v1802
      %1804 = vmatmul.bf16.gmra.mxu0 %v1546
      %v1805 = vpop.f32.mrf.mxu0
      %v1806 = vadd.f32 0.0, %v1805
      %v1807 = vpop.f32.mrf.mxu0
      %v1808 = vadd.f32 0.0, %v1807
      %1809 = vmatmul.bf16.gmra.mxu0 %v1549
      %v1810 = vpop.f32.mrf.mxu0
      %v1811 = vadd.f32 0.0, %v1810
      %v1812 = vpop.f32.mrf.mxu0
      %v1813 = vadd.f32 0.0, %v1812
      %1814 = vmatmul.bf16.gmra.mxu0 %v1552
      %v1815 = vpop.f32.mrf.mxu0
      %v1816 = vadd.f32 0.0, %v1815
      %v1817 = vpop.f32.mrf.mxu0
      %v1818 = vadd.f32 0.0, %v1817
      %1819 = vmatmul.bf16.gmra.mxu0 %v1555
      %v1820 = vpop.f32.mrf.mxu0
      %v1821 = vadd.f32 0.0, %v1820
      %v1822 = vpop.f32.mrf.mxu0
      %v1823 = vadd.f32 0.0, %v1822
      %1824 = vmatmul.bf16.gmra.mxu0 %v1558
      %v1825 = vpop.f32.mrf.mxu0
      %v1826 = vadd.f32 0.0, %v1825
      %v1827 = vpop.f32.mrf.mxu0
      %v1828 = vadd.f32 0.0, %v1827
      %1829 = vmatmul.bf16.gmra.mxu0 %v1561
      %v1830 = vpop.f32.mrf.mxu0
      %v1831 = vadd.f32 0.0, %v1830
      %v1832 = vpop.f32.mrf.mxu0
      %v1833 = vadd.f32 0.0, %v1832
      %1834 = vmatmul.bf16.gmra.mxu0 %v1564
      %v1835 = vpop.f32.mrf.mxu0
      %v1836 = vadd.f32 0.0, %v1835
      %v1837 = vpop.f32.mrf.mxu0
      %v1838 = vadd.f32 0.0, %v1837
      %1839 = vmatmul.bf16.gmra.mxu0 %v1567
      %v1840 = vpop.f32.mrf.mxu0
      %v1841 = vadd.f32 0.0, %v1840
      %v1842 = vpop.f32.mrf.mxu0
      %v1843 = vadd.f32 0.0, %v1842
      %1844 = vmatmul.bf16.gmra.mxu0 %v1570
      %v1845 = vpop.f32.mrf.mxu0
      %v1846 = vadd.f32 0.0, %v1845
      %v1847 = vpop.f32.mrf.mxu0
      %v1848 = vadd.f32 0.0, %v1847
      %1849 = vmatmul.bf16.gmra.mxu0 %v1573
      %v1850 = vpop.f32.mrf.mxu0
      %v1851 = vadd.f32 0.0, %v1850
      %v1852 = vpop.f32.mrf.mxu0
      %v1853 = vadd.f32 0.0, %v1852
      %1854 = vmatmul.bf16.gmra.mxu0 %v1576
      %v1855 = vpop.f32.mrf.mxu0
      %v1856 = vadd.f32 0.0, %v1855
      %v1857 = vpop.f32.mrf.mxu0
      %v1858 = vadd.f32 0.0, %v1857
      %1859 = vmatmul.bf16.gmra.mxu0 %v1579
      %v1860 = vpop.f32.mrf.mxu0
      %v1861 = vadd.f32 0.0, %v1860
      %v1862 = vpop.f32.mrf.mxu0
      %v1863 = vadd.f32 0.0, %v1862
      %1864 = vmatmul.bf16.gmra.mxu0 %v1582
      %v1865 = vpop.f32.mrf.mxu0
      %v1866 = vadd.f32 0.0, %v1865
      %v1867 = vpop.f32.mrf.mxu0
      %v1868 = vadd.f32 0.0, %v1867
      %1869 = vmatmul.bf16.gmra.mxu0 %v1585
      %v1870 = vpop.f32.mrf.mxu0
      %v1871 = vadd.f32 0.0, %v1870
      %v1872 = vpop.f32.mrf.mxu0
      %v1873 = vadd.f32 0.0, %v1872
      %1874 = vmatmul.bf16.gmra.mxu0 %v1588
      %v1875 = vpop.f32.mrf.mxu0
      %v1876 = vadd.f32 0.0, %v1875
      %v1877 = vpop.f32.mrf.mxu0
      %v1878 = vadd.f32 0.0, %v1877
      %1879 = vmatmul.bf16.gmra.mxu0 %v1591
      %v1880 = vpop.f32.mrf.mxu0
      %v1881 = vadd.f32 0.0, %v1880
      %v1882 = vpop.f32.mrf.mxu0
      %v1883 = vadd.f32 0.0, %v1882
      %1884 = vmatmul.bf16.gmra.mxu0 %v1594
      %v1885 = vpop.f32.mrf.mxu0
      %v1886 = vadd.f32 0.0, %v1885
      %v1887 = vpop.f32.mrf.mxu0
      %v1888 = vadd.f32 0.0, %v1887
      %1889 = vmatmul.bf16.gmra.mxu0 %v1597
      %v1890 = vpop.f32.mrf.mxu0
      %v1891 = vadd.f32 0.0, %v1890
      %v1892 = vpop.f32.mrf.mxu0
      %v1893 = vadd.f32 0.0, %v1892
      %1894 = vmatmul.bf16.gmra.mxu0 %v1600
      %v1895 = vpop.f32.mrf.mxu0
      %v1896 = vadd.f32 0.0, %v1895
      %v1897 = vpop.f32.mrf.mxu0
      %v1898 = vadd.f32 0.0, %v1897
      %1899 = vmatmul.bf16.gmra.mxu0 %v1603
      %v1900 = vpop.f32.mrf.mxu0
      %v1901 = vadd.f32 0.0, %v1900
      %v1902 = vpop.f32.mrf.mxu0
      %v1903 = vadd.f32 0.0, %v1902
      %1904 = vmatmul.bf16.gmra.mxu0 %v1606
      %v1905 = vpop.f32.mrf.mxu0
      %v1906 = vadd.f32 0.0, %v1905
      %v1907 = vpop.f32.mrf.mxu0
      %v1908 = vadd.f32 0.0, %v1907
      %1909 = vmatmul.bf16.gmra.mxu0 %v1609
      %v1910 = vpop.f32.mrf.mxu0
      %v1911 = vadd.f32 0.0, %v1910
      %v1912 = vpop.f32.mrf.mxu0
      %v1913 = vadd.f32 0.0, %v1912
      %1914 = vmatmul.bf16.gmra.mxu0 %v1612
      %v1915 = vpop.f32.mrf.mxu0
      %v1916 = vadd.f32 0.0, %v1915
      %v1917 = vpop.f32.mrf.mxu0
      %v1918 = vadd.f32 0.0, %v1917
      %1919 = vdwg.mxu0
      %1971 = vrot.lane.b32.xlu0 %v1631, 64
      %v1972 = vpop.permute.xlu0 %1971
      %1973 = vrot.lane.b32.xlu0 %v1634, 64
      %v1974 = vpop.permute.xlu0 %1973
      %1975 = vrot.lane.b32.xlu0 %v1636, 64
      %v1976 = vpop.permute.xlu0 %1975
      %1977 = vrot.lane.b32.xlu0 %v1639, 64
      %v1978 = vpop.permute.xlu0 %1977
      %1979 = vrot.lane.b32.xlu0 %v1641, 64
      %v1980 = vpop.permute.xlu0 %1979
      %1981 = vrot.lane.b32.xlu0 %v1644, 64
      %v1982 = vpop.permute.xlu0 %1981
      %1983 = vrot.lane.b32.xlu0 %v1646, 64
      %v1984 = vpop.permute.xlu0 %1983
      %1985 = vrot.lane.b32.xlu0 %v1649, 64
      %v1986 = vpop.permute.xlu0 %1985
      %1987 = vrot.lane.b32.xlu0 %v1651, 64
      %v1988 = vpop.permute.xlu0 %1987
      %1989 = vrot.lane.b32.xlu0 %v1654, 64
      %v1990 = vpop.permute.xlu0 %1989
      %1991 = vrot.lane.b32.xlu0 %v1656, 64
      %v1992 = vpop.permute.xlu0 %1991
      %1993 = vrot.lane.b32.xlu0 %v1659, 64
      %v1994 = vpop.permute.xlu0 %1993
      %1995 = vrot.lane.b32.xlu0 %v1661, 64
      %v1996 = vpop.permute.xlu0 %1995
      %1997 = vrot.lane.b32.xlu0 %v1664, 64
      %v1998 = vpop.permute.xlu0 %1997
      %1999 = vrot.lane.b32.xlu0 %v1666, 64
      %v2000 = vpop.permute.xlu0 %1999
      %2001 = vrot.lane.b32.xlu0 %v1669, 64
      %v2002 = vpop.permute.xlu0 %2001
      %2003 = vrot.lane.b32.xlu0 %v1671, 64
      %v2004 = vpop.permute.xlu0 %2003
      %2005 = vrot.lane.b32.xlu0 %v1674, 64
      %v2006 = vpop.permute.xlu0 %2005
      %2007 = vrot.lane.b32.xlu0 %v1676, 64
      %v2008 = vpop.permute.xlu0 %2007
      %2009 = vrot.lane.b32.xlu0 %v1679, 64
      %v2010 = vpop.permute.xlu0 %2009
      %2011 = vrot.lane.b32.xlu0 %v1681, 64
      %v2012 = vpop.permute.xlu0 %2011
      %2013 = vrot.lane.b32.xlu0 %v1684, 64
      %v2014 = vpop.permute.xlu0 %2013
      %2015 = vrot.lane.b32.xlu0 %v1686, 64
      %v2016 = vpop.permute.xlu0 %2015
      %2017 = vrot.lane.b32.xlu0 %v1689, 64
      %v2018 = vpop.permute.xlu0 %2017
      %2019 = vrot.lane.b32.xlu0 %v1691, 64
      %v2020 = vpop.permute.xlu0 %2019
      %2021 = vrot.lane.b32.xlu0 %v1694, 64
      %v2022 = vpop.permute.xlu0 %2021
      %2023 = vrot.lane.b32.xlu0 %v1696, 64
      %v2024 = vpop.permute.xlu0 %2023
      %2025 = vrot.lane.b32.xlu0 %v1699, 64
      %v2026 = vpop.permute.xlu0 %2025
      %2027 = vrot.lane.b32.xlu0 %v1701, 64
      %v2028 = vpop.permute.xlu0 %2027
      %2029 = vrot.lane.b32.xlu0 %v1704, 64
      %v2030 = vpop.permute.xlu0 %2029
      %2031 = vrot.lane.b32.xlu0 %v1706, 64
      %v2032 = vpop.permute.xlu0 %2031
      %2033 = vrot.lane.b32.xlu0 %v1709, 64
      %v2034 = vpop.permute.xlu0 %2033
      %2035 = vrot.lane.b32.xlu0 %v1711, 64
      %v2036 = vpop.permute.xlu0 %2035
      %2037 = vrot.lane.b32.xlu0 %v1714, 64
      %v2038 = vpop.permute.xlu0 %2037
      %2039 = vrot.lane.b32.xlu0 %v1716, 64
      %v2040 = vpop.permute.xlu0 %2039
      %2041 = vrot.lane.b32.xlu0 %v1719, 64
      %v2042 = vpop.permute.xlu0 %2041
      %2043 = vrot.lane.b32.xlu0 %v1721, 64
      %v2044 = vpop.permute.xlu0 %2043
      %2045 = vrot.lane.b32.xlu0 %v1724, 64
      %v2046 = vpop.permute.xlu0 %2045
      %2047 = vrot.lane.b32.xlu0 %v1726, 64
      %v2048 = vpop.permute.xlu0 %2047
      %2049 = vrot.lane.b32.xlu0 %v1729, 64
      %v2050 = vpop.permute.xlu0 %2049
      %2051 = vrot.lane.b32.xlu0 %v1731, 64
      %v2052 = vpop.permute.xlu0 %2051
      %2053 = vrot.lane.b32.xlu0 %v1734, 64
      %v2054 = vpop.permute.xlu0 %2053
      %2055 = vrot.lane.b32.xlu0 %v1736, 64
      %v2056 = vpop.permute.xlu0 %2055
      %2057 = vrot.lane.b32.xlu0 %v1739, 64
      %v2058 = vpop.permute.xlu0 %2057
      %2059 = vrot.lane.b32.xlu0 %v1741, 64
      %v2060 = vpop.permute.xlu0 %2059
      %2061 = vrot.lane.b32.xlu0 %v1744, 64
      %v2062 = vpop.permute.xlu0 %2061
      %2063 = vrot.lane.b32.xlu0 %v1746, 64
      %v2064 = vpop.permute.xlu0 %2063
      %2065 = vrot.lane.b32.xlu0 %v1749, 64
      %v2066 = vpop.permute.xlu0 %2065
      %2067 = vrot.lane.b32.xlu0 %v1751, 64
      %v2068 = vpop.permute.xlu0 %2067
      %2069 = vrot.lane.b32.xlu0 %v1754, 64
      %v2070 = vpop.permute.xlu0 %2069
      %2071 = vrot.lane.b32.xlu0 %v1756, 64
      %v2072 = vpop.permute.xlu0 %2071
      %v2124 = vadd.f32 %v1624, %v1972
      %v2125 = vadd.f32 %v1626, %v1974
      %v2126 = vadd.f32 %v1629, %v1976
      %v2127 = vadd.f32 %v1631, %v1978
      %v2128 = vadd.f32 %v1634, %v1980
      %v2129 = vadd.f32 %v1636, %v1982
      %v2130 = vadd.f32 %v1639, %v1984
      %v2131 = vadd.f32 %v1641, %v1986
      %v2132 = vadd.f32 %v1644, %v1988
      %v2133 = vadd.f32 %v1646, %v1990
      %v2134 = vadd.f32 %v1649, %v1992
      %v2135 = vadd.f32 %v1651, %v1994
      %v2136 = vadd.f32 %v1654, %v1996
      %v2137 = vadd.f32 %v1656, %v1998
      %v2138 = vadd.f32 %v1659, %v2000
      %v2139 = vadd.f32 %v1661, %v2002
      %v2140 = vadd.f32 %v1664, %v2004
      %v2141 = vadd.f32 %v1666, %v2006
      %v2142 = vadd.f32 %v1669, %v2008
      %v2143 = vadd.f32 %v1671, %v2010
      %v2144 = vadd.f32 %v1674, %v2012
      %v2145 = vadd.f32 %v1676, %v2014
      %v2146 = vadd.f32 %v1679, %v2016
      %v2147 = vadd.f32 %v1681, %v2018
      %v2148 = vadd.f32 %v1684, %v2020
      %v2149 = vadd.f32 %v1686, %v2022
      %v2150 = vadd.f32 %v1689, %v2024
      %v2151 = vadd.f32 %v1691, %v2026
      %v2152 = vadd.f32 %v1694, %v2028
      %v2153 = vadd.f32 %v1696, %v2030
      %v2154 = vadd.f32 %v1699, %v2032
      %v2155 = vadd.f32 %v1701, %v2034
      %v2156 = vadd.f32 %v1704, %v2036
      %v2157 = vadd.f32 %v1706, %v2038
      %v2158 = vadd.f32 %v1709, %v2040
      %v2159 = vadd.f32 %v1711, %v2042
      %v2160 = vadd.f32 %v1714, %v2044
      %v2161 = vadd.f32 %v1716, %v2046
      %v2162 = vadd.f32 %v1719, %v2048
      %v2163 = vadd.f32 %v1721, %v2050
      %v2164 = vadd.f32 %v1724, %v2052
      %v2165 = vadd.f32 %v1726, %v2054
      %v2166 = vadd.f32 %v1729, %v2056
      %v2167 = vadd.f32 %v1731, %v2058
      %v2168 = vadd.f32 %v1734, %v2060
      %v2169 = vadd.f32 %v1736, %v2062
      %v2170 = vadd.f32 %v1739, %v2064
      %v2171 = vadd.f32 %v1741, %v2066
      %v2172 = vadd.f32 %v1744, %v2068
      %v2173 = vadd.f32 %v1746, %v2070
      %v2174 = vadd.f32 %v1749, %v2072
      %v2175 = vadd.f32 %v2124, %v1786
      %v2176 = vadd.f32 %v2125, %v1788
      %v2177 = vadd.f32 %v2126, %v1791
      %v2178 = vadd.f32 %v2127, %v1793
      %v2179 = vadd.f32 %v2128, %v1796
      %v2180 = vadd.f32 %v2129, %v1798
      %v2181 = vadd.f32 %v2130, %v1801
      %v2182 = vadd.f32 %v2131, %v1803
      %v2183 = vadd.f32 %v2132, %v1806
      %v2184 = vadd.f32 %v2133, %v1808
      %v2185 = vadd.f32 %v2134, %v1811
      %v2186 = vadd.f32 %v2135, %v1813
      %v2187 = vadd.f32 %v2136, %v1816
      %v2188 = vadd.f32 %v2137, %v1818
      %v2189 = vadd.f32 %v2138, %v1821
      %v2190 = vadd.f32 %v2139, %v1823
      %v2191 = vadd.f32 %v2140, %v1826
      %v2192 = vadd.f32 %v2141, %v1828
      %v2193 = vadd.f32 %v2142, %v1831
      %v2194 = vadd.f32 %v2143, %v1833
      %v2195 = vadd.f32 %v2144, %v1836
      %v2196 = vadd.f32 %v2145, %v1838
      %v2197 = vadd.f32 %v2146, %v1841
      %v2198 = vadd.f32 %v2147, %v1843
      %v2199 = vadd.f32 %v2148, %v1846
      %v2200 = vadd.f32 %v2149, %v1848
      %v2201 = vadd.f32 %v2150, %v1851
      %v2202 = vadd.f32 %v2151, %v1853
      %v2203 = vadd.f32 %v2152, %v1856
      %v2204 = vadd.f32 %v2153, %v1858
      %v2205 = vadd.f32 %v2154, %v1861
      %v2206 = vadd.f32 %v2155, %v1863
      %v2207 = vadd.f32 %v2156, %v1866
      %v2208 = vadd.f32 %v2157, %v1868
      %v2209 = vadd.f32 %v2158, %v1871
      %v2210 = vadd.f32 %v2159, %v1873
      %v2211 = vadd.f32 %v2160, %v1876
      %v2212 = vadd.f32 %v2161, %v1878
      %v2213 = vadd.f32 %v2162, %v1881
      %v2214 = vadd.f32 %v2163, %v1883
      %v2215 = vadd.f32 %v2164, %v1886
      %v2216 = vadd.f32 %v2165, %v1888
      %v2217 = vadd.f32 %v2166, %v1891
      %v2218 = vadd.f32 %v2167, %v1893
      %v2219 = vadd.f32 %v2168, %v1896
      %v2220 = vadd.f32 %v2169, %v1898
      %v2221 = vadd.f32 %v2170, %v1901
      %v2222 = vadd.f32 %v2171, %v1903
      %v2223 = vadd.f32 %v2172, %v1906
      %v2224 = vadd.f32 %v2173, %v1908
      %v2225 = vadd.f32 %v2174, %v1911
      %2277 = vrot.lane.b32.xlu0 %v1793, 64
      %v2278 = vpop.permute.xlu0 %2277
      %2279 = vrot.lane.b32.xlu0 %v1796, 64
      %v2280 = vpop.permute.xlu0 %2279
      %2281 = vrot.lane.b32.xlu0 %v1798, 64
      %v2282 = vpop.permute.xlu0 %2281
      %2283 = vrot.lane.b32.xlu0 %v1801, 64
      %v2284 = vpop.permute.xlu0 %2283
      %2285 = vrot.lane.b32.xlu0 %v1803, 64
      %v2286 = vpop.permute.xlu0 %2285
      %2287 = vrot.lane.b32.xlu0 %v1806, 64
      %v2288 = vpop.permute.xlu0 %2287
      %2289 = vrot.lane.b32.xlu0 %v1808, 64
      %v2290 = vpop.permute.xlu0 %2289
      %2291 = vrot.lane.b32.xlu0 %v1811, 64
      %v2292 = vpop.permute.xlu0 %2291
      %2293 = vrot.lane.b32.xlu0 %v1813, 64
      %v2294 = vpop.permute.xlu0 %2293
      %2295 = vrot.lane.b32.xlu0 %v1816, 64
      %v2296 = vpop.permute.xlu0 %2295
      %2297 = vrot.lane.b32.xlu0 %v1818, 64
      %v2298 = vpop.permute.xlu0 %2297
      %2299 = vrot.lane.b32.xlu0 %v1821, 64
      %v2300 = vpop.permute.xlu0 %2299
      %2301 = vrot.lane.b32.xlu0 %v1823, 64
      %v2302 = vpop.permute.xlu0 %2301
      %2303 = vrot.lane.b32.xlu0 %v1826, 64
      %v2304 = vpop.permute.xlu0 %2303
      %2305 = vrot.lane.b32.xlu0 %v1828, 64
      %v2306 = vpop.permute.xlu0 %2305
      %2307 = vrot.lane.b32.xlu0 %v1831, 64
      %v2308 = vpop.permute.xlu0 %2307
      %2309 = vrot.lane.b32.xlu0 %v1833, 64
      %v2310 = vpop.permute.xlu0 %2309
      %2311 = vrot.lane.b32.xlu0 %v1836, 64
      %v2312 = vpop.permute.xlu0 %2311
      %2313 = vrot.lane.b32.xlu0 %v1838, 64
      %v2314 = vpop.permute.xlu0 %2313
      %2315 = vrot.lane.b32.xlu0 %v1841, 64
      %v2316 = vpop.permute.xlu0 %2315
      %2317 = vrot.lane.b32.xlu0 %v1843, 64
      %v2318 = vpop.permute.xlu0 %2317
      %2319 = vrot.lane.b32.xlu0 %v1846, 64
      %v2320 = vpop.permute.xlu0 %2319
      %2321 = vrot.lane.b32.xlu0 %v1848, 64
      %v2322 = vpop.permute.xlu0 %2321
      %2323 = vrot.lane.b32.xlu0 %v1851, 64
      %v2324 = vpop.permute.xlu0 %2323
      %2325 = vrot.lane.b32.xlu0 %v1853, 64
      %v2326 = vpop.permute.xlu0 %2325
      %2327 = vrot.lane.b32.xlu0 %v1856, 64
      %v2328 = vpop.permute.xlu0 %2327
      %2329 = vrot.lane.b32.xlu0 %v1858, 64
      %v2330 = vpop.permute.xlu0 %2329
      %2331 = vrot.lane.b32.xlu0 %v1861, 64
      %v2332 = vpop.permute.xlu0 %2331
      %2333 = vrot.lane.b32.xlu0 %v1863, 64
      %v2334 = vpop.permute.xlu0 %2333
      %2335 = vrot.lane.b32.xlu0 %v1866, 64
      %v2336 = vpop.permute.xlu0 %2335
      %2337 = vrot.lane.b32.xlu0 %v1868, 64
      %v2338 = vpop.permute.xlu0 %2337
      %2339 = vrot.lane.b32.xlu0 %v1871, 64
      %v2340 = vpop.permute.xlu0 %2339
      %2341 = vrot.lane.b32.xlu0 %v1873, 64
      %v2342 = vpop.permute.xlu0 %2341
      %2343 = vrot.lane.b32.xlu0 %v1876, 64
      %v2344 = vpop.permute.xlu0 %2343
      %2345 = vrot.lane.b32.xlu0 %v1878, 64
      %v2346 = vpop.permute.xlu0 %2345
      %2347 = vrot.lane.b32.xlu0 %v1881, 64
      %v2348 = vpop.permute.xlu0 %2347
      %2349 = vrot.lane.b32.xlu0 %v1883, 64
      %v2350 = vpop.permute.xlu0 %2349
      %2351 = vrot.lane.b32.xlu0 %v1886, 64
      %v2352 = vpop.permute.xlu0 %2351
      %2353 = vrot.lane.b32.xlu0 %v1888, 64
      %v2354 = vpop.permute.xlu0 %2353
      %2355 = vrot.lane.b32.xlu0 %v1891, 64
      %v2356 = vpop.permute.xlu0 %2355
      %2357 = vrot.lane.b32.xlu0 %v1893, 64
      %v2358 = vpop.permute.xlu0 %2357
      %2359 = vrot.lane.b32.xlu0 %v1896, 64
      %v2360 = vpop.permute.xlu0 %2359
      %2361 = vrot.lane.b32.xlu0 %v1898, 64
      %v2362 = vpop.permute.xlu0 %2361
      %2363 = vrot.lane.b32.xlu0 %v1901, 64
      %v2364 = vpop.permute.xlu0 %2363
      %2365 = vrot.lane.b32.xlu0 %v1903, 64
      %v2366 = vpop.permute.xlu0 %2365
      %2367 = vrot.lane.b32.xlu0 %v1906, 64
      %v2368 = vpop.permute.xlu0 %2367
      %2369 = vrot.lane.b32.xlu0 %v1908, 64
      %v2370 = vpop.permute.xlu0 %2369
      %2371 = vrot.lane.b32.xlu0 %v1911, 64
      %v2372 = vpop.permute.xlu0 %2371
      %2373 = vrot.lane.b32.xlu0 %v1913, 64
      %v2374 = vpop.permute.xlu0 %2373
      %2375 = vrot.lane.b32.xlu0 %v1916, 64
      %v2376 = vpop.permute.xlu0 %2375
      %2377 = vrot.lane.b32.xlu0 %v1918, 64
      %v2378 = vpop.permute.xlu0 %2377
      %v2430 = vadd.f32 %v2175, %v2278
      %v2431 = vadd.f32 %v2176, %v2280
      %v2432 = vadd.f32 %v2177, %v2282
      %v2433 = vadd.f32 %v2178, %v2284
      %v2434 = vadd.f32 %v2179, %v2286
      %v2435 = vadd.f32 %v2180, %v2288
      %v2436 = vadd.f32 %v2181, %v2290
      %v2437 = vadd.f32 %v2182, %v2292
      %v2438 = vadd.f32 %v2183, %v2294
      %v2439 = vadd.f32 %v2184, %v2296
      %v2440 = vadd.f32 %v2185, %v2298
      %v2441 = vadd.f32 %v2186, %v2300
      %v2442 = vadd.f32 %v2187, %v2302
      %v2443 = vadd.f32 %v2188, %v2304
      %v2444 = vadd.f32 %v2189, %v2306
      %v2445 = vadd.f32 %v2190, %v2308
      %v2446 = vadd.f32 %v2191, %v2310
      %v2447 = vadd.f32 %v2192, %v2312
      %v2448 = vadd.f32 %v2193, %v2314
      %v2449 = vadd.f32 %v2194, %v2316
      %v2450 = vadd.f32 %v2195, %v2318
      %v2451 = vadd.f32 %v2196, %v2320
      %v2452 = vadd.f32 %v2197, %v2322
      %v2453 = vadd.f32 %v2198, %v2324
      %v2454 = vadd.f32 %v2199, %v2326
      %v2455 = vadd.f32 %v2200, %v2328
      %v2456 = vadd.f32 %v2201, %v2330
      %v2457 = vadd.f32 %v2202, %v2332
      %v2458 = vadd.f32 %v2203, %v2334
      %v2459 = vadd.f32 %v2204, %v2336
      %v2460 = vadd.f32 %v2205, %v2338
      %v2461 = vadd.f32 %v2206, %v2340
      %v2462 = vadd.f32 %v2207, %v2342
      %v2463 = vadd.f32 %v2208, %v2344
      %v2464 = vadd.f32 %v2209, %v2346
      %v2465 = vadd.f32 %v2210, %v2348
      %v2466 = vadd.f32 %v2211, %v2350
      %v2467 = vadd.f32 %v2212, %v2352
      %v2468 = vadd.f32 %v2213, %v2354
      %v2469 = vadd.f32 %v2214, %v2356
      %v2470 = vadd.f32 %v2215, %v2358
      %v2471 = vadd.f32 %v2216, %v2360
      %v2472 = vadd.f32 %v2217, %v2362
      %v2473 = vadd.f32 %v2218, %v2364
      %v2474 = vadd.f32 %v2219, %v2366
      %v2475 = vadd.f32 %v2220, %v2368
      %v2476 = vadd.f32 %v2221, %v2370
      %v2477 = vadd.f32 %v2222, %v2372
      %v2478 = vadd.f32 %v2223, %v2374
      %v2479 = vadd.f32 %v2224, %v2376
      %v2480 = vadd.f32 %v2225, %v2378
      %v2481 = vlaneseq
      %v2482 = vshrl.u32 %v2481, 7
      %v2483 = vadd.s32 %v2482, 8
      %vm2484 = vcmp.eq.s32.totalorder %v2482, 0
      %vm2485 = vcmp.eq.s32.totalorder %v2483, 0
      %v2486 = vsel %vm2484, -1e+30, %v2430
      %v2487 = vsel %vm2485, -1e+30, %v2431
      %v2488 = vsel %vm2484, -1e+30, %v2433
      %v2489 = vsel %vm2485, -1e+30, %v2434
      %v2490 = vsel %vm2484, -1e+30, %v2436
      %v2491 = vsel %vm2485, -1e+30, %v2437
      %v2492 = vsel %vm2484, -1e+30, %v2439
      %v2493 = vsel %vm2485, -1e+30, %v2440
      %v2494 = vsel %vm2484, -1e+30, %v2442
      %v2495 = vsel %vm2485, -1e+30, %v2443
      %v2496 = vsel %vm2484, -1e+30, %v2445
      %v2497 = vsel %vm2485, -1e+30, %v2446
      %v2498 = vsel %vm2484, -1e+30, %v2448
      %v2499 = vsel %vm2485, -1e+30, %v2449
      %v2500 = vsel %vm2484, -1e+30, %v2451
      %v2501 = vsel %vm2485, -1e+30, %v2452
      %v2502 = vsel %vm2484, -1e+30, %v2454
      %v2503 = vsel %vm2485, -1e+30, %v2455
      %v2504 = vsel %vm2484, -1e+30, %v2457
      %v2505 = vsel %vm2485, -1e+30, %v2458
      %v2506 = vsel %vm2484, -1e+30, %v2460
      %v2507 = vsel %vm2485, -1e+30, %v2461
      %v2508 = vsel %vm2484, -1e+30, %v2463
      %v2509 = vsel %vm2485, -1e+30, %v2464
      %v2510 = vsel %vm2484, -1e+30, %v2466
      %v2511 = vsel %vm2485, -1e+30, %v2467
      %v2512 = vsel %vm2484, -1e+30, %v2469
      %v2513 = vsel %vm2485, -1e+30, %v2470
      %v2514 = vsel %vm2484, -1e+30, %v2472
      %v2515 = vsel %vm2485, -1e+30, %v2473
      %v2516 = vsel %vm2484, -1e+30, %v2475
      %v2517 = vsel %vm2485, -1e+30, %v2476
      %v2518 = vsel %vm2484, -1e+30, %v2478
      %v2519 = vsel %vm2485, -1e+30, %v2479
      %vm2571 = vcmask 1046528
      %v2572 = vrot.slane %v2430, 1
      %v2573 = vrot.slane %v2431, 1
      %v2574 = vsel %vm2571, %v2572, %v2573
      %v2575 = vrot.slane %v2432, 1
      %v2576 = vsel %vm2571, %v2573, %v2575
      %v2577 = vrot.slane %v2433, 1
      %v2578 = vrot.slane %v2434, 1
      %v2579 = vsel %vm2571, %v2577, %v2578
      %v2580 = vrot.slane %v2435, 1
      %v2581 = vsel %vm2571, %v2578, %v2580
      %v2582 = vrot.slane %v2436, 1
      %v2583 = vrot.slane %v2437, 1
      %v2584 = vsel %vm2571, %v2582, %v2583
      %v2585 = vrot.slane %v2438, 1
      %v2586 = vsel %vm2571, %v2583, %v2585
      %v2587 = vrot.slane %v2439, 1
      %v2588 = vrot.slane %v2440, 1
      %v2589 = vsel %vm2571, %v2587, %v2588
      %v2590 = vrot.slane %v2441, 1
      %v2591 = vsel %vm2571, %v2588, %v2590
      %v2592 = vrot.slane %v2442, 1
      %v2593 = vrot.slane %v2443, 1
      %v2594 = vsel %vm2571, %v2592, %v2593
      %v2595 = vrot.slane %v2444, 1
      %v2596 = vsel %vm2571, %v2593, %v2595
      %v2597 = vrot.slane %v2445, 1
      %v2598 = vrot.slane %v2446, 1
      %v2599 = vsel %vm2571, %v2597, %v2598
      %v2600 = vrot.slane %v2447, 1
      %v2601 = vsel %vm2571, %v2598, %v2600
      %v2602 = vrot.slane %v2448, 1
      %v2603 = vrot.slane %v2449, 1
      %v2604 = vsel %vm2571, %v2602, %v2603
      %v2605 = vrot.slane %v2450, 1
      %v2606 = vsel %vm2571, %v2603, %v2605
      %v2607 = vrot.slane %v2451, 1
      %v2608 = vrot.slane %v2452, 1
      %v2609 = vsel %vm2571, %v2607, %v2608
      %v2610 = vrot.slane %v2453, 1
      %v2611 = vsel %vm2571, %v2608, %v2610
      %v2612 = vrot.slane %v2454, 1
      %v2613 = vrot.slane %v2455, 1
      %v2614 = vsel %vm2571, %v2612, %v2613
      %v2615 = vrot.slane %v2456, 1
      %v2616 = vsel %vm2571, %v2613, %v2615
      %v2617 = vrot.slane %v2457, 1
      %v2618 = vrot.slane %v2458, 1
      %v2619 = vsel %vm2571, %v2617, %v2618
      %v2620 = vrot.slane %v2459, 1
      %v2621 = vsel %vm2571, %v2618, %v2620
      %v2622 = vrot.slane %v2460, 1
      %v2623 = vrot.slane %v2461, 1
      %v2624 = vsel %vm2571, %v2622, %v2623
      %v2625 = vrot.slane %v2462, 1
      %v2626 = vsel %vm2571, %v2623, %v2625
      %v2627 = vrot.slane %v2463, 1
      %v2628 = vrot.slane %v2464, 1
      %v2629 = vsel %vm2571, %v2627, %v2628
      %v2630 = vrot.slane %v2465, 1
      %v2631 = vsel %vm2571, %v2628, %v2630
      %v2632 = vrot.slane %v2466, 1
      %v2633 = vrot.slane %v2467, 1
      %v2634 = vsel %vm2571, %v2632, %v2633
      %v2635 = vrot.slane %v2468, 1
      %v2636 = vsel %vm2571, %v2633, %v2635
      %v2637 = vrot.slane %v2469, 1
      %v2638 = vrot.slane %v2470, 1
      %v2639 = vsel %vm2571, %v2637, %v2638
      %v2640 = vrot.slane %v2471, 1
      %v2641 = vsel %vm2571, %v2638, %v2640
      %v2642 = vrot.slane %v2472, 1
      %v2643 = vrot.slane %v2473, 1
      %v2644 = vsel %vm2571, %v2642, %v2643
      %v2645 = vrot.slane %v2474, 1
      %v2646 = vsel %vm2571, %v2643, %v2645
      %v2647 = vrot.slane %v2475, 1
      %v2648 = vrot.slane %v2476, 1
      %v2649 = vsel %vm2571, %v2647, %v2648
      %v2650 = vrot.slane %v2477, 1
      %v2651 = vsel %vm2571, %v2648, %v2650
      %v2652 = vrot.slane %v2478, 1
      %v2653 = vrot.slane %v2479, 1
      %v2654 = vsel %vm2571, %v2652, %v2653
      %v2655 = vrot.slane %v2480, 1
      %v2656 = vsel %vm2571, %v2653, %v2655
      %v2691 = vmax.f32 %v2486, %v2574
      %v2692 = vmax.f32 %v2487, %v2576
      %v2693 = vmax.f32 %v2488, %v2579
      %v2694 = vmax.f32 %v2489, %v2581
      %v2695 = vmax.f32 %v2490, %v2584
      %v2696 = vmax.f32 %v2491, %v2586
      %v2697 = vmax.f32 %v2492, %v2589
      %v2698 = vmax.f32 %v2493, %v2591
      %v2699 = vmax.f32 %v2494, %v2594
      %v2700 = vmax.f32 %v2495, %v2596
      %v2701 = vmax.f32 %v2496, %v2599
      %v2702 = vmax.f32 %v2497, %v2601
      %v2703 = vmax.f32 %v2498, %v2604
      %v2704 = vmax.f32 %v2499, %v2606
      %v2705 = vmax.f32 %v2500, %v2609
      %v2706 = vmax.f32 %v2501, %v2611
      %v2707 = vmax.f32 %v2502, %v2614
      %v2708 = vmax.f32 %v2503, %v2616
      %v2709 = vmax.f32 %v2504, %v2619
      %v2710 = vmax.f32 %v2505, %v2621
      %v2711 = vmax.f32 %v2506, %v2624
      %v2712 = vmax.f32 %v2507, %v2626
      %v2713 = vmax.f32 %v2508, %v2629
      %v2714 = vmax.f32 %v2509, %v2631
      %v2715 = vmax.f32 %v2510, %v2634
      %v2716 = vmax.f32 %v2511, %v2636
      %v2717 = vmax.f32 %v2512, %v2639
      %v2718 = vmax.f32 %v2513, %v2641
      %v2719 = vmax.f32 %v2514, %v2644
      %v2720 = vmax.f32 %v2515, %v2646
      %v2721 = vmax.f32 %v2516, %v2649
      %v2722 = vmax.f32 %v2517, %v2651
      %v2723 = vmax.f32 %v2518, %v2654
      %v2724 = vmax.f32 %v2519, %v2656
      %v2725 = vmax.f32 %v1340, %v2691
      %v2726 = vmax.f32 %v1341, %v2692
      %v2727 = vmax.f32 %v1342, %v2693
      %v2728 = vmax.f32 %v1343, %v2694
      %v2729 = vmax.f32 %v1344, %v2695
      %v2730 = vmax.f32 %v1345, %v2696
      %v2731 = vmax.f32 %v1346, %v2697
      %v2732 = vmax.f32 %v1347, %v2698
      %v2733 = vmax.f32 %v1348, %v2699
      %v2734 = vmax.f32 %v1349, %v2700
      %v2735 = vmax.f32 %v1350, %v2701
      %v2736 = vmax.f32 %v1351, %v2702
      %v2737 = vmax.f32 %v1352, %v2703
      %v2738 = vmax.f32 %v1353, %v2704
      %v2739 = vmax.f32 %v1354, %v2705
      %v2740 = vmax.f32 %v1355, %v2706
      %v2741 = vmax.f32 %v1356, %v2707
      %v2742 = vmax.f32 %v1357, %v2708
      %v2743 = vmax.f32 %v1358, %v2709
      %v2744 = vmax.f32 %v1359, %v2710
      %v2745 = vmax.f32 %v1360, %v2711
      %v2746 = vmax.f32 %v1361, %v2712
      %v2747 = vmax.f32 %v1362, %v2713
      %v2748 = vmax.f32 %v1363, %v2714
      %v2749 = vmax.f32 %v1364, %v2715
      %v2750 = vmax.f32 %v1365, %v2716
      %v2751 = vmax.f32 %v1366, %v2717
      %v2752 = vmax.f32 %v1367, %v2718
      %v2753 = vmax.f32 %v1368, %v2719
      %v2754 = vmax.f32 %v1369, %v2720
      %v2755 = vmax.f32 %v1370, %v2721
      %v2756 = vmax.f32 %v1371, %v2722
      %v2757 = vmax.f32 %v1372, %v2723
      %v2758 = vmax.f32 %v1373, %v2724
      %p2759 = scmp.eq.s32.totalorder %s22, 0
      %s2760 = scalar_select %p2759, 1, 0
      %v2761 = vstv %s2760
      %vm2762 = vcmp.eq.s32.totalorder %v2761, 1
      %v2763 = vsel %vm2762, -1e+30, %v2725
      %v2764 = vsel %vm2762, -1e+30, %v2726
      %v2765 = vsel 0, -1e+30, %v2727
      %v2766 = vsel 0, -1e+30, %v2728
      %v2767 = vsel 0, -1e+30, %v2729
      %v2768 = vsel 0, -1e+30, %v2730
      %v2769 = vsel 0, -1e+30, %v2731
      %v2770 = vsel 0, -1e+30, %v2732
      %v2771 = vsel 0, -1e+30, %v2733
      %v2772 = vsel 0, -1e+30, %v2734
      %v2773 = vsel 0, -1e+30, %v2735
      %v2774 = vsel 0, -1e+30, %v2736
      %v2775 = vsel 0, -1e+30, %v2737
      %v2776 = vsel 0, -1e+30, %v2738
      %v2777 = vsel 0, -1e+30, %v2739
      %v2778 = vsel 0, -1e+30, %v2740
      %v2779 = vsel 0, -1e+30, %v2741
      %v2780 = vsel 0, -1e+30, %v2742
      %v2781 = vsel 0, -1e+30, %v2743
      %v2782 = vsel 0, -1e+30, %v2744
      %v2783 = vsel 0, -1e+30, %v2745
      %v2784 = vsel 0, -1e+30, %v2746
      %v2785 = vsel 0, -1e+30, %v2747
      %v2786 = vsel 0, -1e+30, %v2748
      %v2787 = vsel 0, -1e+30, %v2749
      %v2788 = vsel 0, -1e+30, %v2750
      %v2789 = vsel 0, -1e+30, %v2751
      %v2790 = vsel 0, -1e+30, %v2752
      %v2791 = vsel 0, -1e+30, %v2753
      %v2792 = vsel 0, -1e+30, %v2754
      %v2793 = vsel 0, -1e+30, %v2755
      %v2794 = vsel 0, -1e+30, %v2756
      %v2795 = vsel 0, -1e+30, %v2757
      %v2796 = vsel 0, -1e+30, %v2758
      %v2797 = vmax.f32 %v2763, %v2765
      %v2798 = vmax.f32 %v2764, %v2766
      %v2799 = vmax.f32 %v2767, %v2769
      %v2800 = vmax.f32 %v2768, %v2770
      %v2801 = vmax.f32 %v2771, %v2773
      %v2802 = vmax.f32 %v2772, %v2774
      %v2803 = vmax.f32 %v2775, %v2777
      %v2804 = vmax.f32 %v2776, %v2778
      %v2805 = vmax.f32 %v2779, %v2781
      %v2806 = vmax.f32 %v2780, %v2782
      %v2807 = vmax.f32 %v2783, %v2785
      %v2808 = vmax.f32 %v2784, %v2786
      %v2809 = vmax.f32 %v2787, %v2789
      %v2810 = vmax.f32 %v2788, %v2790
      %v2811 = vmax.f32 %v2791, %v2793
      %v2812 = vmax.f32 %v2792, %v2794
      %v2813 = vmax.f32 %v2797, %v2767
      %v2814 = vmax.f32 %v2798, %v2768
      %v2815 = vmax.f32 %v2799, %v2771
      %v2816 = vmax.f32 %v2800, %v2772
      %v2817 = vmax.f32 %v2801, %v2775
      %v2818 = vmax.f32 %v2802, %v2776
      %v2819 = vmax.f32 %v2803, %v2779
      %v2820 = vmax.f32 %v2804, %v2780
      %v2821 = vmax.f32 %v2805, %v2783
      %v2822 = vmax.f32 %v2806, %v2784
      %v2823 = vmax.f32 %v2807, %v2787
      %v2824 = vmax.f32 %v2808, %v2788
      %v2825 = vmax.f32 %v2809, %v2791
      %v2826 = vmax.f32 %v2810, %v2792
      %v2827 = vmax.f32 %v2811, %v2795
      %v2828 = vmax.f32 %v2812, %v2796
      %v2830 = vperm.slane %v498, 0
      %v2832 = vadd.f32 %v2813, %v2830
      %v2833 = vadd.f32 %v2814, %v2830
      %v2834 = vadd.f32 %v2815, %v2830
      %v2835 = vadd.f32 %v2816, %v2830
      %v2836 = vadd.f32 %v2817, %v2830
      %v2837 = vadd.f32 %v2818, %v2830
      %v2838 = vadd.f32 %v2819, %v2830
      %v2839 = vadd.f32 %v2820, %v2830
      %v2840 = vadd.f32 %v2821, %v2830
      %v2841 = vadd.f32 %v2822, %v2830
      %v2842 = vadd.f32 %v2823, %v2830
      %v2843 = vadd.f32 %v2824, %v2830
      %v2844 = vadd.f32 %v2825, %v2830
      %v2845 = vadd.f32 %v2826, %v2830
      %v2846 = vadd.f32 %v2827, %v2830
      %v2847 = vadd.f32 %v2828, %v2830
      %v2848 = vmax.f32 %v2832, 0.0
      %v2849 = vmax.f32 %v2833, 0.0
      %v2850 = vmax.f32 %v2834, 0.0
      %v2851 = vmax.f32 %v2835, 0.0
      %v2852 = vmax.f32 %v2836, 0.0
      %v2853 = vmax.f32 %v2837, 0.0
      %v2854 = vmax.f32 %v2838, 0.0
      %v2855 = vmax.f32 %v2839, 0.0
      %v2856 = vmax.f32 %v2840, 0.0
      %v2857 = vmax.f32 %v2841, 0.0
      %v2858 = vmax.f32 %v2842, 0.0
      %v2859 = vmax.f32 %v2843, 0.0
      %v2860 = vmax.f32 %v2844, 0.0
      %v2861 = vmax.f32 %v2845, 0.0
      %v2862 = vmax.f32 %v2846, 0.0
      %v2863 = vmax.f32 %v2847, 0.0
      %vm2864 = vcmask 523264
      %2865 = vst.msk [vmem:[%s489] sm:$0xff] %vm2864, %v2848
      %2866 = vst.msk [vmem:[%s489 + $0x8] sm:$0xff] %vm2864, %v2849
      %2867 = vst.msk [vmem:[%s489 + $0x10] sm:$0xff] %vm2864, %v2850
      %2868 = vst.msk [vmem:[%s489 + $0x18] sm:$0xff] %vm2864, %v2851
      %2869 = vst.msk [vmem:[%s489 + $0x20] sm:$0xff] %vm2864, %v2852
      %2870 = vst.msk [vmem:[%s489 + $0x28] sm:$0xff] %vm2864, %v2853
      %2871 = vst.msk [vmem:[%s489 + $0x30] sm:$0xff] %vm2864, %v2854
      %2872 = vst.msk [vmem:[%s489 + $0x38] sm:$0xff] %vm2864, %v2855
      %2873 = vst.msk [vmem:[%s489 + $0x40] sm:$0xff] %vm2864, %v2856
      %2874 = vst.msk [vmem:[%s489 + $0x48] sm:$0xff] %vm2864, %v2857
      %2875 = vst.msk [vmem:[%s489 + $0x50] sm:$0xff] %vm2864, %v2858
      %2876 = vst.msk [vmem:[%s489 + $0x58] sm:$0xff] %vm2864, %v2859
      %2877 = vst.msk [vmem:[%s489 + $0x60] sm:$0xff] %vm2864, %v2860
      %2878 = vst.msk [vmem:[%s489 + $0x68] sm:$0xff] %vm2864, %v2861
      %2879 = vst.msk [vmem:[%s489 + $0x70] sm:$0xff] %vm2864, %v2862
      %2880 = vst.msk [vmem:[%s489 + $0x78] sm:$0xff] %vm2864, %v2863
      %s2881 = scalar_lea.vmem %s422, 128
      %v2882 = vld [vmem:[%s2881] sm:$0xf]
      %v2883 = vld [vmem:[%s2881 + $0x4] sm:$0xf]
      %v2884 = vld [vmem:[%s2881 + $0x8] sm:$0xf]
      %v2885 = vld [vmem:[%s2881 + $0xc] sm:$0xf]
      %v2886 = vld [vmem:[%s2881 + $0x10] sm:$0xf]
      %v2887 = vld [vmem:[%s2881 + $0x14] sm:$0xf]
      %v2888 = vld [vmem:[%s2881 + $0x18] sm:$0xf]
      %v2889 = vld [vmem:[%s2881 + $0x1c] sm:$0xf]
      %v2890 = vld [vmem:[%s2881 + $0x20] sm:$0xf]
      %v2891 = vld [vmem:[%s2881 + $0x24] sm:$0xf]
      %v2892 = vld [vmem:[%s2881 + $0x28] sm:$0xf]
      %v2893 = vld [vmem:[%s2881 + $0x2c] sm:$0xf]
      %v2894 = vld [vmem:[%s2881 + $0x30] sm:$0xf]
      %v2895 = vld [vmem:[%s2881 + $0x34] sm:$0xf]
      %v2896 = vld [vmem:[%s2881 + $0x38] sm:$0xf]
      %v2897 = vld [vmem:[%s2881 + $0x3c] sm:$0xf]
      %v2898 = vld [vmem:[%s2881 + $0x40] sm:$0xf]
      %v2899 = vld [vmem:[%s2881 + $0x44] sm:$0xf]
      %v2900 = vld [vmem:[%s2881 + $0x48] sm:$0xf]
      %v2901 = vld [vmem:[%s2881 + $0x4c] sm:$0xf]
      %v2902 = vld [vmem:[%s2881 + $0x50] sm:$0xf]
      %v2903 = vld [vmem:[%s2881 + $0x54] sm:$0xf]
      %v2904 = vld [vmem:[%s2881 + $0x58] sm:$0xf]
      %v2905 = vld [vmem:[%s2881 + $0x5c] sm:$0xf]
      %v2906 = vld [vmem:[%s2881 + $0x60] sm:$0xf]
      %v2907 = vld [vmem:[%s2881 + $0x64] sm:$0xf]
      %v2908 = vld [vmem:[%s2881 + $0x68] sm:$0xf]
      %v2909 = vld [vmem:[%s2881 + $0x6c] sm:$0xf]
      %v2910 = vld [vmem:[%s2881 + $0x70] sm:$0xf]
      %v2911 = vld [vmem:[%s2881 + $0x74] sm:$0xf]
      %v2912 = vld [vmem:[%s2881 + $0x78] sm:$0xf]
      %v2913 = vld [vmem:[%s2881 + $0x7c] sm:$0xf]
      %v2914 = vld [vmem:[%s440] sm:$0xf]
      %v2915 = vld [vmem:[%s440 + $0x4] sm:$0xf]
      %v2916 = vld [vmem:[%s440 + $0x8] sm:$0xf]
      %v2917 = vld [vmem:[%s440 + $0xc] sm:$0xf]
      %v2918 = vld [vmem:[%s440 + $0x10] sm:$0xf]
      %v2919 = vld [vmem:[%s440 + $0x14] sm:$0xf]
      %v2920 = vld [vmem:[%s440 + $0x18] sm:$0xf]
      %v2921 = vld [vmem:[%s440 + $0x1c] sm:$0xf]
      %s2922 = scalar_lea.vmem %s458, 192
      %v2923 = vld [vmem:[%s2922] sm:$0xf]
      %v2924 = vld [vmem:[%s2922 + $0x4] sm:$0xf]
      %v2925 = vld [vmem:[%s2922 + $0x8] sm:$0xf]
      %v2926 = vld [vmem:[%s2922 + $0xc] sm:$0xf]
      %v2927 = vld [vmem:[%s2922 + $0x10] sm:$0xf]
      %v2928 = vld [vmem:[%s2922 + $0x14] sm:$0xf]
      %v2929 = vld [vmem:[%s2922 + $0x18] sm:$0xf]
      %v2930 = vld [vmem:[%s2922 + $0x1c] sm:$0xf]
      %v2931 = vld [vmem:[%s2922 + $0x20] sm:$0xf]
      %v2932 = vld [vmem:[%s2922 + $0x24] sm:$0xf]
      %v2933 = vld [vmem:[%s2922 + $0x28] sm:$0xf]
      %v2934 = vld [vmem:[%s2922 + $0x2c] sm:$0xf]
      %v2935 = vld [vmem:[%s2922 + $0x30] sm:$0xf]
      %v2936 = vld [vmem:[%s2922 + $0x34] sm:$0xf]
      %v2937 = vld [vmem:[%s2922 + $0x38] sm:$0xf]
      %v2938 = vld [vmem:[%s2922 + $0x3c] sm:$0xf]
      %v2939 = vld [vmem:[%s2922 + $0x40] sm:$0xf]
      %v2940 = vld [vmem:[%s2922 + $0x44] sm:$0xf]
      %v2941 = vld [vmem:[%s2922 + $0x48] sm:$0xf]
      %v2942 = vld [vmem:[%s2922 + $0x4c] sm:$0xf]
      %v2943 = vld [vmem:[%s2922 + $0x50] sm:$0xf]
      %v2944 = vld [vmem:[%s2922 + $0x54] sm:$0xf]
      %v2945 = vld [vmem:[%s2922 + $0x58] sm:$0xf]
      %v2946 = vld [vmem:[%s2922 + $0x5c] sm:$0xf]
      %v2947 = vld [vmem:[%s2922 + $0x60] sm:$0xf]
      %v2948 = vld [vmem:[%s2922 + $0x64] sm:$0xf]
      %v2949 = vld [vmem:[%s2922 + $0x68] sm:$0xf]
      %v2950 = vld [vmem:[%s2922 + $0x6c] sm:$0xf]
      %v2951 = vld [vmem:[%s2922 + $0x70] sm:$0xf]
      %v2952 = vld [vmem:[%s2922 + $0x74] sm:$0xf]
      %v2953 = vld [vmem:[%s2922 + $0x78] sm:$0xf]
      %v2954 = vld [vmem:[%s2922 + $0x7c] sm:$0xf]
      %v2955 = vld [vmem:[%s2922 + $0x80] sm:$0xf]
      %v2956 = vld [vmem:[%s2922 + $0x84] sm:$0xf]
      %v2957 = vld [vmem:[%s2922 + $0x88] sm:$0xf]
      %v2958 = vld [vmem:[%s2922 + $0x8c] sm:$0xf]
      %v2959 = vld [vmem:[%s2922 + $0x90] sm:$0xf]
      %v2960 = vld [vmem:[%s2922 + $0x94] sm:$0xf]
      %v2961 = vld [vmem:[%s2922 + $0x98] sm:$0xf]
      %v2962 = vld [vmem:[%s2922 + $0x9c] sm:$0xf]
      %v2963 = vld [vmem:[%s2922 + $0xa0] sm:$0xf]
      %v2964 = vld [vmem:[%s2922 + $0xa4] sm:$0xf]
      %v2965 = vld [vmem:[%s2922 + $0xa8] sm:$0xf]
      %v2966 = vld [vmem:[%s2922 + $0xac] sm:$0xf]
      %v2967 = vld [vmem:[%s2922 + $0xb0] sm:$0xf]
      %v2968 = vld [vmem:[%s2922 + $0xb4] sm:$0xf]
      %v2969 = vld [vmem:[%s2922 + $0xb8] sm:$0xf]
      %v2970 = vld [vmem:[%s2922 + $0xbc] sm:$0xf]
      %v2971 = vld [vmem:[%s476] sm:$0xf]
      %v2972 = vld [vmem:[%s476 + $0x4] sm:$0xf]
      %v2973 = vld [vmem:[%s476 + $0x8] sm:$0xf]
      %v2974 = vld [vmem:[%s476 + $0xc] sm:$0xf]
      %v2975 = vld [vmem:[%s476 + $0x10] sm:$0xf]
      %v2976 = vld [vmem:[%s476 + $0x14] sm:$0xf]
      %v2977 = vld [vmem:[%s476 + $0x18] sm:$0xf]
      %v2978 = vld [vmem:[%s476 + $0x1c] sm:$0xf]
      %v2979 = vld [vmem:[%s476 + $0x20] sm:$0xf]
      %v2980 = vld [vmem:[%s476 + $0x24] sm:$0xf]
      %v2981 = vld [vmem:[%s476 + $0x28] sm:$0xf]
      %v2982 = vld [vmem:[%s476 + $0x2c] sm:$0xf]
      %v3023 = vunpack.c.l.b16 %v2882
      %v3024 = vunpack.c.l.b16 %v2883
      %v3025 = vunpack.c.l.b16 %v2884
      %v3026 = vunpack.c.l.b16 %v2885
      %v3027 = vunpack.c.l.b16 %v2886
      %v3028 = vunpack.c.l.b16 %v2887
      %v3029 = vunpack.c.l.b16 %v2888
      %v3030 = vunpack.c.l.b16 %v2889
      %v3031 = vunpack.c.l.b16 %v2890
      %v3032 = vunpack.c.l.b16 %v2891
      %v3033 = vunpack.c.l.b16 %v2892
      %v3034 = vunpack.c.l.b16 %v2893
      %v3035 = vunpack.c.l.b16 %v2894
      %v3036 = vunpack.c.l.b16 %v2895
      %v3037 = vunpack.c.l.b16 %v2896
      %v3038 = vunpack.c.l.b16 %v2897
      %v3039 = vunpack.c.l.b16 %v2898
      %v3040 = vunpack.c.l.b16 %v2899
      %v3041 = vunpack.c.l.b16 %v2900
      %v3042 = vunpack.c.l.b16 %v2901
      %v3043 = vunpack.c.l.b16 %v2902
      %v3044 = vunpack.c.l.b16 %v2903
      %v3045 = vunpack.c.l.b16 %v2904
      %v3046 = vunpack.c.l.b16 %v2905
      %v3047 = vunpack.c.l.b16 %v2906
      %v3048 = vunpack.c.l.b16 %v2907
      %v3049 = vunpack.c.l.b16 %v2908
      %v3050 = vunpack.c.l.b16 %v2909
      %v3051 = vunpack.c.l.b16 %v2910
      %v3052 = vunpack.c.l.b16 %v2911
      %v3053 = vunpack.c.l.b16 %v2912
      %v3054 = vunpack.c.l.b16 %v2913
      %v3055 = vunpack.c.l.b16 %v2914
      %v3056 = vunpack.c.l.b16 %v2915
      %v3057 = vunpack.c.l.b16 %v2916
      %v3058 = vunpack.c.l.b16 %v2917
      %v3059 = vunpack.c.l.b16 %v2918
      %v3060 = vunpack.c.l.b16 %v2919
      %v3061 = vunpack.c.l.b16 %v2920
      %v3062 = vunpack.c.l.b16 %v2921
      %v3063 = vpack.c.b16 %v3024, %v3023
      %v3064 = vpack.c.b16 %v3026, %v3025
      %v3065 = vpack.c.b16 %v3028, %v3027
      %v3066 = vpack.c.b16 %v3030, %v3029
      %v3067 = vpack.c.b16 %v3032, %v3031
      %v3068 = vpack.c.b16 %v3034, %v3033
      %v3069 = vpack.c.b16 %v3036, %v3035
      %v3070 = vpack.c.b16 %v3038, %v3037
      %v3071 = vpack.c.b16 %v3040, %v3039
      %v3072 = vpack.c.b16 %v3042, %v3041
      %v3073 = vpack.c.b16 %v3044, %v3043
      %v3074 = vpack.c.b16 %v3046, %v3045
      %v3075 = vpack.c.b16 %v3048, %v3047
      %v3076 = vpack.c.b16 %v3050, %v3049
      %v3077 = vpack.c.b16 %v3052, %v3051
      %v3078 = vpack.c.b16 %v3054, %v3053
      %v3079 = vpack.c.b16 %v3056, %v3055
      %v3080 = vpack.c.b16 %v3058, %v3057
      %v3081 = vpack.c.b16 %v3060, %v3059
      %v3082 = vpack.c.b16 %v3062, %v3061
      %v3084 = vsel %vm729, %v3063, 0
      %v3087 = vsel %vm729, %v3064, 0
      %v3090 = vsel %vm729, %v3065, 0
      %v3093 = vsel %vm729, %v3066, 0
      %v3096 = vsel %vm729, %v3067, 0
      %v3099 = vsel %vm729, %v3068, 0
      %v3102 = vsel %vm729, %v3069, 0
      %v3105 = vsel %vm729, %v3070, 0
      %v3108 = vsel %vm729, %v3071, 0
      %v3111 = vsel %vm729, %v3072, 0
      %v3114 = vsel %vm729, %v3073, 0
      %v3117 = vsel %vm729, %v3074, 0
      %v3120 = vsel %vm729, %v3075, 0
      %v3123 = vsel %vm729, %v3076, 0
      %v3126 = vsel %vm729, %v3077, 0
      %v3129 = vsel %vm729, %v3078, 0
      %v3132 = vsel %vm729, %v3079, 0
      %v3135 = vsel %vm729, %v3080, 0
      %v3138 = vsel %vm729, %v3081, 0
      %v3141 = vsel %vm729, %v3082, 0
      %3143 = vmatpush.bf16.msra.mxu0 0
      %3144 = vmatpush.bf16.msra.mxu0 0
      %3145 = vmatpush.bf16.msra.mxu0 0
      %3146 = vmatpush.bf16.msra.mxu0 0
      %3147 = vmatpush.bf16.msra.mxu0 0
      %3148 = vmatpush.bf16.msra.mxu0 %v721
      %3149 = vmatpush.bf16.msra.mxu0 %v719
      %3150 = vmatpush.bf16.msra.mxu0 %v717
      %3151 = vmatmul.bf16.gmra.mxu0 %v3084
      %v3152 = vpop.f32.mrf.mxu0
      %v3153 = vadd.f32 0.0, %v3152
      %v3154 = vpop.f32.mrf.mxu0
      %v3155 = vadd.f32 0.0, %v3154
      %3156 = vmatmul.bf16.gmra.mxu0 %v3087
      %v3157 = vpop.f32.mrf.mxu0
      %v3158 = vadd.f32 0.0, %v3157
      %v3159 = vpop.f32.mrf.mxu0
      %v3160 = vadd.f32 0.0, %v3159
      %3161 = vmatmul.bf16.gmra.mxu0 %v3090
      %v3162 = vpop.f32.mrf.mxu0
      %v3163 = vadd.f32 0.0, %v3162
      %v3164 = vpop.f32.mrf.mxu0
      %v3165 = vadd.f32 0.0, %v3164
      %3166 = vmatmul.bf16.gmra.mxu0 %v3093
      %v3167 = vpop.f32.mrf.mxu0
      %v3168 = vadd.f32 0.0, %v3167
      %v3169 = vpop.f32.mrf.mxu0
      %v3170 = vadd.f32 0.0, %v3169
      %3171 = vmatmul.bf16.gmra.mxu0 %v3096
      %v3172 = vpop.f32.mrf.mxu0
      %v3173 = vadd.f32 0.0, %v3172
      %v3174 = vpop.f32.mrf.mxu0
      %v3175 = vadd.f32 0.0, %v3174
      %3176 = vmatmul.bf16.gmra.mxu0 %v3099
      %v3177 = vpop.f32.mrf.mxu0
      %v3178 = vadd.f32 0.0, %v3177
      %v3179 = vpop.f32.mrf.mxu0
      %v3180 = vadd.f32 0.0, %v3179
      %3181 = vmatmul.bf16.gmra.mxu0 %v3102
      %v3182 = vpop.f32.mrf.mxu0
      %v3183 = vadd.f32 0.0, %v3182
      %v3184 = vpop.f32.mrf.mxu0
      %v3185 = vadd.f32 0.0, %v3184
      %3186 = vmatmul.bf16.gmra.mxu0 %v3105
      %v3187 = vpop.f32.mrf.mxu0
      %v3188 = vadd.f32 0.0, %v3187
      %v3189 = vpop.f32.mrf.mxu0
      %v3190 = vadd.f32 0.0, %v3189
      %3191 = vmatmul.bf16.gmra.mxu0 %v3108
      %v3192 = vpop.f32.mrf.mxu0
      %v3193 = vadd.f32 0.0, %v3192
      %v3194 = vpop.f32.mrf.mxu0
      %v3195 = vadd.f32 0.0, %v3194
      %3196 = vmatmul.bf16.gmra.mxu0 %v3111
      %v3197 = vpop.f32.mrf.mxu0
      %v3198 = vadd.f32 0.0, %v3197
      %v3199 = vpop.f32.mrf.mxu0
      %v3200 = vadd.f32 0.0, %v3199
      %3201 = vmatmul.bf16.gmra.mxu0 %v3114
      %v3202 = vpop.f32.mrf.mxu0
      %v3203 = vadd.f32 0.0, %v3202
      %v3204 = vpop.f32.mrf.mxu0
      %v3205 = vadd.f32 0.0, %v3204
      %3206 = vmatmul.bf16.gmra.mxu0 %v3117
      %v3207 = vpop.f32.mrf.mxu0
      %v3208 = vadd.f32 0.0, %v3207
      %v3209 = vpop.f32.mrf.mxu0
      %v3210 = vadd.f32 0.0, %v3209
      %3211 = vmatmul.bf16.gmra.mxu0 %v3120
      %v3212 = vpop.f32.mrf.mxu0
      %v3213 = vadd.f32 0.0, %v3212
      %v3214 = vpop.f32.mrf.mxu0
      %v3215 = vadd.f32 0.0, %v3214
      %3216 = vmatmul.bf16.gmra.mxu0 %v3123
      %v3217 = vpop.f32.mrf.mxu0
      %v3218 = vadd.f32 0.0, %v3217
      %v3219 = vpop.f32.mrf.mxu0
      %v3220 = vadd.f32 0.0, %v3219
      %3221 = vmatmul.bf16.gmra.mxu0 %v3126
      %v3222 = vpop.f32.mrf.mxu0
      %v3223 = vadd.f32 0.0, %v3222
      %v3224 = vpop.f32.mrf.mxu0
      %v3225 = vadd.f32 0.0, %v3224
      %3226 = vmatmul.bf16.gmra.mxu0 %v3129
      %v3227 = vpop.f32.mrf.mxu0
      %v3228 = vadd.f32 0.0, %v3227
      %v3229 = vpop.f32.mrf.mxu0
      %v3230 = vadd.f32 0.0, %v3229
      %3231 = vmatmul.bf16.gmra.mxu0 %v3132
      %v3232 = vpop.f32.mrf.mxu0
      %v3233 = vadd.f32 0.0, %v3232
      %v3234 = vpop.f32.mrf.mxu0
      %v3235 = vadd.f32 0.0, %v3234
      %3236 = vmatmul.bf16.gmra.mxu0 %v3135
      %v3237 = vpop.f32.mrf.mxu0
      %v3238 = vadd.f32 0.0, %v3237
      %v3239 = vpop.f32.mrf.mxu0
      %v3240 = vadd.f32 0.0, %v3239
      %3241 = vmatmul.bf16.gmra.mxu0 %v3138
      %v3242 = vpop.f32.mrf.mxu0
      %v3243 = vpop.f32.mrf.mxu0
      %3244 = vmatmul.bf16.gmra.mxu0 %v3141
      %v3245 = vpop.f32.mrf.mxu0
      %v3246 = vpop.f32.mrf.mxu0
      %3247 = vdwg.mxu0
      %3248 = vmatpush.bf16.msra.mxu0 0
      %3249 = vmatpush.bf16.msra.mxu0 0
      %3250 = vmatpush.bf16.msra.mxu0 0
      %3251 = vmatpush.bf16.msra.mxu0 0
      %3252 = vmatpush.bf16.msra.mxu0 0
      %3253 = vmatpush.bf16.msra.mxu0 %v722
      %3254 = vmatpush.bf16.msra.mxu0 %v720
      %3255 = vmatpush.bf16.msra.mxu0 %v718
      %3256 = vmatmul.bf16.gmra.mxu0 %v3084
      %v3257 = vpop.f32.mrf.mxu0
      %v3258 = vpop.f32.mrf.mxu0
      %3259 = vmatmul.bf16.gmra.mxu0 %v3087
      %v3260 = vpop.f32.mrf.mxu0
      %v3261 = vpop.f32.mrf.mxu0
      %3262 = vmatmul.bf16.gmra.mxu0 %v3090
      %v3263 = vpop.f32.mrf.mxu0
      %v3264 = vadd.f32 0.0, %v3263
      %v3265 = vpop.f32.mrf.mxu0
      %v3266 = vadd.f32 0.0, %v3265
      %3267 = vmatmul.bf16.gmra.mxu0 %v3093
      %v3268 = vpop.f32.mrf.mxu0
      %v3269 = vadd.f32 0.0, %v3268
      %v3270 = vpop.f32.mrf.mxu0
      %v3271 = vadd.f32 0.0, %v3270
      %3272 = vmatmul.bf16.gmra.mxu0 %v3096
      %v3273 = vpop.f32.mrf.mxu0
      %v3274 = vadd.f32 0.0, %v3273
      %v3275 = vpop.f32.mrf.mxu0
      %v3276 = vadd.f32 0.0, %v3275
      %3277 = vmatmul.bf16.gmra.mxu0 %v3099
      %v3278 = vpop.f32.mrf.mxu0
      %v3279 = vadd.f32 0.0, %v3278
      %v3280 = vpop.f32.mrf.mxu0
      %v3281 = vadd.f32 0.0, %v3280
      %3282 = vmatmul.bf16.gmra.mxu0 %v3102
      %v3283 = vpop.f32.mrf.mxu0
      %v3284 = vadd.f32 0.0, %v3283
      %v3285 = vpop.f32.mrf.mxu0
      %v3286 = vadd.f32 0.0, %v3285
      %3287 = vmatmul.bf16.gmra.mxu0 %v3105
      %v3288 = vpop.f32.mrf.mxu0
      %v3289 = vadd.f32 0.0, %v3288
      %v3290 = vpop.f32.mrf.mxu0
      %v3291 = vadd.f32 0.0, %v3290
      %3292 = vmatmul.bf16.gmra.mxu0 %v3108
      %v3293 = vpop.f32.mrf.mxu0
      %v3294 = vadd.f32 0.0, %v3293
      %v3295 = vpop.f32.mrf.mxu0
      %v3296 = vadd.f32 0.0, %v3295
      %3297 = vmatmul.bf16.gmra.mxu0 %v3111
      %v3298 = vpop.f32.mrf.mxu0
      %v3299 = vadd.f32 0.0, %v3298
      %v3300 = vpop.f32.mrf.mxu0
      %v3301 = vadd.f32 0.0, %v3300
      %3302 = vmatmul.bf16.gmra.mxu0 %v3114
      %v3303 = vpop.f32.mrf.mxu0
      %v3304 = vadd.f32 0.0, %v3303
      %v3305 = vpop.f32.mrf.mxu0
      %v3306 = vadd.f32 0.0, %v3305
      %3307 = vmatmul.bf16.gmra.mxu0 %v3117
      %v3308 = vpop.f32.mrf.mxu0
      %v3309 = vadd.f32 0.0, %v3308
      %v3310 = vpop.f32.mrf.mxu0
      %v3311 = vadd.f32 0.0, %v3310
      %3312 = vmatmul.bf16.gmra.mxu0 %v3120
      %v3313 = vpop.f32.mrf.mxu0
      %v3314 = vadd.f32 0.0, %v3313
      %v3315 = vpop.f32.mrf.mxu0
      %v3316 = vadd.f32 0.0, %v3315
      %3317 = vmatmul.bf16.gmra.mxu0 %v3123
      %v3318 = vpop.f32.mrf.mxu0
      %v3319 = vadd.f32 0.0, %v3318
      %v3320 = vpop.f32.mrf.mxu0
      %v3321 = vadd.f32 0.0, %v3320
      %3322 = vmatmul.bf16.gmra.mxu0 %v3126
      %v3323 = vpop.f32.mrf.mxu0
      %v3324 = vadd.f32 0.0, %v3323
      %v3325 = vpop.f32.mrf.mxu0
      %v3326 = vadd.f32 0.0, %v3325
      %3327 = vmatmul.bf16.gmra.mxu0 %v3129
      %v3328 = vpop.f32.mrf.mxu0
      %v3329 = vadd.f32 0.0, %v3328
      %v3330 = vpop.f32.mrf.mxu0
      %v3331 = vadd.f32 0.0, %v3330
      %3332 = vmatmul.bf16.gmra.mxu0 %v3132
      %v3333 = vpop.f32.mrf.mxu0
      %v3334 = vadd.f32 0.0, %v3333
      %v3335 = vpop.f32.mrf.mxu0
      %v3336 = vadd.f32 0.0, %v3335
      %3337 = vmatmul.bf16.gmra.mxu0 %v3135
      %v3338 = vpop.f32.mrf.mxu0
      %v3339 = vadd.f32 0.0, %v3338
      %v3340 = vpop.f32.mrf.mxu0
      %v3341 = vadd.f32 0.0, %v3340
      %3342 = vmatmul.bf16.gmra.mxu0 %v3138
      %v3343 = vpop.f32.mrf.mxu0
      %v3344 = vadd.f32 0.0, %v3343
      %v3345 = vpop.f32.mrf.mxu0
      %v3346 = vadd.f32 0.0, %v3345
      %3347 = vmatmul.bf16.gmra.mxu0 %v3141
      %v3348 = vpop.f32.mrf.mxu0
      %v3349 = vadd.f32 0.0, %v3348
      %v3350 = vpop.f32.mrf.mxu0
      %v3351 = vadd.f32 0.0, %v3350
      %3352 = vdwg.mxu0
      %3387 = vrot.lane.b32.xlu0 %v3158, 64
      %v3388 = vpop.permute.xlu0 %3387
      %3389 = vrot.lane.b32.xlu0 %v3160, 64
      %v3390 = vpop.permute.xlu0 %3389
      %3391 = vrot.lane.b32.xlu0 %v3163, 64
      %v3392 = vpop.permute.xlu0 %3391
      %3393 = vrot.lane.b32.xlu0 %v3165, 64
      %v3394 = vpop.permute.xlu0 %3393
      %3395 = vrot.lane.b32.xlu0 %v3168, 64
      %v3396 = vpop.permute.xlu0 %3395
      %3397 = vrot.lane.b32.xlu0 %v3170, 64
      %v3398 = vpop.permute.xlu0 %3397
      %3399 = vrot.lane.b32.xlu0 %v3173, 64
      %v3400 = vpop.permute.xlu0 %3399
      %3401 = vrot.lane.b32.xlu0 %v3175, 64
      %v3402 = vpop.permute.xlu0 %3401
      %3403 = vrot.lane.b32.xlu0 %v3178, 64
      %v3404 = vpop.permute.xlu0 %3403
      %3405 = vrot.lane.b32.xlu0 %v3180, 64
      %v3406 = vpop.permute.xlu0 %3405
      %3407 = vrot.lane.b32.xlu0 %v3183, 64
      %v3408 = vpop.permute.xlu0 %3407
      %3409 = vrot.lane.b32.xlu0 %v3185, 64
      %v3410 = vpop.permute.xlu0 %3409
      %3411 = vrot.lane.b32.xlu0 %v3188, 64
      %v3412 = vpop.permute.xlu0 %3411
      %3413 = vrot.lane.b32.xlu0 %v3190, 64
      %v3414 = vpop.permute.xlu0 %3413
      %3415 = vrot.lane.b32.xlu0 %v3193, 64
      %v3416 = vpop.permute.xlu0 %3415
      %3417 = vrot.lane.b32.xlu0 %v3195, 64
      %v3418 = vpop.permute.xlu0 %3417
      %3419 = vrot.lane.b32.xlu0 %v3198, 64
      %v3420 = vpop.permute.xlu0 %3419
      %3421 = vrot.lane.b32.xlu0 %v3200, 64
      %v3422 = vpop.permute.xlu0 %3421
      %3423 = vrot.lane.b32.xlu0 %v3203, 64
      %v3424 = vpop.permute.xlu0 %3423
      %3425 = vrot.lane.b32.xlu0 %v3205, 64
      %v3426 = vpop.permute.xlu0 %3425
      %3427 = vrot.lane.b32.xlu0 %v3208, 64
      %v3428 = vpop.permute.xlu0 %3427
      %3429 = vrot.lane.b32.xlu0 %v3210, 64
      %v3430 = vpop.permute.xlu0 %3429
      %3431 = vrot.lane.b32.xlu0 %v3213, 64
      %v3432 = vpop.permute.xlu0 %3431
      %3433 = vrot.lane.b32.xlu0 %v3215, 64
      %v3434 = vpop.permute.xlu0 %3433
      %3435 = vrot.lane.b32.xlu0 %v3218, 64
      %v3436 = vpop.permute.xlu0 %3435
      %3437 = vrot.lane.b32.xlu0 %v3220, 64
      %v3438 = vpop.permute.xlu0 %3437
      %3439 = vrot.lane.b32.xlu0 %v3223, 64
      %v3440 = vpop.permute.xlu0 %3439
      %3441 = vrot.lane.b32.xlu0 %v3225, 64
      %v3442 = vpop.permute.xlu0 %3441
      %3443 = vrot.lane.b32.xlu0 %v3228, 64
      %v3444 = vpop.permute.xlu0 %3443
      %3445 = vrot.lane.b32.xlu0 %v3230, 64
      %v3446 = vpop.permute.xlu0 %3445
      %3447 = vrot.lane.b32.xlu0 %v3233, 64
      %v3448 = vpop.permute.xlu0 %3447
      %3449 = vrot.lane.b32.xlu0 %v3235, 64
      %v3450 = vpop.permute.xlu0 %3449
      %3451 = vrot.lane.b32.xlu0 %v3238, 64
      %v3452 = vpop.permute.xlu0 %3451
      %3453 = vrot.lane.b32.xlu0 %v3240, 64
      %v3454 = vpop.permute.xlu0 %3453
      %v3489 = vadd.f32 %v3153, %v3388
      %v3490 = vadd.f32 %v3155, %v3390
      %v3491 = vadd.f32 %v3158, %v3392
      %v3492 = vadd.f32 %v3160, %v3394
      %v3493 = vadd.f32 %v3163, %v3396
      %v3494 = vadd.f32 %v3165, %v3398
      %v3495 = vadd.f32 %v3168, %v3400
      %v3496 = vadd.f32 %v3170, %v3402
      %v3497 = vadd.f32 %v3173, %v3404
      %v3498 = vadd.f32 %v3175, %v3406
      %v3499 = vadd.f32 %v3178, %v3408
      %v3500 = vadd.f32 %v3180, %v3410
      %v3501 = vadd.f32 %v3183, %v3412
      %v3502 = vadd.f32 %v3185, %v3414
      %v3503 = vadd.f32 %v3188, %v3416
      %v3504 = vadd.f32 %v3190, %v3418
      %v3505 = vadd.f32 %v3193, %v3420
      %v3506 = vadd.f32 %v3195, %v3422
      %v3507 = vadd.f32 %v3198, %v3424
      %v3508 = vadd.f32 %v3200, %v3426
      %v3509 = vadd.f32 %v3203, %v3428
      %v3510 = vadd.f32 %v3205, %v3430
      %v3511 = vadd.f32 %v3208, %v3432
      %v3512 = vadd.f32 %v3210, %v3434
      %v3513 = vadd.f32 %v3213, %v3436
      %v3514 = vadd.f32 %v3215, %v3438
      %v3515 = vadd.f32 %v3218, %v3440
      %v3516 = vadd.f32 %v3220, %v3442
      %v3517 = vadd.f32 %v3223, %v3444
      %v3518 = vadd.f32 %v3225, %v3446
      %v3519 = vadd.f32 %v3228, %v3448
      %v3520 = vadd.f32 %v3230, %v3450
      %v3521 = vadd.f32 %v3233, %v3452
      %v3522 = vadd.f32 %v3235, %v3454
      %v3523 = vadd.f32 %v3489, %v3264
      %v3524 = vadd.f32 %v3490, %v3266
      %v3525 = vadd.f32 %v3491, %v3269
      %v3526 = vadd.f32 %v3492, %v3271
      %v3527 = vadd.f32 %v3493, %v3274
      %v3528 = vadd.f32 %v3494, %v3276
      %v3529 = vadd.f32 %v3495, %v3279
      %v3530 = vadd.f32 %v3496, %v3281
      %v3531 = vadd.f32 %v3497, %v3284
      %v3532 = vadd.f32 %v3498, %v3286
      %v3533 = vadd.f32 %v3499, %v3289
      %v3534 = vadd.f32 %v3500, %v3291
      %v3535 = vadd.f32 %v3501, %v3294
      %v3536 = vadd.f32 %v3502, %v3296
      %v3537 = vadd.f32 %v3503, %v3299
      %v3538 = vadd.f32 %v3504, %v3301
      %v3539 = vadd.f32 %v3505, %v3304
      %v3540 = vadd.f32 %v3506, %v3306
      %v3541 = vadd.f32 %v3507, %v3309
      %v3542 = vadd.f32 %v3508, %v3311
      %v3543 = vadd.f32 %v3509, %v3314
      %v3544 = vadd.f32 %v3510, %v3316
      %v3545 = vadd.f32 %v3511, %v3319
      %v3546 = vadd.f32 %v3512, %v3321
      %v3547 = vadd.f32 %v3513, %v3324
      %v3548 = vadd.f32 %v3514, %v3326
      %v3549 = vadd.f32 %v3515, %v3329
      %v3550 = vadd.f32 %v3516, %v3331
      %v3551 = vadd.f32 %v3517, %v3334
      %v3552 = vadd.f32 %v3518, %v3336
      %v3553 = vadd.f32 %v3519, %v3339
      %v3554 = vadd.f32 %v3520, %v3341
      %v3555 = vadd.f32 %v3521, %v3344
      %v3556 = vadd.f32 %v3522, %v3346
      %3591 = vrot.lane.b32.xlu0 %v3269, 64
      %v3592 = vpop.permute.xlu0 %3591
      %3593 = vrot.lane.b32.xlu0 %v3271, 64
      %v3594 = vpop.permute.xlu0 %3593
      %3595 = vrot.lane.b32.xlu0 %v3274, 64
      %v3596 = vpop.permute.xlu0 %3595
      %3597 = vrot.lane.b32.xlu0 %v3276, 64
      %v3598 = vpop.permute.xlu0 %3597
      %3599 = vrot.lane.b32.xlu0 %v3279, 64
      %v3600 = vpop.permute.xlu0 %3599
      %3601 = vrot.lane.b32.xlu0 %v3281, 64
      %v3602 = vpop.permute.xlu0 %3601
      %3603 = vrot.lane.b32.xlu0 %v3284, 64
      %v3604 = vpop.permute.xlu0 %3603
      %3605 = vrot.lane.b32.xlu0 %v3286, 64
      %v3606 = vpop.permute.xlu0 %3605
      %3607 = vrot.lane.b32.xlu0 %v3289, 64
      %v3608 = vpop.permute.xlu0 %3607
      %3609 = vrot.lane.b32.xlu0 %v3291, 64
      %v3610 = vpop.permute.xlu0 %3609
      %3611 = vrot.lane.b32.xlu0 %v3294, 64
      %v3612 = vpop.permute.xlu0 %3611
      %3613 = vrot.lane.b32.xlu0 %v3296, 64
      %v3614 = vpop.permute.xlu0 %3613
      %3615 = vrot.lane.b32.xlu0 %v3299, 64
      %v3616 = vpop.permute.xlu0 %3615
      %3617 = vrot.lane.b32.xlu0 %v3301, 64
      %v3618 = vpop.permute.xlu0 %3617
      %3619 = vrot.lane.b32.xlu0 %v3304, 64
      %v3620 = vpop.permute.xlu0 %3619
      %3621 = vrot.lane.b32.xlu0 %v3306, 64
      %v3622 = vpop.permute.xlu0 %3621
      %3623 = vrot.lane.b32.xlu0 %v3309, 64
      %v3624 = vpop.permute.xlu0 %3623
      %3625 = vrot.lane.b32.xlu0 %v3311, 64
      %v3626 = vpop.permute.xlu0 %3625
      %3627 = vrot.lane.b32.xlu0 %v3314, 64
      %v3628 = vpop.permute.xlu0 %3627
      %3629 = vrot.lane.b32.xlu0 %v3316, 64
      %v3630 = vpop.permute.xlu0 %3629
      %3631 = vrot.lane.b32.xlu0 %v3319, 64
      %v3632 = vpop.permute.xlu0 %3631
      %3633 = vrot.lane.b32.xlu0 %v3321, 64
      %v3634 = vpop.permute.xlu0 %3633
      %3635 = vrot.lane.b32.xlu0 %v3324, 64
      %v3636 = vpop.permute.xlu0 %3635
      %3637 = vrot.lane.b32.xlu0 %v3326, 64
      %v3638 = vpop.permute.xlu0 %3637
      %3639 = vrot.lane.b32.xlu0 %v3329, 64
      %v3640 = vpop.permute.xlu0 %3639
      %3641 = vrot.lane.b32.xlu0 %v3331, 64
      %v3642 = vpop.permute.xlu0 %3641
      %3643 = vrot.lane.b32.xlu0 %v3334, 64
      %v3644 = vpop.permute.xlu0 %3643
      %3645 = vrot.lane.b32.xlu0 %v3336, 64
      %v3646 = vpop.permute.xlu0 %3645
      %3647 = vrot.lane.b32.xlu0 %v3339, 64
      %v3648 = vpop.permute.xlu0 %3647
      %3649 = vrot.lane.b32.xlu0 %v3341, 64
      %v3650 = vpop.permute.xlu0 %3649
      %3651 = vrot.lane.b32.xlu0 %v3344, 64
      %v3652 = vpop.permute.xlu0 %3651
      %3653 = vrot.lane.b32.xlu0 %v3346, 64
      %v3654 = vpop.permute.xlu0 %3653
      %3655 = vrot.lane.b32.xlu0 %v3349, 64
      %v3656 = vpop.permute.xlu0 %3655
      %3657 = vrot.lane.b32.xlu0 %v3351, 64
      %v3658 = vpop.permute.xlu0 %3657
      %v3693 = vadd.f32 %v3523, %v3592
      %v3694 = vadd.f32 %v3524, %v3594
      %v3695 = vadd.f32 %v3525, %v3596
      %v3696 = vadd.f32 %v3526, %v3598
      %v3697 = vadd.f32 %v3527, %v3600
      %v3698 = vadd.f32 %v3528, %v3602
      %v3699 = vadd.f32 %v3529, %v3604
      %v3700 = vadd.f32 %v3530, %v3606
      %v3701 = vadd.f32 %v3531, %v3608
      %v3702 = vadd.f32 %v3532, %v3610
      %v3703 = vadd.f32 %v3533, %v3612
      %v3704 = vadd.f32 %v3534, %v3614
      %v3705 = vadd.f32 %v3535, %v3616
      %v3706 = vadd.f32 %v3536, %v3618
      %v3707 = vadd.f32 %v3537, %v3620
      %v3708 = vadd.f32 %v3538, %v3622
      %v3709 = vadd.f32 %v3539, %v3624
      %v3710 = vadd.f32 %v3540, %v3626
      %v3711 = vadd.f32 %v3541, %v3628
      %v3712 = vadd.f32 %v3542, %v3630
      %v3713 = vadd.f32 %v3543, %v3632
      %v3714 = vadd.f32 %v3544, %v3634
      %v3715 = vadd.f32 %v3545, %v3636
      %v3716 = vadd.f32 %v3546, %v3638
      %v3717 = vadd.f32 %v3547, %v3640
      %v3718 = vadd.f32 %v3548, %v3642
      %v3719 = vadd.f32 %v3549, %v3644
      %v3720 = vadd.f32 %v3550, %v3646
      %v3721 = vadd.f32 %v3551, %v3648
      %v3722 = vadd.f32 %v3552, %v3650
      %v3723 = vadd.f32 %v3553, %v3652
      %v3724 = vadd.f32 %v3554, %v3654
      %v3725 = vadd.f32 %v3555, %v3656
      %v3726 = vadd.f32 %v3556, %v3658
      %v3787 = vunpack.c.l.b16 %v2923
      %v3788 = vunpack.c.l.b16 %v2924
      %v3789 = vunpack.c.l.b16 %v2925
      %v3790 = vunpack.c.l.b16 %v2926
      %v3791 = vunpack.c.l.b16 %v2927
      %v3792 = vunpack.c.l.b16 %v2928
      %v3793 = vunpack.c.l.b16 %v2929
      %v3794 = vunpack.c.l.b16 %v2930
      %v3795 = vunpack.c.l.b16 %v2931
      %v3796 = vunpack.c.l.b16 %v2932
      %v3797 = vunpack.c.l.b16 %v2933
      %v3798 = vunpack.c.l.b16 %v2934
      %v3799 = vunpack.c.l.b16 %v2935
      %v3800 = vunpack.c.l.b16 %v2936
      %v3801 = vunpack.c.l.b16 %v2937
      %v3802 = vunpack.c.l.b16 %v2938
      %v3803 = vunpack.c.l.b16 %v2939
      %v3804 = vunpack.c.l.b16 %v2940
      %v3805 = vunpack.c.l.b16 %v2941
      %v3806 = vunpack.c.l.b16 %v2942
      %v3807 = vunpack.c.l.b16 %v2943
      %v3808 = vunpack.c.l.b16 %v2944
      %v3809 = vunpack.c.l.b16 %v2945
      %v3810 = vunpack.c.l.b16 %v2946
      %v3811 = vunpack.c.l.b16 %v2947
      %v3812 = vunpack.c.l.b16 %v2948
      %v3813 = vunpack.c.l.b16 %v2949
      %v3814 = vunpack.c.l.b16 %v2950
      %v3815 = vunpack.c.l.b16 %v2951
      %v3816 = vunpack.c.l.b16 %v2952
      %v3817 = vunpack.c.l.b16 %v2953
      %v3818 = vunpack.c.l.b16 %v2954
      %v3819 = vunpack.c.l.b16 %v2955
      %v3820 = vunpack.c.l.b16 %v2956
      %v3821 = vunpack.c.l.b16 %v2957
      %v3822 = vunpack.c.l.b16 %v2958
      %v3823 = vunpack.c.l.b16 %v2959
      %v3824 = vunpack.c.l.b16 %v2960
      %v3825 = vunpack.c.l.b16 %v2961
      %v3826 = vunpack.c.l.b16 %v2962
      %v3827 = vunpack.c.l.b16 %v2963
      %v3828 = vunpack.c.l.b16 %v2964
      %v3829 = vunpack.c.l.b16 %v2965
      %v3830 = vunpack.c.l.b16 %v2966
      %v3831 = vunpack.c.l.b16 %v2967
      %v3832 = vunpack.c.l.b16 %v2968
      %v3833 = vunpack.c.l.b16 %v2969
      %v3834 = vunpack.c.l.b16 %v2970
      %v3835 = vunpack.c.l.b16 %v2971
      %v3836 = vunpack.c.l.b16 %v2972
      %v3837 = vunpack.c.l.b16 %v2973
      %v3838 = vunpack.c.l.b16 %v2974
      %v3839 = vunpack.c.l.b16 %v2975
      %v3840 = vunpack.c.l.b16 %v2976
      %v3841 = vunpack.c.l.b16 %v2977
      %v3842 = vunpack.c.l.b16 %v2978
      %v3843 = vunpack.c.l.b16 %v2979
      %v3844 = vunpack.c.l.b16 %v2980
      %v3845 = vunpack.c.l.b16 %v2981
      %v3846 = vunpack.c.l.b16 %v2982
      %v3847 = vpack.c.b16 %v3788, %v3787
      %v3848 = vpack.c.b16 %v3790, %v3789
      %v3849 = vpack.c.b16 %v3792, %v3791
      %v3850 = vpack.c.b16 %v3794, %v3793
      %v3851 = vpack.c.b16 %v3796, %v3795
      %v3852 = vpack.c.b16 %v3798, %v3797
      %v3853 = vpack.c.b16 %v3800, %v3799
      %v3854 = vpack.c.b16 %v3802, %v3801
      %v3855 = vpack.c.b16 %v3804, %v3803
      %v3856 = vpack.c.b16 %v3806, %v3805
      %v3857 = vpack.c.b16 %v3808, %v3807
      %v3858 = vpack.c.b16 %v3810, %v3809
      %v3859 = vpack.c.b16 %v3812, %v3811
      %v3860 = vpack.c.b16 %v3814, %v3813
      %v3861 = vpack.c.b16 %v3816, %v3815
      %v3862 = vpack.c.b16 %v3818, %v3817
      %v3863 = vpack.c.b16 %v3820, %v3819
      %v3864 = vpack.c.b16 %v3822, %v3821
      %v3865 = vpack.c.b16 %v3824, %v3823
      %v3866 = vpack.c.b16 %v3826, %v3825
      %v3867 = vpack.c.b16 %v3828, %v3827
      %v3868 = vpack.c.b16 %v3830, %v3829
      %v3869 = vpack.c.b16 %v3832, %v3831
      %v3870 = vpack.c.b16 %v3834, %v3833
      %v3871 = vpack.c.b16 %v3836, %v3835
      %v3872 = vpack.c.b16 %v3838, %v3837
      %v3873 = vpack.c.b16 %v3840, %v3839
      %v3874 = vpack.c.b16 %v3842, %v3841
      %v3875 = vpack.c.b16 %v3844, %v3843
      %v3876 = vpack.c.b16 %v3846, %v3845
      %v3878 = vsel %vm729, %v3847, 0
      %v3881 = vsel %vm729, %v3848, 0
      %v3884 = vsel %vm729, %v3849, 0
      %v3887 = vsel %vm729, %v3850, 0
      %v3890 = vsel %vm729, %v3851, 0
      %v3893 = vsel %vm729, %v3852, 0
      %v3896 = vsel %vm729, %v3853, 0
      %v3899 = vsel %vm729, %v3854, 0
      %v3902 = vsel %vm729, %v3855, 0
      %v3905 = vsel %vm729, %v3856, 0
      %v3908 = vsel %vm729, %v3857, 0
      %v3911 = vsel %vm729, %v3858, 0
      %v3914 = vsel %vm729, %v3859, 0
      %v3917 = vsel %vm729, %v3860, 0
      %v3920 = vsel %vm729, %v3861, 0
      %v3923 = vsel %vm729, %v3862, 0
      %v3926 = vsel %vm729, %v3863, 0
      %v3929 = vsel %vm729, %v3864, 0
      %v3932 = vsel %vm729, %v3865, 0
      %v3935 = vsel %vm729, %v3866, 0
      %v3938 = vsel %vm729, %v3867, 0
      %v3941 = vsel %vm729, %v3868, 0
      %v3944 = vsel %vm729, %v3869, 0
      %v3947 = vsel %vm729, %v3870, 0
      %v3950 = vsel %vm729, %v3871, 0
      %v3953 = vsel %vm729, %v3872, 0
      %v3956 = vsel %vm729, %v3873, 0
      %v3959 = vsel %vm729, %v3874, 0
      %v3962 = vsel %vm729, %v3875, 0
      %v3965 = vsel %vm729, %v3876, 0
      %3967 = vmatpush.bf16.msra.mxu0 0
      %3968 = vmatpush.bf16.msra.mxu0 0
      %3969 = vmatpush.bf16.msra.mxu0 0
      %3970 = vmatpush.bf16.msra.mxu0 0
      %3971 = vmatpush.bf16.msra.mxu0 0
      %3972 = vmatpush.bf16.msra.mxu0 %v721
      %3973 = vmatpush.bf16.msra.mxu0 %v719
      %3974 = vmatpush.bf16.msra.mxu0 %v717
      %3975 = vmatmul.bf16.gmra.mxu0 %v3878
      %v3976 = vpop.f32.mrf.mxu0
      %v3977 = vadd.f32 0.0, %v3976
      %v3978 = vpop.f32.mrf.mxu0
      %v3979 = vadd.f32 0.0, %v3978
      %3980 = vmatmul.bf16.gmra.mxu0 %v3881
      %v3981 = vpop.f32.mrf.mxu0
      %v3982 = vadd.f32 0.0, %v3981
      %v3983 = vpop.f32.mrf.mxu0
      %v3984 = vadd.f32 0.0, %v3983
      %3985 = vmatmul.bf16.gmra.mxu0 %v3884
      %v3986 = vpop.f32.mrf.mxu0
      %v3987 = vadd.f32 0.0, %v3986
      %v3988 = vpop.f32.mrf.mxu0
      %v3989 = vadd.f32 0.0, %v3988
      %3990 = vmatmul.bf16.gmra.mxu0 %v3887
      %v3991 = vpop.f32.mrf.mxu0
      %v3992 = vadd.f32 0.0, %v3991
      %v3993 = vpop.f32.mrf.mxu0
      %v3994 = vadd.f32 0.0, %v3993
      %3995 = vmatmul.bf16.gmra.mxu0 %v3890
      %v3996 = vpop.f32.mrf.mxu0
      %v3997 = vadd.f32 0.0, %v3996
      %v3998 = vpop.f32.mrf.mxu0
      %v3999 = vadd.f32 0.0, %v3998
      %4000 = vmatmul.bf16.gmra.mxu0 %v3893
      %v4001 = vpop.f32.mrf.mxu0
      %v4002 = vadd.f32 0.0, %v4001
      %v4003 = vpop.f32.mrf.mxu0
      %v4004 = vadd.f32 0.0, %v4003
      %4005 = vmatmul.bf16.gmra.mxu0 %v3896
      %v4006 = vpop.f32.mrf.mxu0
      %v4007 = vadd.f32 0.0, %v4006
      %v4008 = vpop.f32.mrf.mxu0
      %v4009 = vadd.f32 0.0, %v4008
      %4010 = vmatmul.bf16.gmra.mxu0 %v3899
      %v4011 = vpop.f32.mrf.mxu0
      %v4012 = vadd.f32 0.0, %v4011
      %v4013 = vpop.f32.mrf.mxu0
      %v4014 = vadd.f32 0.0, %v4013
      %4015 = vmatmul.bf16.gmra.mxu0 %v3902
      %v4016 = vpop.f32.mrf.mxu0
      %v4017 = vadd.f32 0.0, %v4016
      %v4018 = vpop.f32.mrf.mxu0
      %v4019 = vadd.f32 0.0, %v4018
      %4020 = vmatmul.bf16.gmra.mxu0 %v3905
      %v4021 = vpop.f32.mrf.mxu0
      %v4022 = vadd.f32 0.0, %v4021
      %v4023 = vpop.f32.mrf.mxu0
      %v4024 = vadd.f32 0.0, %v4023
      %4025 = vmatmul.bf16.gmra.mxu0 %v3908
      %v4026 = vpop.f32.mrf.mxu0
      %v4027 = vadd.f32 0.0, %v4026
      %v4028 = vpop.f32.mrf.mxu0
      %v4029 = vadd.f32 0.0, %v4028
      %4030 = vmatmul.bf16.gmra.mxu0 %v3911
      %v4031 = vpop.f32.mrf.mxu0
      %v4032 = vadd.f32 0.0, %v4031
      %v4033 = vpop.f32.mrf.mxu0
      %v4034 = vadd.f32 0.0, %v4033
      %4035 = vmatmul.bf16.gmra.mxu0 %v3914
      %v4036 = vpop.f32.mrf.mxu0
      %v4037 = vadd.f32 0.0, %v4036
      %v4038 = vpop.f32.mrf.mxu0
      %v4039 = vadd.f32 0.0, %v4038
      %4040 = vmatmul.bf16.gmra.mxu0 %v3917
      %v4041 = vpop.f32.mrf.mxu0
      %v4042 = vadd.f32 0.0, %v4041
      %v4043 = vpop.f32.mrf.mxu0
      %v4044 = vadd.f32 0.0, %v4043
      %4045 = vmatmul.bf16.gmra.mxu0 %v3920
      %v4046 = vpop.f32.mrf.mxu0
      %v4047 = vadd.f32 0.0, %v4046
      %v4048 = vpop.f32.mrf.mxu0
      %v4049 = vadd.f32 0.0, %v4048
      %4050 = vmatmul.bf16.gmra.mxu0 %v3923
      %v4051 = vpop.f32.mrf.mxu0
      %v4052 = vadd.f32 0.0, %v4051
      %v4053 = vpop.f32.mrf.mxu0
      %v4054 = vadd.f32 0.0, %v4053
      %4055 = vmatmul.bf16.gmra.mxu0 %v3926
      %v4056 = vpop.f32.mrf.mxu0
      %v4057 = vadd.f32 0.0, %v4056
      %v4058 = vpop.f32.mrf.mxu0
      %v4059 = vadd.f32 0.0, %v4058
      %4060 = vmatmul.bf16.gmra.mxu0 %v3929
      %v4061 = vpop.f32.mrf.mxu0
      %v4062 = vadd.f32 0.0, %v4061
      %v4063 = vpop.f32.mrf.mxu0
      %v4064 = vadd.f32 0.0, %v4063
      %4065 = vmatmul.bf16.gmra.mxu0 %v3932
      %v4066 = vpop.f32.mrf.mxu0
      %v4067 = vadd.f32 0.0, %v4066
      %v4068 = vpop.f32.mrf.mxu0
      %v4069 = vadd.f32 0.0, %v4068
      %4070 = vmatmul.bf16.gmra.mxu0 %v3935
      %v4071 = vpop.f32.mrf.mxu0
      %v4072 = vadd.f32 0.0, %v4071
      %v4073 = vpop.f32.mrf.mxu0
      %v4074 = vadd.f32 0.0, %v4073
      %4075 = vmatmul.bf16.gmra.mxu0 %v3938
      %v4076 = vpop.f32.mrf.mxu0
      %v4077 = vadd.f32 0.0, %v4076
      %v4078 = vpop.f32.mrf.mxu0
      %v4079 = vadd.f32 0.0, %v4078
      %4080 = vmatmul.bf16.gmra.mxu0 %v3941
      %v4081 = vpop.f32.mrf.mxu0
      %v4082 = vadd.f32 0.0, %v4081
      %v4083 = vpop.f32.mrf.mxu0
      %v4084 = vadd.f32 0.0, %v4083
      %4085 = vmatmul.bf16.gmra.mxu0 %v3944
      %v4086 = vpop.f32.mrf.mxu0
      %v4087 = vadd.f32 0.0, %v4086
      %v4088 = vpop.f32.mrf.mxu0
      %v4089 = vadd.f32 0.0, %v4088
      %4090 = vmatmul.bf16.gmra.mxu0 %v3947
      %v4091 = vpop.f32.mrf.mxu0
      %v4092 = vadd.f32 0.0, %v4091
      %v4093 = vpop.f32.mrf.mxu0
      %v4094 = vadd.f32 0.0, %v4093
      %4095 = vmatmul.bf16.gmra.mxu0 %v3950
      %v4096 = vpop.f32.mrf.mxu0
      %v4097 = vadd.f32 0.0, %v4096
      %v4098 = vpop.f32.mrf.mxu0
      %v4099 = vadd.f32 0.0, %v4098
      %4100 = vmatmul.bf16.gmra.mxu0 %v3953
      %v4101 = vpop.f32.mrf.mxu0
      %v4102 = vadd.f32 0.0, %v4101
      %v4103 = vpop.f32.mrf.mxu0
      %v4104 = vadd.f32 0.0, %v4103
      %4105 = vmatmul.bf16.gmra.mxu0 %v3956
      %v4106 = vpop.f32.mrf.mxu0
      %v4107 = vadd.f32 0.0, %v4106
      %v4108 = vpop.f32.mrf.mxu0
      %v4109 = vadd.f32 0.0, %v4108
      %4110 = vmatmul.bf16.gmra.mxu0 %v3959
      %v4111 = vpop.f32.mrf.mxu0
      %v4112 = vpop.f32.mrf.mxu0
      %4113 = vmatmul.bf16.gmra.mxu0 %v3962
      %v4114 = vpop.f32.mrf.mxu0
      %v4115 = vpop.f32.mrf.mxu0
      %4116 = vmatmul.bf16.gmra.mxu0 %v3965
      %v4117 = vpop.f32.mrf.mxu0
      %v4118 = vpop.f32.mrf.mxu0
      %4119 = vdwg.mxu0
      %4120 = vmatpush.bf16.msra.mxu0 0
      %4121 = vmatpush.bf16.msra.mxu0 0
      %4122 = vmatpush.bf16.msra.mxu0 0
      %4123 = vmatpush.bf16.msra.mxu0 0
      %4124 = vmatpush.bf16.msra.mxu0 0
      %4125 = vmatpush.bf16.msra.mxu0 %v722
      %4126 = vmatpush.bf16.msra.mxu0 %v720
      %4127 = vmatpush.bf16.msra.mxu0 %v718
      %4128 = vmatmul.bf16.gmra.mxu0 %v3878
      %v4129 = vpop.f32.mrf.mxu0
      %v4130 = vpop.f32.mrf.mxu0
      %4131 = vmatmul.bf16.gmra.mxu0 %v3881
      %v4132 = vpop.f32.mrf.mxu0
      %v4133 = vpop.f32.mrf.mxu0
      %4134 = vmatmul.bf16.gmra.mxu0 %v3884
      %v4135 = vpop.f32.mrf.mxu0
      %v4136 = vpop.f32.mrf.mxu0
      %4137 = vmatmul.bf16.gmra.mxu0 %v3887
      %v4138 = vpop.f32.mrf.mxu0
      %v4139 = vadd.f32 0.0, %v4138
      %v4140 = vpop.f32.mrf.mxu0
      %v4141 = vadd.f32 0.0, %v4140
      %4142 = vmatmul.bf16.gmra.mxu0 %v3890
      %v4143 = vpop.f32.mrf.mxu0
      %v4144 = vadd.f32 0.0, %v4143
      %v4145 = vpop.f32.mrf.mxu0
      %v4146 = vadd.f32 0.0, %v4145
      %4147 = vmatmul.bf16.gmra.mxu0 %v3893
      %v4148 = vpop.f32.mrf.mxu0
      %v4149 = vadd.f32 0.0, %v4148
      %v4150 = vpop.f32.mrf.mxu0
      %v4151 = vadd.f32 0.0, %v4150
      %4152 = vmatmul.bf16.gmra.mxu0 %v3896
      %v4153 = vpop.f32.mrf.mxu0
      %v4154 = vadd.f32 0.0, %v4153
      %v4155 = vpop.f32.mrf.mxu0
      %v4156 = vadd.f32 0.0, %v4155
      %4157 = vmatmul.bf16.gmra.mxu0 %v3899
      %v4158 = vpop.f32.mrf.mxu0
      %v4159 = vadd.f32 0.0, %v4158
      %v4160 = vpop.f32.mrf.mxu0
      %v4161 = vadd.f32 0.0, %v4160
      %4162 = vmatmul.bf16.gmra.mxu0 %v3902
      %v4163 = vpop.f32.mrf.mxu0
      %v4164 = vadd.f32 0.0, %v4163
      %v4165 = vpop.f32.mrf.mxu0
      %v4166 = vadd.f32 0.0, %v4165
      %4167 = vmatmul.bf16.gmra.mxu0 %v3905
      %v4168 = vpop.f32.mrf.mxu0
      %v4169 = vadd.f32 0.0, %v4168
      %v4170 = vpop.f32.mrf.mxu0
      %v4171 = vadd.f32 0.0, %v4170
      %4172 = vmatmul.bf16.gmra.mxu0 %v3908
      %v4173 = vpop.f32.mrf.mxu0
      %v4174 = vadd.f32 0.0, %v4173
      %v4175 = vpop.f32.mrf.mxu0
      %v4176 = vadd.f32 0.0, %v4175
      %4177 = vmatmul.bf16.gmra.mxu0 %v3911
      %v4178 = vpop.f32.mrf.mxu0
      %v4179 = vadd.f32 0.0, %v4178
      %v4180 = vpop.f32.mrf.mxu0
      %v4181 = vadd.f32 0.0, %v4180
      %4182 = vmatmul.bf16.gmra.mxu0 %v3914
      %v4183 = vpop.f32.mrf.mxu0
      %v4184 = vadd.f32 0.0, %v4183
      %v4185 = vpop.f32.mrf.mxu0
      %v4186 = vadd.f32 0.0, %v4185
      %4187 = vmatmul.bf16.gmra.mxu0 %v3917
      %v4188 = vpop.f32.mrf.mxu0
      %v4189 = vadd.f32 0.0, %v4188
      %v4190 = vpop.f32.mrf.mxu0
      %v4191 = vadd.f32 0.0, %v4190
      %4192 = vmatmul.bf16.gmra.mxu0 %v3920
      %v4193 = vpop.f32.mrf.mxu0
      %v4194 = vadd.f32 0.0, %v4193
      %v4195 = vpop.f32.mrf.mxu0
      %v4196 = vadd.f32 0.0, %v4195
      %4197 = vmatmul.bf16.gmra.mxu0 %v3923
      %v4198 = vpop.f32.mrf.mxu0
      %v4199 = vadd.f32 0.0, %v4198
      %v4200 = vpop.f32.mrf.mxu0
      %v4201 = vadd.f32 0.0, %v4200
      %4202 = vmatmul.bf16.gmra.mxu0 %v3926
      %v4203 = vpop.f32.mrf.mxu0
      %v4204 = vadd.f32 0.0, %v4203
      %v4205 = vpop.f32.mrf.mxu0
      %v4206 = vadd.f32 0.0, %v4205
      %4207 = vmatmul.bf16.gmra.mxu0 %v3929
      %v4208 = vpop.f32.mrf.mxu0
      %v4209 = vadd.f32 0.0, %v4208
      %v4210 = vpop.f32.mrf.mxu0
      %v4211 = vadd.f32 0.0, %v4210
      %4212 = vmatmul.bf16.gmra.mxu0 %v3932
      %v4213 = vpop.f32.mrf.mxu0
      %v4214 = vadd.f32 0.0, %v4213
      %v4215 = vpop.f32.mrf.mxu0
      %v4216 = vadd.f32 0.0, %v4215
      %4217 = vmatmul.bf16.gmra.mxu0 %v3935
      %v4218 = vpop.f32.mrf.mxu0
      %v4219 = vadd.f32 0.0, %v4218
      %v4220 = vpop.f32.mrf.mxu0
      %v4221 = vadd.f32 0.0, %v4220
      %4222 = vmatmul.bf16.gmra.mxu0 %v3938
      %v4223 = vpop.f32.mrf.mxu0
      %v4224 = vadd.f32 0.0, %v4223
      %v4225 = vpop.f32.mrf.mxu0
      %v4226 = vadd.f32 0.0, %v4225
      %4227 = vmatmul.bf16.gmra.mxu0 %v3941
      %v4228 = vpop.f32.mrf.mxu0
      %v4229 = vadd.f32 0.0, %v4228
      %v4230 = vpop.f32.mrf.mxu0
      %v4231 = vadd.f32 0.0, %v4230
      %4232 = vmatmul.bf16.gmra.mxu0 %v3944
      %v4233 = vpop.f32.mrf.mxu0
      %v4234 = vadd.f32 0.0, %v4233
      %v4235 = vpop.f32.mrf.mxu0
      %v4236 = vadd.f32 0.0, %v4235
      %4237 = vmatmul.bf16.gmra.mxu0 %v3947
      %v4238 = vpop.f32.mrf.mxu0
      %v4239 = vadd.f32 0.0, %v4238
      %v4240 = vpop.f32.mrf.mxu0
      %v4241 = vadd.f32 0.0, %v4240
      %4242 = vmatmul.bf16.gmra.mxu0 %v3950
      %v4243 = vpop.f32.mrf.mxu0
      %v4244 = vadd.f32 0.0, %v4243
      %v4245 = vpop.f32.mrf.mxu0
      %v4246 = vadd.f32 0.0, %v4245
      %4247 = vmatmul.bf16.gmra.mxu0 %v3953
      %v4248 = vpop.f32.mrf.mxu0
      %v4249 = vadd.f32 0.0, %v4248
      %v4250 = vpop.f32.mrf.mxu0
      %v4251 = vadd.f32 0.0, %v4250
      %4252 = vmatmul.bf16.gmra.mxu0 %v3956
      %v4253 = vpop.f32.mrf.mxu0
      %v4254 = vadd.f32 0.0, %v4253
      %v4255 = vpop.f32.mrf.mxu0
      %v4256 = vadd.f32 0.0, %v4255
      %4257 = vmatmul.bf16.gmra.mxu0 %v3959
      %v4258 = vpop.f32.mrf.mxu0
      %v4259 = vadd.f32 0.0, %v4258
      %v4260 = vpop.f32.mrf.mxu0
      %v4261 = vadd.f32 0.0, %v4260
      %4262 = vmatmul.bf16.gmra.mxu0 %v3962
      %v4263 = vpop.f32.mrf.mxu0
      %v4264 = vadd.f32 0.0, %v4263
      %v4265 = vpop.f32.mrf.mxu0
      %v4266 = vadd.f32 0.0, %v4265
      %4267 = vmatmul.bf16.gmra.mxu0 %v3965
      %v4268 = vpop.f32.mrf.mxu0
      %v4269 = vadd.f32 0.0, %v4268
      %v4270 = vpop.f32.mrf.mxu0
      %v4271 = vadd.f32 0.0, %v4270
      %4272 = vdwg.mxu0
      %4324 = vrot.lane.b32.xlu0 %v3984, 64
      %v4325 = vpop.permute.xlu0 %4324
      %4326 = vrot.lane.b32.xlu0 %v3987, 64
      %v4327 = vpop.permute.xlu0 %4326
      %4328 = vrot.lane.b32.xlu0 %v3989, 64
      %v4329 = vpop.permute.xlu0 %4328
      %4330 = vrot.lane.b32.xlu0 %v3992, 64
      %v4331 = vpop.permute.xlu0 %4330
      %4332 = vrot.lane.b32.xlu0 %v3994, 64
      %v4333 = vpop.permute.xlu0 %4332
      %4334 = vrot.lane.b32.xlu0 %v3997, 64
      %v4335 = vpop.permute.xlu0 %4334
      %4336 = vrot.lane.b32.xlu0 %v3999, 64
      %v4337 = vpop.permute.xlu0 %4336
      %4338 = vrot.lane.b32.xlu0 %v4002, 64
      %v4339 = vpop.permute.xlu0 %4338
      %4340 = vrot.lane.b32.xlu0 %v4004, 64
      %v4341 = vpop.permute.xlu0 %4340
      %4342 = vrot.lane.b32.xlu0 %v4007, 64
      %v4343 = vpop.permute.xlu0 %4342
      %4344 = vrot.lane.b32.xlu0 %v4009, 64
      %v4345 = vpop.permute.xlu0 %4344
      %4346 = vrot.lane.b32.xlu0 %v4012, 64
      %v4347 = vpop.permute.xlu0 %4346
      %4348 = vrot.lane.b32.xlu0 %v4014, 64
      %v4349 = vpop.permute.xlu0 %4348
      %4350 = vrot.lane.b32.xlu0 %v4017, 64
      %v4351 = vpop.permute.xlu0 %4350
      %4352 = vrot.lane.b32.xlu0 %v4019, 64
      %v4353 = vpop.permute.xlu0 %4352
      %4354 = vrot.lane.b32.xlu0 %v4022, 64
      %v4355 = vpop.permute.xlu0 %4354
      %4356 = vrot.lane.b32.xlu0 %v4024, 64
      %v4357 = vpop.permute.xlu0 %4356
      %4358 = vrot.lane.b32.xlu0 %v4027, 64
      %v4359 = vpop.permute.xlu0 %4358
      %4360 = vrot.lane.b32.xlu0 %v4029, 64
      %v4361 = vpop.permute.xlu0 %4360
      %4362 = vrot.lane.b32.xlu0 %v4032, 64
      %v4363 = vpop.permute.xlu0 %4362
      %4364 = vrot.lane.b32.xlu0 %v4034, 64
      %v4365 = vpop.permute.xlu0 %4364
      %4366 = vrot.lane.b32.xlu0 %v4037, 64
      %v4367 = vpop.permute.xlu0 %4366
      %4368 = vrot.lane.b32.xlu0 %v4039, 64
      %v4369 = vpop.permute.xlu0 %4368
      %4370 = vrot.lane.b32.xlu0 %v4042, 64
      %v4371 = vpop.permute.xlu0 %4370
      %4372 = vrot.lane.b32.xlu0 %v4044, 64
      %v4373 = vpop.permute.xlu0 %4372
      %4374 = vrot.lane.b32.xlu0 %v4047, 64
      %v4375 = vpop.permute.xlu0 %4374
      %4376 = vrot.lane.b32.xlu0 %v4049, 64
      %v4377 = vpop.permute.xlu0 %4376
      %4378 = vrot.lane.b32.xlu0 %v4052, 64
      %v4379 = vpop.permute.xlu0 %4378
      %4380 = vrot.lane.b32.xlu0 %v4054, 64
      %v4381 = vpop.permute.xlu0 %4380
      %4382 = vrot.lane.b32.xlu0 %v4057, 64
      %v4383 = vpop.permute.xlu0 %4382
      %4384 = vrot.lane.b32.xlu0 %v4059, 64
      %v4385 = vpop.permute.xlu0 %4384
      %4386 = vrot.lane.b32.xlu0 %v4062, 64
      %v4387 = vpop.permute.xlu0 %4386
      %4388 = vrot.lane.b32.xlu0 %v4064, 64
      %v4389 = vpop.permute.xlu0 %4388
      %4390 = vrot.lane.b32.xlu0 %v4067, 64
      %v4391 = vpop.permute.xlu0 %4390
      %4392 = vrot.lane.b32.xlu0 %v4069, 64
      %v4393 = vpop.permute.xlu0 %4392
      %4394 = vrot.lane.b32.xlu0 %v4072, 64
      %v4395 = vpop.permute.xlu0 %4394
      %4396 = vrot.lane.b32.xlu0 %v4074, 64
      %v4397 = vpop.permute.xlu0 %4396
      %4398 = vrot.lane.b32.xlu0 %v4077, 64
      %v4399 = vpop.permute.xlu0 %4398
      %4400 = vrot.lane.b32.xlu0 %v4079, 64
      %v4401 = vpop.permute.xlu0 %4400
      %4402 = vrot.lane.b32.xlu0 %v4082, 64
      %v4403 = vpop.permute.xlu0 %4402
      %4404 = vrot.lane.b32.xlu0 %v4084, 64
      %v4405 = vpop.permute.xlu0 %4404
      %4406 = vrot.lane.b32.xlu0 %v4087, 64
      %v4407 = vpop.permute.xlu0 %4406
      %4408 = vrot.lane.b32.xlu0 %v4089, 64
      %v4409 = vpop.permute.xlu0 %4408
      %4410 = vrot.lane.b32.xlu0 %v4092, 64
      %v4411 = vpop.permute.xlu0 %4410
      %4412 = vrot.lane.b32.xlu0 %v4094, 64
      %v4413 = vpop.permute.xlu0 %4412
      %4414 = vrot.lane.b32.xlu0 %v4097, 64
      %v4415 = vpop.permute.xlu0 %4414
      %4416 = vrot.lane.b32.xlu0 %v4099, 64
      %v4417 = vpop.permute.xlu0 %4416
      %4418 = vrot.lane.b32.xlu0 %v4102, 64
      %v4419 = vpop.permute.xlu0 %4418
      %4420 = vrot.lane.b32.xlu0 %v4104, 64
      %v4421 = vpop.permute.xlu0 %4420
      %4422 = vrot.lane.b32.xlu0 %v4107, 64
      %v4423 = vpop.permute.xlu0 %4422
      %4424 = vrot.lane.b32.xlu0 %v4109, 64
      %v4425 = vpop.permute.xlu0 %4424
      %v4477 = vadd.f32 %v3977, %v4325
      %v4478 = vadd.f32 %v3979, %v4327
      %v4479 = vadd.f32 %v3982, %v4329
      %v4480 = vadd.f32 %v3984, %v4331
      %v4481 = vadd.f32 %v3987, %v4333
      %v4482 = vadd.f32 %v3989, %v4335
      %v4483 = vadd.f32 %v3992, %v4337
      %v4484 = vadd.f32 %v3994, %v4339
      %v4485 = vadd.f32 %v3997, %v4341
      %v4486 = vadd.f32 %v3999, %v4343
      %v4487 = vadd.f32 %v4002, %v4345
      %v4488 = vadd.f32 %v4004, %v4347
      %v4489 = vadd.f32 %v4007, %v4349
      %v4490 = vadd.f32 %v4009, %v4351
      %v4491 = vadd.f32 %v4012, %v4353
      %v4492 = vadd.f32 %v4014, %v4355
      %v4493 = vadd.f32 %v4017, %v4357
      %v4494 = vadd.f32 %v4019, %v4359
      %v4495 = vadd.f32 %v4022, %v4361
      %v4496 = vadd.f32 %v4024, %v4363
      %v4497 = vadd.f32 %v4027, %v4365
      %v4498 = vadd.f32 %v4029, %v4367
      %v4499 = vadd.f32 %v4032, %v4369
      %v4500 = vadd.f32 %v4034, %v4371
      %v4501 = vadd.f32 %v4037, %v4373
      %v4502 = vadd.f32 %v4039, %v4375
      %v4503 = vadd.f32 %v4042, %v4377
      %v4504 = vadd.f32 %v4044, %v4379
      %v4505 = vadd.f32 %v4047, %v4381
      %v4506 = vadd.f32 %v4049, %v4383
      %v4507 = vadd.f32 %v4052, %v4385
      %v4508 = vadd.f32 %v4054, %v4387
      %v4509 = vadd.f32 %v4057, %v4389
      %v4510 = vadd.f32 %v4059, %v4391
      %v4511 = vadd.f32 %v4062, %v4393
      %v4512 = vadd.f32 %v4064, %v4395
      %v4513 = vadd.f32 %v4067, %v4397
      %v4514 = vadd.f32 %v4069, %v4399
      %v4515 = vadd.f32 %v4072, %v4401
      %v4516 = vadd.f32 %v4074, %v4403
      %v4517 = vadd.f32 %v4077, %v4405
      %v4518 = vadd.f32 %v4079, %v4407
      %v4519 = vadd.f32 %v4082, %v4409
      %v4520 = vadd.f32 %v4084, %v4411
      %v4521 = vadd.f32 %v4087, %v4413
      %v4522 = vadd.f32 %v4089, %v4415
      %v4523 = vadd.f32 %v4092, %v4417
      %v4524 = vadd.f32 %v4094, %v4419
      %v4525 = vadd.f32 %v4097, %v4421
      %v4526 = vadd.f32 %v4099, %v4423
      %v4527 = vadd.f32 %v4102, %v4425
      %v4528 = vadd.f32 %v4477, %v4139
      %v4529 = vadd.f32 %v4478, %v4141
      %v4530 = vadd.f32 %v4479, %v4144
      %v4531 = vadd.f32 %v4480, %v4146
      %v4532 = vadd.f32 %v4481, %v4149
      %v4533 = vadd.f32 %v4482, %v4151
      %v4534 = vadd.f32 %v4483, %v4154
      %v4535 = vadd.f32 %v4484, %v4156
      %v4536 = vadd.f32 %v4485, %v4159
      %v4537 = vadd.f32 %v4486, %v4161
      %v4538 = vadd.f32 %v4487, %v4164
      %v4539 = vadd.f32 %v4488, %v4166
      %v4540 = vadd.f32 %v4489, %v4169
      %v4541 = vadd.f32 %v4490, %v4171
      %v4542 = vadd.f32 %v4491, %v4174
      %v4543 = vadd.f32 %v4492, %v4176
      %v4544 = vadd.f32 %v4493, %v4179
      %v4545 = vadd.f32 %v4494, %v4181
      %v4546 = vadd.f32 %v4495, %v4184
      %v4547 = vadd.f32 %v4496, %v4186
      %v4548 = vadd.f32 %v4497, %v4189
      %v4549 = vadd.f32 %v4498, %v4191
      %v4550 = vadd.f32 %v4499, %v4194
      %v4551 = vadd.f32 %v4500, %v4196
      %v4552 = vadd.f32 %v4501, %v4199
      %v4553 = vadd.f32 %v4502, %v4201
      %v4554 = vadd.f32 %v4503, %v4204
      %v4555 = vadd.f32 %v4504, %v4206
      %v4556 = vadd.f32 %v4505, %v4209
      %v4557 = vadd.f32 %v4506, %v4211
      %v4558 = vadd.f32 %v4507, %v4214
      %v4559 = vadd.f32 %v4508, %v4216
      %v4560 = vadd.f32 %v4509, %v4219
      %v4561 = vadd.f32 %v4510, %v4221
      %v4562 = vadd.f32 %v4511, %v4224
      %v4563 = vadd.f32 %v4512, %v4226
      %v4564 = vadd.f32 %v4513, %v4229
      %v4565 = vadd.f32 %v4514, %v4231
      %v4566 = vadd.f32 %v4515, %v4234
      %v4567 = vadd.f32 %v4516, %v4236
      %v4568 = vadd.f32 %v4517, %v4239
      %v4569 = vadd.f32 %v4518, %v4241
      %v4570 = vadd.f32 %v4519, %v4244
      %v4571 = vadd.f32 %v4520, %v4246
      %v4572 = vadd.f32 %v4521, %v4249
      %v4573 = vadd.f32 %v4522, %v4251
      %v4574 = vadd.f32 %v4523, %v4254
      %v4575 = vadd.f32 %v4524, %v4256
      %v4576 = vadd.f32 %v4525, %v4259
      %v4577 = vadd.f32 %v4526, %v4261
      %v4578 = vadd.f32 %v4527, %v4264
      %4630 = vrot.lane.b32.xlu0 %v4146, 64
      %v4631 = vpop.permute.xlu0 %4630
      %4632 = vrot.lane.b32.xlu0 %v4149, 64
      %v4633 = vpop.permute.xlu0 %4632
      %4634 = vrot.lane.b32.xlu0 %v4151, 64
      %v4635 = vpop.permute.xlu0 %4634
      %4636 = vrot.lane.b32.xlu0 %v4154, 64
      %v4637 = vpop.permute.xlu0 %4636
      %4638 = vrot.lane.b32.xlu0 %v4156, 64
      %v4639 = vpop.permute.xlu0 %4638
      %4640 = vrot.lane.b32.xlu0 %v4159, 64
      %v4641 = vpop.permute.xlu0 %4640
      %4642 = vrot.lane.b32.xlu0 %v4161, 64
      %v4643 = vpop.permute.xlu0 %4642
      %4644 = vrot.lane.b32.xlu0 %v4164, 64
      %v4645 = vpop.permute.xlu0 %4644
      %4646 = vrot.lane.b32.xlu0 %v4166, 64
      %v4647 = vpop.permute.xlu0 %4646
      %4648 = vrot.lane.b32.xlu0 %v4169, 64
      %v4649 = vpop.permute.xlu0 %4648
      %4650 = vrot.lane.b32.xlu0 %v4171, 64
      %v4651 = vpop.permute.xlu0 %4650
      %4652 = vrot.lane.b32.xlu0 %v4174, 64
      %v4653 = vpop.permute.xlu0 %4652
      %4654 = vrot.lane.b32.xlu0 %v4176, 64
      %v4655 = vpop.permute.xlu0 %4654
      %4656 = vrot.lane.b32.xlu0 %v4179, 64
      %v4657 = vpop.permute.xlu0 %4656
      %4658 = vrot.lane.b32.xlu0 %v4181, 64
      %v4659 = vpop.permute.xlu0 %4658
      %4660 = vrot.lane.b32.xlu0 %v4184, 64
      %v4661 = vpop.permute.xlu0 %4660
      %4662 = vrot.lane.b32.xlu0 %v4186, 64
      %v4663 = vpop.permute.xlu0 %4662
      %4664 = vrot.lane.b32.xlu0 %v4189, 64
      %v4665 = vpop.permute.xlu0 %4664
      %4666 = vrot.lane.b32.xlu0 %v4191, 64
      %v4667 = vpop.permute.xlu0 %4666
      %4668 = vrot.lane.b32.xlu0 %v4194, 64
      %v4669 = vpop.permute.xlu0 %4668
      %4670 = vrot.lane.b32.xlu0 %v4196, 64
      %v4671 = vpop.permute.xlu0 %4670
      %4672 = vrot.lane.b32.xlu0 %v4199, 64
      %v4673 = vpop.permute.xlu0 %4672
      %4674 = vrot.lane.b32.xlu0 %v4201, 64
      %v4675 = vpop.permute.xlu0 %4674
      %4676 = vrot.lane.b32.xlu0 %v4204, 64
      %v4677 = vpop.permute.xlu0 %4676
      %4678 = vrot.lane.b32.xlu0 %v4206, 64
      %v4679 = vpop.permute.xlu0 %4678
      %4680 = vrot.lane.b32.xlu0 %v4209, 64
      %v4681 = vpop.permute.xlu0 %4680
      %4682 = vrot.lane.b32.xlu0 %v4211, 64
      %v4683 = vpop.permute.xlu0 %4682
      %4684 = vrot.lane.b32.xlu0 %v4214, 64
      %v4685 = vpop.permute.xlu0 %4684
      %4686 = vrot.lane.b32.xlu0 %v4216, 64
      %v4687 = vpop.permute.xlu0 %4686
      %4688 = vrot.lane.b32.xlu0 %v4219, 64
      %v4689 = vpop.permute.xlu0 %4688
      %4690 = vrot.lane.b32.xlu0 %v4221, 64
      %v4691 = vpop.permute.xlu0 %4690
      %4692 = vrot.lane.b32.xlu0 %v4224, 64
      %v4693 = vpop.permute.xlu0 %4692
      %4694 = vrot.lane.b32.xlu0 %v4226, 64
      %v4695 = vpop.permute.xlu0 %4694
      %4696 = vrot.lane.b32.xlu0 %v4229, 64
      %v4697 = vpop.permute.xlu0 %4696
      %4698 = vrot.lane.b32.xlu0 %v4231, 64
      %v4699 = vpop.permute.xlu0 %4698
      %4700 = vrot.lane.b32.xlu0 %v4234, 64
      %v4701 = vpop.permute.xlu0 %4700
      %4702 = vrot.lane.b32.xlu0 %v4236, 64
      %v4703 = vpop.permute.xlu0 %4702
      %4704 = vrot.lane.b32.xlu0 %v4239, 64
      %v4705 = vpop.permute.xlu0 %4704
      %4706 = vrot.lane.b32.xlu0 %v4241, 64
      %v4707 = vpop.permute.xlu0 %4706
      %4708 = vrot.lane.b32.xlu0 %v4244, 64
      %v4709 = vpop.permute.xlu0 %4708
      %4710 = vrot.lane.b32.xlu0 %v4246, 64
      %v4711 = vpop.permute.xlu0 %4710
      %4712 = vrot.lane.b32.xlu0 %v4249, 64
      %v4713 = vpop.permute.xlu0 %4712
      %4714 = vrot.lane.b32.xlu0 %v4251, 64
      %v4715 = vpop.permute.xlu0 %4714
      %4716 = vrot.lane.b32.xlu0 %v4254, 64
      %v4717 = vpop.permute.xlu0 %4716
      %4718 = vrot.lane.b32.xlu0 %v4256, 64
      %v4719 = vpop.permute.xlu0 %4718
      %4720 = vrot.lane.b32.xlu0 %v4259, 64
      %v4721 = vpop.permute.xlu0 %4720
      %4722 = vrot.lane.b32.xlu0 %v4261, 64
      %v4723 = vpop.permute.xlu0 %4722
      %4724 = vrot.lane.b32.xlu0 %v4264, 64
      %v4725 = vpop.permute.xlu0 %4724
      %4726 = vrot.lane.b32.xlu0 %v4266, 64
      %v4727 = vpop.permute.xlu0 %4726
      %4728 = vrot.lane.b32.xlu0 %v4269, 64
      %v4729 = vpop.permute.xlu0 %4728
      %4730 = vrot.lane.b32.xlu0 %v4271, 64
      %v4731 = vpop.permute.xlu0 %4730
      %v4783 = vadd.f32 %v4528, %v4631
      %v4784 = vadd.f32 %v4529, %v4633
      %v4785 = vadd.f32 %v4530, %v4635
      %v4786 = vadd.f32 %v4531, %v4637
      %v4787 = vadd.f32 %v4532, %v4639
      %v4788 = vadd.f32 %v4533, %v4641
      %v4789 = vadd.f32 %v4534, %v4643
      %v4790 = vadd.f32 %v4535, %v4645
      %v4791 = vadd.f32 %v4536, %v4647
      %v4792 = vadd.f32 %v4537, %v4649
      %v4793 = vadd.f32 %v4538, %v4651
      %v4794 = vadd.f32 %v4539, %v4653
      %v4795 = vadd.f32 %v4540, %v4655
      %v4796 = vadd.f32 %v4541, %v4657
      %v4797 = vadd.f32 %v4542, %v4659
      %v4798 = vadd.f32 %v4543, %v4661
      %v4799 = vadd.f32 %v4544, %v4663
      %v4800 = vadd.f32 %v4545, %v4665
      %v4801 = vadd.f32 %v4546, %v4667
      %v4802 = vadd.f32 %v4547, %v4669
      %v4803 = vadd.f32 %v4548, %v4671
      %v4804 = vadd.f32 %v4549, %v4673
      %v4805 = vadd.f32 %v4550, %v4675
      %v4806 = vadd.f32 %v4551, %v4677
      %v4807 = vadd.f32 %v4552, %v4679
      %v4808 = vadd.f32 %v4553, %v4681
      %v4809 = vadd.f32 %v4554, %v4683
      %v4810 = vadd.f32 %v4555, %v4685
      %v4811 = vadd.f32 %v4556, %v4687
      %v4812 = vadd.f32 %v4557, %v4689
      %v4813 = vadd.f32 %v4558, %v4691
      %v4814 = vadd.f32 %v4559, %v4693
      %v4815 = vadd.f32 %v4560, %v4695
      %v4816 = vadd.f32 %v4561, %v4697
      %v4817 = vadd.f32 %v4562, %v4699
      %v4818 = vadd.f32 %v4563, %v4701
      %v4819 = vadd.f32 %v4564, %v4703
      %v4820 = vadd.f32 %v4565, %v4705
      %v4821 = vadd.f32 %v4566, %v4707
      %v4822 = vadd.f32 %v4567, %v4709
      %v4823 = vadd.f32 %v4568, %v4711
      %v4824 = vadd.f32 %v4569, %v4713
      %v4825 = vadd.f32 %v4570, %v4715
      %v4826 = vadd.f32 %v4571, %v4717
      %v4827 = vadd.f32 %v4572, %v4719
      %v4828 = vadd.f32 %v4573, %v4721
      %v4829 = vadd.f32 %v4574, %v4723
      %v4830 = vadd.f32 %v4575, %v4725
      %v4831 = vadd.f32 %v4576, %v4727
      %v4832 = vadd.f32 %v4577, %v4729
      %v4833 = vadd.f32 %v4578, %v4731
      %v4834 = vsel %vm2484, -1e+30, %v4783
      %v4835 = vsel %vm2485, -1e+30, %v4784
      %v4836 = vsel %vm2484, -1e+30, %v4786
      %v4837 = vsel %vm2485, -1e+30, %v4787
      %v4838 = vsel %vm2484, -1e+30, %v4789
      %v4839 = vsel %vm2485, -1e+30, %v4790
      %v4840 = vsel %vm2484, -1e+30, %v4792
      %v4841 = vsel %vm2485, -1e+30, %v4793
      %v4842 = vsel %vm2484, -1e+30, %v4795
      %v4843 = vsel %vm2485, -1e+30, %v4796
      %v4844 = vsel %vm2484, -1e+30, %v4798
      %v4845 = vsel %vm2485, -1e+30, %v4799
      %v4846 = vsel %vm2484, -1e+30, %v4801
      %v4847 = vsel %vm2485, -1e+30, %v4802
      %v4848 = vsel %vm2484, -1e+30, %v4804
      %v4849 = vsel %vm2485, -1e+30, %v4805
      %v4850 = vsel %vm2484, -1e+30, %v4807
      %v4851 = vsel %vm2485, -1e+30, %v4808
      %v4852 = vsel %vm2484, -1e+30, %v4810
      %v4853 = vsel %vm2485, -1e+30, %v4811
      %v4854 = vsel %vm2484, -1e+30, %v4813
      %v4855 = vsel %vm2485, -1e+30, %v4814
      %v4856 = vsel %vm2484, -1e+30, %v4816
      %v4857 = vsel %vm2485, -1e+30, %v4817
      %v4858 = vsel %vm2484, -1e+30, %v4819
      %v4859 = vsel %vm2485, -1e+30, %v4820
      %v4860 = vsel %vm2484, -1e+30, %v4822
      %v4861 = vsel %vm2485, -1e+30, %v4823
      %v4862 = vsel %vm2484, -1e+30, %v4825
      %v4863 = vsel %vm2485, -1e+30, %v4826
      %v4864 = vsel %vm2484, -1e+30, %v4828
      %v4865 = vsel %vm2485, -1e+30, %v4829
      %v4866 = vsel %vm2484, -1e+30, %v4831
      %v4867 = vsel %vm2485, -1e+30, %v4832
      %v4919 = vrot.slane %v4783, 1
      %v4920 = vrot.slane %v4784, 1
      %v4921 = vsel %vm2571, %v4919, %v4920
      %v4922 = vrot.slane %v4785, 1
      %v4923 = vsel %vm2571, %v4920, %v4922
      %v4924 = vrot.slane %v4786, 1
      %v4925 = vrot.slane %v4787, 1
      %v4926 = vsel %vm2571, %v4924, %v4925
      %v4927 = vrot.slane %v4788, 1
      %v4928 = vsel %vm2571, %v4925, %v4927
      %v4929 = vrot.slane %v4789, 1
      %v4930 = vrot.slane %v4790, 1
      %v4931 = vsel %vm2571, %v4929, %v4930
      %v4932 = vrot.slane %v4791, 1
      %v4933 = vsel %vm2571, %v4930, %v4932
      %v4934 = vrot.slane %v4792, 1
      %v4935 = vrot.slane %v4793, 1
      %v4936 = vsel %vm2571, %v4934, %v4935
      %v4937 = vrot.slane %v4794, 1
      %v4938 = vsel %vm2571, %v4935, %v4937
      %v4939 = vrot.slane %v4795, 1
      %v4940 = vrot.slane %v4796, 1
      %v4941 = vsel %vm2571, %v4939, %v4940
      %v4942 = vrot.slane %v4797, 1
      %v4943 = vsel %vm2571, %v4940, %v4942
      %v4944 = vrot.slane %v4798, 1
      %v4945 = vrot.slane %v4799, 1
      %v4946 = vsel %vm2571, %v4944, %v4945
      %v4947 = vrot.slane %v4800, 1
      %v4948 = vsel %vm2571, %v4945, %v4947
      %v4949 = vrot.slane %v4801, 1
      %v4950 = vrot.slane %v4802, 1
      %v4951 = vsel %vm2571, %v4949, %v4950
      %v4952 = vrot.slane %v4803, 1
      %v4953 = vsel %vm2571, %v4950, %v4952
      %v4954 = vrot.slane %v4804, 1
      %v4955 = vrot.slane %v4805, 1
      %v4956 = vsel %vm2571, %v4954, %v4955
      %v4957 = vrot.slane %v4806, 1
      %v4958 = vsel %vm2571, %v4955, %v4957
      %v4959 = vrot.slane %v4807, 1
      %v4960 = vrot.slane %v4808, 1
      %v4961 = vsel %vm2571, %v4959, %v4960
      %v4962 = vrot.slane %v4809, 1
      %v4963 = vsel %vm2571, %v4960, %v4962
      %v4964 = vrot.slane %v4810, 1
      %v4965 = vrot.slane %v4811, 1
      %v4966 = vsel %vm2571, %v4964, %v4965
      %v4967 = vrot.slane %v4812, 1
      %v4968 = vsel %vm2571, %v4965, %v4967
      %v4969 = vrot.slane %v4813, 1
      %v4970 = vrot.slane %v4814, 1
      %v4971 = vsel %vm2571, %v4969, %v4970
      %v4972 = vrot.slane %v4815, 1
      %v4973 = vsel %vm2571, %v4970, %v4972
      %v4974 = vrot.slane %v4816, 1
      %v4975 = vrot.slane %v4817, 1
      %v4976 = vsel %vm2571, %v4974, %v4975
      %v4977 = vrot.slane %v4818, 1
      %v4978 = vsel %vm2571, %v4975, %v4977
      %v4979 = vrot.slane %v4819, 1
      %v4980 = vrot.slane %v4820, 1
      %v4981 = vsel %vm2571, %v4979, %v4980
      %v4982 = vrot.slane %v4821, 1
      %v4983 = vsel %vm2571, %v4980, %v4982
      %v4984 = vrot.slane %v4822, 1
      %v4985 = vrot.slane %v4823, 1
      %v4986 = vsel %vm2571, %v4984, %v4985
      %v4987 = vrot.slane %v4824, 1
      %v4988 = vsel %vm2571, %v4985, %v4987
      %v4989 = vrot.slane %v4825, 1
      %v4990 = vrot.slane %v4826, 1
      %v4991 = vsel %vm2571, %v4989, %v4990
      %v4992 = vrot.slane %v4827, 1
      %v4993 = vsel %vm2571, %v4990, %v4992
      %v4994 = vrot.slane %v4828, 1
      %v4995 = vrot.slane %v4829, 1
      %v4996 = vsel %vm2571, %v4994, %v4995
      %v4997 = vrot.slane %v4830, 1
      %v4998 = vsel %vm2571, %v4995, %v4997
      %v4999 = vrot.slane %v4831, 1
      %v5000 = vrot.slane %v4832, 1
      %v5001 = vsel %vm2571, %v4999, %v5000
      %v5002 = vrot.slane %v4833, 1
      %v5003 = vsel %vm2571, %v5000, %v5002
      %v5038 = vmax.f32 %v4834, %v4921
      %v5039 = vmax.f32 %v4835, %v4923
      %v5040 = vmax.f32 %v4836, %v4926
      %v5041 = vmax.f32 %v4837, %v4928
      %v5042 = vmax.f32 %v4838, %v4931
      %v5043 = vmax.f32 %v4839, %v4933
      %v5044 = vmax.f32 %v4840, %v4936
      %v5045 = vmax.f32 %v4841, %v4938
      %v5046 = vmax.f32 %v4842, %v4941
      %v5047 = vmax.f32 %v4843, %v4943
      %v5048 = vmax.f32 %v4844, %v4946
      %v5049 = vmax.f32 %v4845, %v4948
      %v5050 = vmax.f32 %v4846, %v4951
      %v5051 = vmax.f32 %v4847, %v4953
      %v5052 = vmax.f32 %v4848, %v4956
      %v5053 = vmax.f32 %v4849, %v4958
      %v5054 = vmax.f32 %v4850, %v4961
      %v5055 = vmax.f32 %v4851, %v4963
      %v5056 = vmax.f32 %v4852, %v4966
      %v5057 = vmax.f32 %v4853, %v4968
      %v5058 = vmax.f32 %v4854, %v4971
      %v5059 = vmax.f32 %v4855, %v4973
      %v5060 = vmax.f32 %v4856, %v4976
      %v5061 = vmax.f32 %v4857, %v4978
      %v5062 = vmax.f32 %v4858, %v4981
      %v5063 = vmax.f32 %v4859, %v4983
      %v5064 = vmax.f32 %v4860, %v4986
      %v5065 = vmax.f32 %v4861, %v4988
      %v5066 = vmax.f32 %v4862, %v4991
      %v5067 = vmax.f32 %v4863, %v4993
      %v5068 = vmax.f32 %v4864, %v4996
      %v5069 = vmax.f32 %v4865, %v4998
      %v5070 = vmax.f32 %v4866, %v5001
      %v5071 = vmax.f32 %v4867, %v5003
      %v5072 = vmax.f32 %v3693, %v5038
      %v5073 = vmax.f32 %v3694, %v5039
      %v5074 = vmax.f32 %v3695, %v5040
      %v5075 = vmax.f32 %v3696, %v5041
      %v5076 = vmax.f32 %v3697, %v5042
      %v5077 = vmax.f32 %v3698, %v5043
      %v5078 = vmax.f32 %v3699, %v5044
      %v5079 = vmax.f32 %v3700, %v5045
      %v5080 = vmax.f32 %v3701, %v5046
      %v5081 = vmax.f32 %v3702, %v5047
      %v5082 = vmax.f32 %v3703, %v5048
      %v5083 = vmax.f32 %v3704, %v5049
      %v5084 = vmax.f32 %v3705, %v5050
      %v5085 = vmax.f32 %v3706, %v5051
      %v5086 = vmax.f32 %v3707, %v5052
      %v5087 = vmax.f32 %v3708, %v5053
      %v5088 = vmax.f32 %v3709, %v5054
      %v5089 = vmax.f32 %v3710, %v5055
      %v5090 = vmax.f32 %v3711, %v5056
      %v5091 = vmax.f32 %v3712, %v5057
      %v5092 = vmax.f32 %v3713, %v5058
      %v5093 = vmax.f32 %v3714, %v5059
      %v5094 = vmax.f32 %v3715, %v5060
      %v5095 = vmax.f32 %v3716, %v5061
      %v5096 = vmax.f32 %v3717, %v5062
      %v5097 = vmax.f32 %v3718, %v5063
      %v5098 = vmax.f32 %v3719, %v5064
      %v5099 = vmax.f32 %v3720, %v5065
      %v5100 = vmax.f32 %v3721, %v5066
      %v5101 = vmax.f32 %v3722, %v5067
      %v5102 = vmax.f32 %v3723, %v5068
      %v5103 = vmax.f32 %v3724, %v5069
      %v5104 = vmax.f32 %v3725, %v5070
      %v5105 = vmax.f32 %v3726, %v5071
      %v5106 = vmax.f32 %v5072, %v5074
      %v5107 = vmax.f32 %v5073, %v5075
      %v5108 = vmax.f32 %v5076, %v5078
      %v5109 = vmax.f32 %v5077, %v5079
      %v5110 = vmax.f32 %v5080, %v5082
      %v5111 = vmax.f32 %v5081, %v5083
      %v5112 = vmax.f32 %v5084, %v5086
      %v5113 = vmax.f32 %v5085, %v5087
      %v5114 = vmax.f32 %v5088, %v5090
      %v5115 = vmax.f32 %v5089, %v5091
      %v5116 = vmax.f32 %v5092, %v5094
      %v5117 = vmax.f32 %v5093, %v5095
      %v5118 = vmax.f32 %v5096, %v5098
      %v5119 = vmax.f32 %v5097, %v5099
      %v5120 = vmax.f32 %v5100, %v5102
      %v5121 = vmax.f32 %v5101, %v5103
      %v5122 = vmax.f32 %v5106, %v5076
      %v5123 = vmax.f32 %v5107, %v5077
      %v5124 = vmax.f32 %v5108, %v5080
      %v5125 = vmax.f32 %v5109, %v5081
      %v5126 = vmax.f32 %v5110, %v5084
      %v5127 = vmax.f32 %v5111, %v5085
      %v5128 = vmax.f32 %v5112, %v5088
      %v5129 = vmax.f32 %v5113, %v5089
      %v5130 = vmax.f32 %v5114, %v5092
      %v5131 = vmax.f32 %v5115, %v5093
      %v5132 = vmax.f32 %v5116, %v5096
      %v5133 = vmax.f32 %v5117, %v5097
      %v5134 = vmax.f32 %v5118, %v5100
      %v5135 = vmax.f32 %v5119, %v5101
      %v5136 = vmax.f32 %v5120, %v5104
      %v5137 = vmax.f32 %v5121, %v5105
      %v5138 = vadd.f32 %v5122, %v2830
      %v5139 = vadd.f32 %v5123, %v2830
      %v5140 = vadd.f32 %v5124, %v2830
      %v5141 = vadd.f32 %v5125, %v2830
      %v5142 = vadd.f32 %v5126, %v2830
      %v5143 = vadd.f32 %v5127, %v2830
      %v5144 = vadd.f32 %v5128, %v2830
      %v5145 = vadd.f32 %v5129, %v2830
      %v5146 = vadd.f32 %v5130, %v2830
      %v5147 = vadd.f32 %v5131, %v2830
      %v5148 = vadd.f32 %v5132, %v2830
      %v5149 = vadd.f32 %v5133, %v2830
      %v5150 = vadd.f32 %v5134, %v2830
      %v5151 = vadd.f32 %v5135, %v2830
      %v5152 = vadd.f32 %v5136, %v2830
      %v5153 = vadd.f32 %v5137, %v2830
      %v5154 = vmax.f32 %v5138, 0.0
      %v5155 = vmax.f32 %v5139, 0.0
      %v5156 = vmax.f32 %v5140, 0.0
      %v5157 = vmax.f32 %v5141, 0.0
      %v5158 = vmax.f32 %v5142, 0.0
      %v5159 = vmax.f32 %v5143, 0.0
      %v5160 = vmax.f32 %v5144, 0.0
      %v5161 = vmax.f32 %v5145, 0.0
      %v5162 = vmax.f32 %v5146, 0.0
      %v5163 = vmax.f32 %v5147, 0.0
      %v5164 = vmax.f32 %v5148, 0.0
      %v5165 = vmax.f32 %v5149, 0.0
      %v5166 = vmax.f32 %v5150, 0.0
      %v5167 = vmax.f32 %v5151, 0.0
      %v5168 = vmax.f32 %v5152, 0.0
      %v5169 = vmax.f32 %v5153, 0.0
      %s5170 = scalar_lea.vmem %s489, 128
      %5171 = vst.msk [vmem:[%s5170] sm:$0xff] %vm2864, %v5154
      %5172 = vst.msk [vmem:[%s5170 + $0x8] sm:$0xff] %vm2864, %v5155
      %5173 = vst.msk [vmem:[%s5170 + $0x10] sm:$0xff] %vm2864, %v5156
      %5174 = vst.msk [vmem:[%s5170 + $0x18] sm:$0xff] %vm2864, %v5157
      %5175 = vst.msk [vmem:[%s5170 + $0x20] sm:$0xff] %vm2864, %v5158
      %5176 = vst.msk [vmem:[%s5170 + $0x28] sm:$0xff] %vm2864, %v5159
      %5177 = vst.msk [vmem:[%s5170 + $0x30] sm:$0xff] %vm2864, %v5160
      %5178 = vst.msk [vmem:[%s5170 + $0x38] sm:$0xff] %vm2864, %v5161
      %5179 = vst.msk [vmem:[%s5170 + $0x40] sm:$0xff] %vm2864, %v5162
      %5180 = vst.msk [vmem:[%s5170 + $0x48] sm:$0xff] %vm2864, %v5163
      %5181 = vst.msk [vmem:[%s5170 + $0x50] sm:$0xff] %vm2864, %v5164
      %5182 = vst.msk [vmem:[%s5170 + $0x58] sm:$0xff] %vm2864, %v5165
      %5183 = vst.msk [vmem:[%s5170 + $0x60] sm:$0xff] %vm2864, %v5166
      %5184 = vst.msk [vmem:[%s5170 + $0x68] sm:$0xff] %vm2864, %v5167
      %5185 = vst.msk [vmem:[%s5170 + $0x70] sm:$0xff] %vm2864, %v5168
      %5186 = vst.msk [vmem:[%s5170 + $0x78] sm:$0xff] %vm2864, %v5169
      %s5187 = smul.u32 16, %s22
      %p5188 = scmp.lt.s32.totalorder %s21, 1
      %s5189 = scalar_select %p5188, %s21, 1
      %p5190 = scmp.lt.s32.totalorder %s5187, 31
      %s5191 = scalar_select %p5190, %s5187, 31
      %s5192 = smul.addr %s5191, 2
      %s5193 = smul.addr %s5189, 64
      %s5194 = sadd.s32 %s5192, %s5193
      %s5195 = smul.addr %s5194, 8
      %s5196 = scalar_lea.vmem %s6, %s5195
      // Predicated region
      $region45: #{base_stem_forward.1} parent=43 // pred_check
        %p5197 = pneg %p211
      $region46: #{base_stem_forward.1} parent=43 // pred_check_branch
        %5199 = sbr.rel (%p5197) target = $region48
      $region47: #{base_stem_forward.1} parent=43 // pred_region
        %s5200 = smul.u32 16, %s22
      $region48: #{base_stem_forward.1} parent=43 // pred_fallthru
        _
    $region44: #{base_stem_forward.1} parent=5 // pred_fallthru
      _
    %p5201 = scmp.le.s32.totalorder 2, %s12
    // Predicated region
    $region49: #{base_stem_forward.1} parent=5 // pred_check
      %p5202 = pneg %p5201
    $region50: #{base_stem_forward.1} parent=5 // pred_check_branch
      %5204 = sbr.rel (%p5202) target = $region52
    $region51: #{base_stem_forward.1} parent=5 // pred_region
      %s5205 = ssub.s32 %s12, 2
      // Predicated region
      $region53: #{base_stem_forward.1} parent=51 // pred_check
        %p5206 = pneg %p217
      $region54: #{base_stem_forward.1} parent=51 // pred_check_branch
        %5208 = sbr.rel (%p5206) target = $region56
      $region55: #{base_stem_forward.1} parent=51 // pred_region
        %s5209 = smul.u32 16, %s24
        %p5210 = scmp.lt.s32.totalorder %s23, 1
        %s5211 = scalar_select %p5210, %s23, 1
        %p5212 = scmp.lt.s32.totalorder %s5209, 31
        %s5213 = scalar_select %p5212, %s5209, 31
        %s5214 = smul.addr %s5213, 2
        %s5215 = smul.addr %s5211, 64
        %s5216 = sadd.s32 %s5214, %s5215
        %s5217 = smul.addr %s5216, 8
        %s5218 = scalar_lea.vmem %s6, %s5217
      $region56: #{base_stem_forward.1} parent=51 // pred_fallthru
        _
    $region52: #{base_stem_forward.1} parent=5 // pred_fallthru
      _
  $region6: #{base_stem_forward.1} parent=0 // loop_footer
    %s16 = sadd.s32 1, %s12
  $region7: #{base_stem_forward.1} parent=0 // loop_footer_branch
    %11 = sbr.rel target = $region3
  $region8: #{base_stem_forward.1} parent=0 // loop_exit
    _

</llo_original>
